<compile_context>
chip_gen: v6e
topology: v6e:2x2x1
jax: 0.10.0
libtpu: 0.0.40
codegen_flags: <defaults>
</compile_context>

<pallas_src>
import functools
import math

import jax
import jax.numpy as jnp
import numpy as np
from jax.experimental import pallas as pl
from jax.experimental.pallas import tpu as pltpu


# ----------------------------------------------------------------------------
# shared math helpers (used both inside the kernel and in the pure-JAX ref)
# ----------------------------------------------------------------------------
def _layernorm(v, g, b, eps=1e-8):
    mu = jnp.mean(v, axis=-1, keepdims=True)
    var = jnp.mean((v - mu) ** 2, axis=-1, keepdims=True)
    return (v - mu) * jax.lax.rsqrt(var + eps) * g + b


def _softplus(x):
    # log(1 + exp(x)), numerically stable
    return jnp.maximum(x, 0.0) + jnp.log(1.0 + jnp.exp(-jnp.abs(x)))


# ----------------------------------------------------------------------------
# Fused Pallas kernel: prep + all transformer blocks + final LN + loss sums
# ----------------------------------------------------------------------------
def sasrec_fused_kernel(
        x_ref, pos_e_ref, neg_e_ref, mask_ref, postab_ref,
        ln1g_ref, ln1b_ref,
        wq_ref, bq_ref, wkv_ref, bkv_ref, wo_ref, bo_ref,
        ln2g_ref, ln2b_ref, w1_ref, b1_ref, w2_ref, b2_ref,
        lng_ref, lnb_ref,
        out_ref,
        *, num_blocks, num_heads, tb, seq_len, scale, compute_dtype):
    L = seq_len
    H = wq_ref.shape[-1]
    hd = H // num_heads
    rows = tb * L

    masks = mask_ref[...]                                # (rows, 2) f32
    tm = masks[:, 0:1]                                   # timeline mask
    vm = masks[:, 1:2]                                   # pos!=0 valid mask
    pos_tab = postab_ref[...]                            # (L, H) f32

    # --- embedding prep: x*sqrt(H) + pos_emb, timeline masked ---------------
    x3 = x_ref[...].astype(jnp.float32).reshape(tb, L, H) * scale \
        + pos_tab[None, :, :]
    x = x3.reshape(rows, H) * tm                         # (rows, H) f32

    # causal mask (key j allowed iff j <= query i); shared by all blocks/heads
    row_i = jax.lax.broadcasted_iota(jnp.int32, (L, L), 0)
    col_i = jax.lax.broadcasted_iota(jnp.int32, (L, L), 1)
    causal = (col_i <= row_i)[None]                      # (1, L, L)

    # sequential block chain; unrolled (num_blocks is small).
    for blk in range(num_blocks):
        # --- attention layernorm (Q branch only; K/V use raw seqs) ----------
        q_in = _layernorm(x, ln1g_ref[blk], ln1b_ref[blk])        # (rows, H)
        q_in_c = q_in.astype(compute_dtype)
        x_c = x.astype(compute_dtype)

        # fused full-width projections (1/sqrt(hd) pre-folded into wq/bq)
        q = jnp.dot(q_in_c, wq_ref[blk],
                    preferred_element_type=jnp.float32) + bq_ref[blk]   # (rows,H)
        kv = jnp.dot(x_c, wkv_ref[blk],
                     preferred_element_type=jnp.float32) + bkv_ref[blk]  # (rows,2H)

        head_outs = []
        for h in range(num_heads):
            lo, hi = h * hd, (h + 1) * hd
            q3 = q[:, lo:hi].reshape(tb, L, hd).astype(compute_dtype)
            k3 = kv[:, lo:hi].reshape(tb, L, hd).astype(compute_dtype)
            v3 = kv[:, H + lo:H + hi].reshape(tb, L, hd).astype(compute_dtype)

            # scores / softmax kept in f32 (mask value -1e30 must not see bf16)
            s = jnp.einsum('bqd,bkd->bqk', q3, k3,
                           preferred_element_type=jnp.float32)    # (tb, L, L)
            s = jnp.where(causal, s, -1e30)
            s = s - jnp.max(s, axis=-1, keepdims=True)
            p = jnp.exp(s)
            p = p * pl.reciprocal(jnp.sum(p, axis=-1, keepdims=True),
                                  approx=True)

            o = jnp.einsum('bqk,bkd->bqd', p.astype(compute_dtype), v3,
                           preferred_element_type=jnp.float32)    # (tb, L, hd)
            head_outs.append(o.reshape(rows, hd))

        o_full = head_outs[0] if num_heads == 1 else \
            jnp.concatenate(head_outs, axis=-1)                   # (rows, H)
        mha = jnp.dot(o_full.astype(compute_dtype), wo_ref[blk],
                      preferred_element_type=jnp.float32) + bo_ref[blk]

        # residual with the LayerNorm'd Q (intentional: matches PyTorch SASRec)
        seqs = q_in + mha

        # --- feed-forward layernorm + PointWiseFeedForward (1x1 convs) ------
        y = _layernorm(seqs, ln2g_ref[blk], ln2b_ref[blk])
        h1 = jnp.maximum(
            jnp.dot(y.astype(compute_dtype), w1_ref[blk],
                    preferred_element_type=jnp.float32) + b1_ref[blk], 0.0)
        h2 = jnp.dot(h1.astype(compute_dtype), w2_ref[blk],
                     preferred_element_type=jnp.float32) + b2_ref[blk]
        x = (y + h2) * tm

    # --- final LayerNorm (eps=1e-8) + masked BCE partial sums ---------------
    lf = _layernorm(x, lng_ref[...], lnb_ref[...])       # (rows, H)
    pos_logits = jnp.sum(lf * pos_e_ref[...].astype(jnp.float32),
                         axis=-1, keepdims=True)
    neg_logits = jnp.sum(lf * neg_e_ref[...].astype(jnp.float32),
                         axis=-1, keepdims=True)
    pos_sum = jnp.sum(vm * _softplus(-pos_logits))       # targets = 1
    neg_sum = jnp.sum(vm * _softplus(neg_logits))        # targets = 0
    n_valid = jnp.sum(vm)

    # lane-dense (8,128) output slab: [0,0]=pos_sum [0,1]=neg_sum [0,2]=count
    r = jax.lax.broadcasted_iota(jnp.int32, (8, 128), 0)
    c = jax.lax.broadcasted_iota(jnp.int32, (8, 128), 1)
    vals = jnp.where((r == 0) & (c == 0), pos_sum,
           jnp.where((r == 0) & (c == 1), neg_sum,
           jnp.where((r == 0) & (c == 2), n_valid, 0.0)))
    out_ref[0] = vals


# ----------------------------------------------------------------------------
# host-side weight packing: pre-transpose, fuse heads, fold 1/sqrt(hd), stack
# ----------------------------------------------------------------------------
def pack_params(params, num_heads, compute_dtype):
    blocks = params['blocks']
    H = params['item_emb'].shape[1]
    hd = H // num_heads
    inv_sqrt_hd = 1.0 / math.sqrt(hd)

    ln1_g = jnp.stack([b['ln1_g'].reshape(1, H) for b in blocks])
    ln1_b = jnp.stack([b['ln1_b'].reshape(1, H) for b in blocks])
    ln2_g = jnp.stack([b['ln2_g'].reshape(1, H) for b in blocks])
    ln2_b = jnp.stack([b['ln2_b'].reshape(1, H) for b in blocks])

    # in-proj (PyTorch layout (3H, H)): pre-transpose; fold 1/sqrt(hd) into Q.
    wq = jnp.stack([b['in_w'][:H].T * inv_sqrt_hd for b in blocks])     # (NB,H,H)
    bq = jnp.stack([(b['in_b'][0, :H] * inv_sqrt_hd).reshape(1, H)
                    for b in blocks])
    wkv = jnp.stack([b['in_w'][H:].T for b in blocks])                  # (NB,H,2H)
    bkv = jnp.stack([b['in_b'][0, H:].reshape(1, 2 * H) for b in blocks])

    # out-proj: y = concat_heads(attn) @ out_w.T + out_b  (single K=H matmul)
    wo = jnp.stack([b['out_w'].T for b in blocks])                      # (NB,H,H)
    bo = jnp.stack([b['out_b'].reshape(1, H) for b in blocks])

    w1 = jnp.stack([b['w1'].T for b in blocks])          # pre-transposed
    b1 = jnp.stack([b['b1'].reshape(1, H) for b in blocks])
    w2 = jnp.stack([b['w2'].T for b in blocks])
    b2 = jnp.stack([b['b2'].reshape(1, H) for b in blocks])

    cd = compute_dtype
    return dict(
        ln1_g=ln1_g, ln1_b=ln1_b, ln2_g=ln2_g, ln2_b=ln2_b,
        wq=wq.astype(cd), bq=bq, wkv=wkv.astype(cd), bkv=bkv,
        wo=wo.astype(cd), bo=bo,
        w1=w1.astype(cd), b1=b1, w2=w2.astype(cd), b2=b2,
        last_g=params['last_ln_g'].reshape(1, H),
        last_b=params['last_ln_b'].reshape(1, H))


# ----------------------------------------------------------------------------
# SASRec forward (Pallas)
# ----------------------------------------------------------------------------
def sasrec_forward(params, log_seqs, pos_seqs, neg_seqs, cl_weight, num_heads,
                   compute_dtype=jnp.float32, batch_tile=None, target_rows=512):
    B, L = log_seqs.shape
    H = params['item_emb'].shape[1]
    NB = len(params['blocks'])
    assert H % num_heads == 0

    # --- batch tile: ~target_rows MXU rows/step, grid >= 2 steps when B > 1 --
    if batch_tile is None:
        tb = max(1, min(B, target_rows // max(L, 1)))
        if B > 1:
            tb = min(tb, max(1, B // 2))     # keep second TensorCore busy (v7x)
    else:
        tb = max(1, min(B, int(batch_tile)))
    while tb > 1 and (B % tb != 0 or (tb * L) % 8 != 0):
        tb -= 1
    if B % tb != 0 or ((tb * L) % 8 != 0 and tb * L != B * L):
        tb = B                                  # single full tile always legal
    num_tiles = B // tb
    rows = tb * L

    # --- embedding gathers + merged masks (flattened so blocks are (rows,*)) -
    emb_in_dtype = jnp.float32 if compute_dtype == jnp.float32 else compute_dtype
    item_emb = params['item_emb']
    x_flat = jnp.take(item_emb, log_seqs, axis=0).reshape(B * L, H).astype(emb_in_dtype)
    pos_e = jnp.take(item_emb, pos_seqs, axis=0).reshape(B * L, H).astype(emb_in_dtype)
    neg_e = jnp.take(item_emb, neg_seqs, axis=0).reshape(B * L, H).astype(emb_in_dtype)
    masks = jnp.stack([(log_seqs != 0).reshape(-1),
                       (pos_seqs != 0).reshape(-1)], axis=-1).astype(jnp.float32)
    pos_table = params['pos_emb'][:L]

    pk = pack_params(params, num_heads, compute_dtype)
    weights = [pk['ln1_g'], pk['ln1_b'],
               pk['wq'], pk['bq'], pk['wkv'], pk['bkv'], pk['wo'], pk['bo'],
               pk['ln2_g'], pk['ln2_b'], pk['w1'], pk['b1'], pk['w2'], pk['b2'],
               pk['last_g'], pk['last_b']]

    row_spec_H = pl.BlockSpec((rows, H), lambda b: (b, 0))
    row_spec_2 = pl.BlockSpec((rows, 2), lambda b: (b, 0))

    def _const_spec(arr):
        # block-constant input: index_map never changes, single-buffer it.
        nd = arr.ndim
        idx_map = lambda b, _nd=nd: (0,) * _nd
        try:
            return pl.BlockSpec(arr.shape, idx_map, pipeline_mode=pl.Buffered(1))
        except TypeError:
            return pl.BlockSpec(arr.shape, idx_map)

    in_specs = ([row_spec_H, row_spec_H, row_spec_H, row_spec_2,
                 _const_spec(pos_table)]
                + [_const_spec(w) for w in weights])

    # --- explicit VMEM budget: resident weights + double-buffered tiles ------
    def _nbytes(a):
        return int(np.prod(a.shape)) * jnp.dtype(a.dtype).itemsize

    weight_bytes = sum(_nbytes(w) for w in weights) + _nbytes(pos_table)
    act_itemsize = jnp.dtype(emb_in_dtype).itemsize
    streamed_bytes = 2 * (3 * rows * H * act_itemsize + rows * 2 * 4 + 8 * 128 * 4)
    scratch_bytes = 8 * rows * H * 4 + 2 * tb * L * L * 4 + rows * 2 * H * 4
    est = weight_bytes + streamed_bytes + scratch_bytes + (2 << 20)
    vmem_limit_bytes = int(min(48 << 20, max(32 << 20, est)))

    kernel = functools.partial(
        sasrec_fused_kernel, num_blocks=NB, num_heads=num_heads,
        tb=tb, seq_len=L, scale=math.sqrt(H), compute_dtype=compute_dtype)

    partial_sums = pl.pallas_call(
        kernel,
        out_shape=jax.ShapeDtypeStruct((num_tiles, 8, 128), jnp.float32),
        grid=(num_tiles,),
        in_specs=in_specs,
        out_specs=pl.BlockSpec((1, 8, 128), lambda b: (b, 0, 0)),
        compiler_params=pltpu.CompilerParams(
            dimension_semantics=("parallel",),
            vmem_limit_bytes=vmem_limit_bytes),
    )(x_flat, pos_e, neg_e, masks, pos_table, *weights)

    pos_sum = jnp.sum(partial_sums[:, 0, 0])
    neg_sum = jnp.sum(partial_sums[:, 0, 1])
    n_valid = jnp.maximum(jnp.sum(partial_sums[:, 0, 2]), 1.0)  # guard n == 0
    rec_loss = (pos_sum + neg_sum) / n_valid

    # TODO(synk): cl_loss (ProjectionModule / NCELoss) not implemented --
    # NCELoss is undefined in the reference and shapes are data-dependent.
    cl_loss = jnp.float32(0.0)
    loss = rec_loss + cl_weight * cl_loss
    return loss, rec_loss, cl_loss


# ----------------------------------------------------------------------------
# Pure-JAX reference with identical math (for correctness checking)
# ----------------------------------------------------------------------------
def sasrec_forward_ref(params, log_seqs, pos_seqs, neg_seqs, cl_weight, num_heads):
    B, L = log_seqs.shape
    H = params['item_emb'].shape[1]
    item_emb = params['item_emb']
    seqs = jnp.take(item_emb, log_seqs, axis=0) * math.sqrt(H)
    seqs = seqs + params['pos_emb'][:L][None]
    tmask = (log_seqs != 0).astype(jnp.float32)[..., None]
    seqs = seqs * tmask
    row = jnp.arange(L)[:, None]
    col = jnp.arange(L)[None, :]
    allowed = col <= row
    hd = H // num_heads
    for blk in params['blocks']:
        q_in = _layernorm(seqs, blk['ln1_g'], blk['ln1_b'])
        ipw, ipb = blk['in_w'], blk['in_b'][0]
        q = q_in @ ipw[:H].T + ipb[:H]
        k = seqs @ ipw[H:2 * H].T + ipb[H:2 * H]
        v = seqs @ ipw[2 * H:].T + ipb[2 * H:]
        q = q.reshape(B, L, num_heads, hd).transpose(0, 2, 1, 3) / math.sqrt(hd)
        k = k.reshape(B, L, num_heads, hd).transpose(0, 2, 1, 3)
        v = v.reshape(B, L, num_heads, hd).transpose(0, 2, 1, 3)
        s = jnp.einsum('bhqd,bhkd->bhqk', q, k)
        s = jnp.where(allowed[None, None], s, -1e30)
        p = jax.nn.softmax(s, axis=-1)
        attn = jnp.einsum('bhqk,bhkd->bhqd', p, v).transpose(0, 2, 1, 3).reshape(B, L, H)
        mha = attn @ blk['out_w'].T + blk['out_b'][0]
        seqs = q_in + mha
        y = _layernorm(seqs, blk['ln2_g'], blk['ln2_b'])
        h1 = jnp.maximum(y @ blk['w1'].T + blk['b1'][0], 0.0)
        h2 = h1 @ blk['w2'].T + blk['b2'][0]
        seqs = (y + h2) * tmask
    lf = _layernorm(seqs, params['last_ln_g'], params['last_ln_b'])
    pos_embs = jnp.take(item_emb, pos_seqs, axis=0)
    neg_embs = jnp.take(item_emb, neg_seqs, axis=0)
    pos_logits = jnp.sum(lf * pos_embs, -1)
    neg_logits = jnp.sum(lf * neg_embs, -1)
    valid = (pos_seqs != 0).astype(jnp.float32)
    n = jnp.sum(valid)
    rec = jnp.sum(valid * _softplus(-pos_logits)) / n + \
          jnp.sum(valid * _softplus(neg_logits)) / n
    return rec + cl_weight * 0.0, rec, jnp.float32(0.0)


# ----------------------------------------------------------------------------
# Deterministic parameter construction (PyTorch-layout params)
# ----------------------------------------------------------------------------
def make_params(key, item_num, maxlen, hidden, num_blocks):
    keys = jax.random.split(key, 4 + num_blocks * 8)
    ki = iter(keys)
    item_emb = 0.05 * jax.random.normal(next(ki), (item_num + 1, hidden), jnp.float32)
    item_emb = item_emb.at[0].set(0.0)          # padding_idx=0
    pos_emb = 0.05 * jax.random.normal(next(ki), (maxlen, hidden), jnp.float32)
    blocks = []
    for _ in range(num_blocks):
        blocks.append(dict(
            ln1_g=jnp.ones((1, hidden), jnp.float32),
            ln1_b=jnp.zeros((1, hidden), jnp.float32),
            in_w=0.05 * jax.random.normal(next(ki), (3 * hidden, hidden), jnp.float32),
            in_b=0.01 * jax.random.normal(next(ki), (1, 3 * hidden), jnp.float32),
            out_w=0.05 * jax.random.normal(next(ki), (hidden, hidden), jnp.float32),
            out_b=0.01 * jax.random.normal(next(ki), (1, hidden), jnp.float32),
            ln2_g=jnp.ones((1, hidden), jnp.float32),
            ln2_b=jnp.zeros((1, hidden), jnp.float32),
            w1=0.05 * jax.random.normal(next(ki), (hidden, hidden), jnp.float32),
            b1=0.01 * jax.random.normal(next(ki), (1, hidden), jnp.float32),
            w2=0.05 * jax.random.normal(next(ki), (hidden, hidden), jnp.float32),
            b2=0.01 * jax.random.normal(next(ki), (1, hidden), jnp.float32),
        ))
    return dict(item_emb=item_emb, pos_emb=pos_emb, blocks=blocks,
                last_ln_g=jnp.ones((1, hidden), jnp.float32),
                last_ln_b=jnp.zeros((1, hidden), jnp.float32))


# ----------------------------------------------------------------------------
if __name__ == "__main__":
    B, L, H = 2, 8, 32
    num_heads, num_blocks = 2, 2
    item_num = 50
    cl_weight = 0.1

    key = jax.random.PRNGKey(0)
    kp, k1, k2, k3 = jax.random.split(key, 4)
    params = make_params(kp, item_num, L, H, num_blocks)

    log_seqs = jax.random.randint(k1, (B, L), 0, item_num + 1, jnp.int32)
    log_seqs = log_seqs.at[:, :2].set(0)          # leading padding
    pos_seqs = jax.random.randint(k2, (B, L), 1, item_num + 1, jnp.int32)
    pos_seqs = pos_seqs.at[:, :2].set(0)
    neg_seqs = jax.random.randint(k3, (B, L), 1, item_num + 1, jnp.int32)

    # f32 compute path (default) -- 2-tile grid exercises the multi-tile path
    loss, rec_loss, cl_loss = sasrec_forward(
        params, log_seqs, pos_seqs, neg_seqs, cl_weight, num_heads)
    jax.block_until_ready((loss, rec_loss, cl_loss))

    # cross-check against a pure-JAX reference with identical math
    loss_r, rec_r, _ = sasrec_forward_ref(
        params, log_seqs, pos_seqs, neg_seqs, cl_weight, num_heads)
    assert np.isfinite(float(loss)), "non-finite loss"
    np.testing.assert_allclose(np.asarray(rec_loss), np.asarray(rec_r),
                               rtol=2e-3, atol=2e-3)

    # bf16 MXU path (weights + gathered embeddings cast on host, f32 accum)
    loss_bf, rec_bf, _ = sasrec_forward(
        params, log_seqs, pos_seqs, neg_seqs, cl_weight, num_heads,
        compute_dtype=jnp.bfloat16)
    jax.block_until_ready((loss_bf, rec_bf))
    assert np.isfinite(float(loss_bf)), "non-finite bf16 loss"
    np.testing.assert_allclose(np.asarray(rec_bf), np.asarray(rec_r),
                               rtol=5e-2, atol=5e-2)

    print("KERNEL_OK")
</pallas_src>

<mosaic_0001>
module attributes {stable_mosaic.version = 11 : i64} {
  func.func @sasrec_fused_kernel(%arg0: i32, %arg1: memref<8x32xf32, #tpu.memory_space<vmem>>, %arg2: memref<8x32xf32, #tpu.memory_space<vmem>>, %arg3: memref<8x32xf32, #tpu.memory_space<vmem>>, %arg4: memref<8x2xf32, #tpu.memory_space<vmem>>, %arg5: memref<8x32xf32, #tpu.memory_space<vmem>>, %arg6: memref<2x1x32xf32, #tpu.memory_space<vmem>>, %arg7: memref<2x1x32xf32, #tpu.memory_space<vmem>>, %arg8: memref<2x32x32xf32, #tpu.memory_space<vmem>>, %arg9: memref<2x1x32xf32, #tpu.memory_space<vmem>>, %arg10: memref<2x32x64xf32, #tpu.memory_space<vmem>>, %arg11: memref<2x1x64xf32, #tpu.memory_space<vmem>>, %arg12: memref<2x32x32xf32, #tpu.memory_space<vmem>>, %arg13: memref<2x1x32xf32, #tpu.memory_space<vmem>>, %arg14: memref<2x1x32xf32, #tpu.memory_space<vmem>>, %arg15: memref<2x1x32xf32, #tpu.memory_space<vmem>>, %arg16: memref<2x32x32xf32, #tpu.memory_space<vmem>>, %arg17: memref<2x1x32xf32, #tpu.memory_space<vmem>>, %arg18: memref<2x32x32xf32, #tpu.memory_space<vmem>>, %arg19: memref<2x1x32xf32, #tpu.memory_space<vmem>>, %arg20: memref<1x32xf32, #tpu.memory_space<vmem>>, %arg21: memref<1x32xf32, #tpu.memory_space<vmem>>, %arg22: memref<1x8x128xf32, #tpu.memory_space<vmem>>) attributes {dimension_semantics = [#tpu.dimension_semantics<parallel>], iteration_bounds = array<i64: 2>, scalar_prefetch = 0 : i64, scratch_operands = 0 : i64, tpu.core_type = #tpu.core_type<tc>, window_params = [{transform_indices = @transform_0, window_bounds = array<i64: 8, 32>}, {transform_indices = @transform_1, window_bounds = array<i64: 8, 32>}, {transform_indices = @transform_2, window_bounds = array<i64: 8, 32>}, {transform_indices = @transform_3, window_bounds = array<i64: 8, 2>}, {pipeline_mode = #tpu.pipeline_mode<synchronous>, transform_indices = @transform_4, window_bounds = array<i64: 8, 32>}, {pipeline_mode = #tpu.pipeline_mode<synchronous>, transform_indices = @transform_5, window_bounds = array<i64: 2, 1, 32>}, {pipeline_mode = #tpu.pipeline_mode<synchronous>, transform_indices = @transform_6, window_bounds = array<i64: 2, 1, 32>}, {pipeline_mode = #tpu.pipeline_mode<synchronous>, transform_indices = @transform_7, window_bounds = array<i64: 2, 32, 32>}, {pipeline_mode = #tpu.pipeline_mode<synchronous>, transform_indices = @transform_8, window_bounds = array<i64: 2, 1, 32>}, {pipeline_mode = #tpu.pipeline_mode<synchronous>, transform_indices = @transform_9, window_bounds = array<i64: 2, 32, 64>}, {pipeline_mode = #tpu.pipeline_mode<synchronous>, transform_indices = @transform_10, window_bounds = array<i64: 2, 1, 64>}, {pipeline_mode = #tpu.pipeline_mode<synchronous>, transform_indices = @transform_11, window_bounds = array<i64: 2, 32, 32>}, {pipeline_mode = #tpu.pipeline_mode<synchronous>, transform_indices = @transform_12, window_bounds = array<i64: 2, 1, 32>}, {pipeline_mode = #tpu.pipeline_mode<synchronous>, transform_indices = @transform_13, window_bounds = array<i64: 2, 1, 32>}, {pipeline_mode = #tpu.pipeline_mode<synchronous>, transform_indices = @transform_14, window_bounds = array<i64: 2, 1, 32>}, {pipeline_mode = #tpu.pipeline_mode<synchronous>, transform_indices = @transform_15, window_bounds = array<i64: 2, 32, 32>}, {pipeline_mode = #tpu.pipeline_mode<synchronous>, transform_indices = @transform_16, window_bounds = array<i64: 2, 1, 32>}, {pipeline_mode = #tpu.pipeline_mode<synchronous>, transform_indices = @transform_17, window_bounds = array<i64: 2, 32, 32>}, {pipeline_mode = #tpu.pipeline_mode<synchronous>, transform_indices = @transform_18, window_bounds = array<i64: 2, 1, 32>}, {pipeline_mode = #tpu.pipeline_mode<synchronous>, transform_indices = @transform_19, window_bounds = array<i64: 1, 32>}, {pipeline_mode = #tpu.pipeline_mode<synchronous>, transform_indices = @transform_20, window_bounds = array<i64: 1, 32>}, {transform_indices = @transform_21, window_bounds = array<i64: 1, 8, 128>}]} {
    %c0 = arith.constant 0 : index
    %c0_0 = arith.constant 0 : index
    %0 = vector.load %arg4[%c0, %c0_0] : memref<8x2xf32, #tpu.memory_space<vmem>>, vector<8x2xf32>
    %1 = vector.extract_strided_slice %0 {offsets = [0, 0], sizes = [8, 1], strides = [1, 1]} : vector<8x2xf32> to vector<8x1xf32>
    %2 = vector.extract_strided_slice %0 {offsets = [0, 1], sizes = [8, 1], strides = [1, 1]} : vector<8x2xf32> to vector<8x1xf32>
    %c0_1 = arith.constant 0 : index
    %c0_2 = arith.constant 0 : index
    %3 = vector.load %arg5[%c0_1, %c0_2] : memref<8x32xf32, #tpu.memory_space<vmem>>, vector<8x32xf32>
    %c0_3 = arith.constant 0 : index
    %c0_4 = arith.constant 0 : index
    %4 = vector.load %arg1[%c0_3, %c0_4] : memref<8x32xf32, #tpu.memory_space<vmem>>, vector<8x32xf32>
    %5 = vector.shape_cast %4 : vector<8x32xf32> to vector<1x8x32xf32>
    %cst = arith.constant 5.65685415 : f32
    %6 = vector.broadcast %cst : f32 to vector<1x8x32xf32>
    %7 = arith.mulf %5, %6 : vector<1x8x32xf32>
    %8 = vector.shape_cast %3 : vector<8x32xf32> to vector<1x8x32xf32>
    %9 = arith.addf %7, %8 : vector<1x8x32xf32>
    %10 = vector.shape_cast %9 : vector<1x8x32xf32> to vector<8x32xf32>
    %11 = vector.broadcast %1 : vector<8x1xf32> to vector<8x32xf32>
    %12 = arith.mulf %10, %11 : vector<8x32xf32>
    %13 = tpu.iota {dimensions = array<i32: 0>} : vector<8x8xi32>
    %14 = tpu.iota {dimensions = array<i32: 1>} : vector<8x8xi32>
    %15 = arith.cmpi sle, %14, %13 : vector<8x8xi32>
    %16 = vector.shape_cast %15 : vector<8x8xi1> to vector<1x8x8xi1>
    %c0_5 = arith.constant 0 : index
    %c0_6 = arith.constant 0 : index
    %c0_7 = arith.constant 0 : index
    %17 = vector.load %arg6[%c0_5, %c0_6, %c0_7] : memref<2x1x32xf32, #tpu.memory_space<vmem>>, vector<1x1x32xf32>
    %18 = vector.shape_cast %17 : vector<1x1x32xf32> to vector<1x32xf32>
    %c0_8 = arith.constant 0 : index
    %c0_9 = arith.constant 0 : index
    %c0_10 = arith.constant 0 : index
    %19 = vector.load %arg7[%c0_8, %c0_9, %c0_10] : memref<2x1x32xf32, #tpu.memory_space<vmem>>, vector<1x1x32xf32>
    %20 = vector.shape_cast %19 : vector<1x1x32xf32> to vector<1x32xf32>
    %cst_11 = arith.constant dense<0.000000e+00> : vector<8xf32>
    %21 = vector.multi_reduction <add>, %12, %cst_11 [1] : vector<8x32xf32> to vector<8xf32>
    %22 = vector.shape_cast %21 : vector<8xf32> to vector<8x1xf32>
    %cst_12 = arith.constant 3.200000e+01 : f32
    %23 = vector.broadcast %cst_12 : f32 to vector<8x1xf32>
    %24 = arith.divf %22, %23 : vector<8x1xf32>
    %25 = vector.broadcast %24 : vector<8x1xf32> to vector<8x32xf32>
    %26 = arith.subf %12, %25 : vector<8x32xf32>
    %27 = arith.mulf %26, %26 : vector<8x32xf32>
    %cst_13 = arith.constant dense<0.000000e+00> : vector<8xf32>
    %28 = vector.multi_reduction <add>, %27, %cst_13 [1] : vector<8x32xf32> to vector<8xf32>
    %29 = vector.shape_cast %28 : vector<8xf32> to vector<8x1xf32>
    %cst_14 = arith.constant 3.200000e+01 : f32
    %30 = vector.broadcast %cst_14 : f32 to vector<8x1xf32>
    %31 = arith.divf %29, %30 : vector<8x1xf32>
    %32 = vector.broadcast %24 : vector<8x1xf32> to vector<8x32xf32>
    %33 = arith.subf %12, %32 : vector<8x32xf32>
    %cst_15 = arith.constant 9.99999993E-9 : f32
    %34 = vector.broadcast %cst_15 : f32 to vector<8x1xf32>
    %35 = arith.addf %31, %34 : vector<8x1xf32>
    %36 = math.rsqrt %35 : vector<8x1xf32>
    %37 = vector.broadcast %36 : vector<8x1xf32> to vector<8x32xf32>
    %38 = arith.mulf %33, %37 : vector<8x32xf32>
    %39 = vector.broadcast %18 : vector<1x32xf32> to vector<8x32xf32>
    %40 = arith.mulf %38, %39 : vector<8x32xf32>
    %41 = vector.broadcast %20 : vector<1x32xf32> to vector<8x32xf32>
    %42 = arith.addf %40, %41 : vector<8x32xf32>
    %c0_16 = arith.constant 0 : index
    %c0_17 = arith.constant 0 : index
    %c0_18 = arith.constant 0 : index
    %43 = vector.load %arg8[%c0_16, %c0_17, %c0_18] : memref<2x32x32xf32, #tpu.memory_space<vmem>>, vector<1x32x32xf32>
    %44 = vector.shape_cast %43 : vector<1x32x32xf32> to vector<32x32xf32>
    %cst_19 = arith.constant dense<0.000000e+00> : vector<8x32xf32>
    %45 = tpu.matmul %42, %44, %cst_19 {dimension_numbers = #tpu.dot_dimension_numbers<[1], [0], [0], [1], [0, 0, 1, 1], [], []>} : vector<8x32xf32>, vector<32x32xf32>, vector<8x32xf32> -> vector<8x32xf32>
    %c0_20 = arith.constant 0 : index
    %c0_21 = arith.constant 0 : index
    %c0_22 = arith.constant 0 : index
    %46 = vector.load %arg9[%c0_20, %c0_21, %c0_22] : memref<2x1x32xf32, #tpu.memory_space<vmem>>, vector<1x1x32xf32>
    %47 = vector.shape_cast %46 : vector<1x1x32xf32> to vector<1x32xf32>
    %48 = vector.broadcast %47 : vector<1x32xf32> to vector<8x32xf32>
    %49 = arith.addf %45, %48 : vector<8x32xf32>
    %c0_23 = arith.constant 0 : index
    %c0_24 = arith.constant 0 : index
    %c0_25 = arith.constant 0 : index
    %50 = vector.load %arg10[%c0_23, %c0_24, %c0_25] : memref<2x32x64xf32, #tpu.memory_space<vmem>>, vector<1x32x64xf32>
    %51 = vector.shape_cast %50 : vector<1x32x64xf32> to vector<32x64xf32>
    %cst_26 = arith.constant dense<0.000000e+00> : vector<8x64xf32>
    %52 = tpu.matmul %12, %51, %cst_26 {dimension_numbers = #tpu.dot_dimension_numbers<[1], [0], [0], [1], [0, 0, 1, 1], [], []>} : vector<8x32xf32>, vector<32x64xf32>, vector<8x64xf32> -> vector<8x64xf32>
    %c0_27 = arith.constant 0 : index
    %c0_28 = arith.constant 0 : index
    %c0_29 = arith.constant 0 : index
    %53 = vector.load %arg11[%c0_27, %c0_28, %c0_29] : memref<2x1x64xf32, #tpu.memory_space<vmem>>, vector<1x1x64xf32>
    %54 = vector.shape_cast %53 : vector<1x1x64xf32> to vector<1x64xf32>
    %55 = vector.broadcast %54 : vector<1x64xf32> to vector<8x64xf32>
    %56 = arith.addf %52, %55 : vector<8x64xf32>
    %57 = vector.extract_strided_slice %49 {offsets = [0, 0], sizes = [8, 16], strides = [1, 1]} : vector<8x32xf32> to vector<8x16xf32>
    %58 = vector.shape_cast %57 : vector<8x16xf32> to vector<1x8x16xf32>
    %59 = vector.extract_strided_slice %56 {offsets = [0, 0], sizes = [8, 16], strides = [1, 1]} : vector<8x64xf32> to vector<8x16xf32>
    %60 = vector.shape_cast %59 : vector<8x16xf32> to vector<1x8x16xf32>
    %61 = vector.extract_strided_slice %56 {offsets = [0, 32], sizes = [8, 16], strides = [1, 1]} : vector<8x64xf32> to vector<8x16xf32>
    %62 = vector.shape_cast %61 : vector<8x16xf32> to vector<1x8x16xf32>
    "tpu.trace_start"() <{level = 10 : i32, message = "bqd,bkd->bqk"}> : () -> ()
    %cst_30 = arith.constant dense<0.000000e+00> : vector<1x8x8xf32>
    %63 = tpu.matmul %58, %60, %cst_30 {dimension_numbers = #tpu.dot_dimension_numbers<[2], [2], [1], [1], [0, 0, 0, 1, 1, 1], [0], [0]>} : vector<1x8x16xf32>, vector<1x8x16xf32>, vector<1x8x8xf32> -> vector<1x8x8xf32>
    %cst_31 = arith.constant -1.000000e+30 : f32
    "tpu.trace_stop"() : () -> ()
    %64 = vector.broadcast %cst_31 : f32 to vector<1x8x8xf32>
    %65 = arith.select %16, %63, %64 : vector<1x8x8xi1>, vector<1x8x8xf32>
    %cst_32 = arith.constant dense<0xFF800000> : vector<1x8xf32>
    %66 = vector.multi_reduction <maximumf>, %65, %cst_32 [2] : vector<1x8x8xf32> to vector<1x8xf32>
    %67 = vector.shape_cast %66 : vector<1x8xf32> to vector<1x8x1xf32>
    %68 = vector.broadcast %67 : vector<1x8x1xf32> to vector<1x8x8xf32>
    %69 = arith.subf %65, %68 : vector<1x8x8xf32>
    %70 = math.exp %69 : vector<1x8x8xf32>
    %cst_33 = arith.constant dense<0.000000e+00> : vector<1x8xf32>
    %71 = vector.multi_reduction <add>, %70, %cst_33 [2] : vector<1x8x8xf32> to vector<1x8xf32>
    %72 = vector.shape_cast %71 : vector<1x8xf32> to vector<1x8x1xf32>
    %73 = tpu.reciprocal %72 {approx = true} : vector<1x8x1xf32> -> vector<1x8x1xf32>
    %74 = vector.broadcast %73 : vector<1x8x1xf32> to vector<1x8x8xf32>
    %75 = arith.mulf %70, %74 : vector<1x8x8xf32>
    "tpu.trace_start"() <{level = 10 : i32, message = "bqk,bkd->bqd"}> : () -> ()
    %cst_34 = arith.constant dense<0.000000e+00> : vector<1x8x16xf32>
    %76 = tpu.matmul %75, %62, %cst_34 {dimension_numbers = #tpu.dot_dimension_numbers<[2], [1], [1], [2], [0, 0, 0, 1, 1, 2], [0], [0]>} : vector<1x8x8xf32>, vector<1x8x16xf32>, vector<1x8x16xf32> -> vector<1x8x16xf32>
    "tpu.trace_stop"() : () -> ()
    %77 = vector.shape_cast %76 : vector<1x8x16xf32> to vector<8x16xf32>
    %78 = vector.extract_strided_slice %49 {offsets = [0, 16], sizes = [8, 16], strides = [1, 1]} : vector<8x32xf32> to vector<8x16xf32>
    %79 = vector.shape_cast %78 : vector<8x16xf32> to vector<1x8x16xf32>
    %80 = vector.extract_strided_slice %56 {offsets = [0, 16], sizes = [8, 16], strides = [1, 1]} : vector<8x64xf32> to vector<8x16xf32>
    %81 = vector.shape_cast %80 : vector<8x16xf32> to vector<1x8x16xf32>
    %82 = vector.extract_strided_slice %56 {offsets = [0, 48], sizes = [8, 16], strides = [1, 1]} : vector<8x64xf32> to vector<8x16xf32>
    %83 = vector.shape_cast %82 : vector<8x16xf32> to vector<1x8x16xf32>
    "tpu.trace_start"() <{level = 10 : i32, message = "bqd,bkd->bqk"}> : () -> ()
    %cst_35 = arith.constant dense<0.000000e+00> : vector<1x8x8xf32>
    %84 = tpu.matmul %79, %81, %cst_35 {dimension_numbers = #tpu.dot_dimension_numbers<[2], [2], [1], [1], [0, 0, 0, 1, 1, 1], [0], [0]>} : vector<1x8x16xf32>, vector<1x8x16xf32>, vector<1x8x8xf32> -> vector<1x8x8xf32>
    %cst_36 = arith.constant -1.000000e+30 : f32
    "tpu.trace_stop"() : () -> ()
    %85 = vector.broadcast %cst_36 : f32 to vector<1x8x8xf32>
    %86 = arith.select %16, %84, %85 : vector<1x8x8xi1>, vector<1x8x8xf32>
    %cst_37 = arith.constant dense<0xFF800000> : vector<1x8xf32>
    %87 = vector.multi_reduction <maximumf>, %86, %cst_37 [2] : vector<1x8x8xf32> to vector<1x8xf32>
    %88 = vector.shape_cast %87 : vector<1x8xf32> to vector<1x8x1xf32>
    %89 = vector.broadcast %88 : vector<1x8x1xf32> to vector<1x8x8xf32>
    %90 = arith.subf %86, %89 : vector<1x8x8xf32>
    %91 = math.exp %90 : vector<1x8x8xf32>
    %cst_38 = arith.constant dense<0.000000e+00> : vector<1x8xf32>
    %92 = vector.multi_reduction <add>, %91, %cst_38 [2] : vector<1x8x8xf32> to vector<1x8xf32>
    %93 = vector.shape_cast %92 : vector<1x8xf32> to vector<1x8x1xf32>
    %94 = tpu.reciprocal %93 {approx = true} : vector<1x8x1xf32> -> vector<1x8x1xf32>
    %95 = vector.broadcast %94 : vector<1x8x1xf32> to vector<1x8x8xf32>
    %96 = arith.mulf %91, %95 : vector<1x8x8xf32>
    "tpu.trace_start"() <{level = 10 : i32, message = "bqk,bkd->bqd"}> : () -> ()
    %cst_39 = arith.constant dense<0.000000e+00> : vector<1x8x16xf32>
    %97 = tpu.matmul %96, %83, %cst_39 {dimension_numbers = #tpu.dot_dimension_numbers<[2], [1], [1], [2], [0, 0, 0, 1, 1, 2], [0], [0]>} : vector<1x8x8xf32>, vector<1x8x16xf32>, vector<1x8x16xf32> -> vector<1x8x16xf32>
    "tpu.trace_stop"() : () -> ()
    %98 = vector.shape_cast %97 : vector<1x8x16xf32> to vector<8x16xf32>
    %99 = tpu.concatenate %77, %98 in 1 : vector<8x16xf32>, vector<8x16xf32> -> vector<8x32xf32>
    %c0_40 = arith.constant 0 : index
    %c0_41 = arith.constant 0 : index
    %c0_42 = arith.constant 0 : index
    %100 = vector.load %arg12[%c0_40, %c0_41, %c0_42] : memref<2x32x32xf32, #tpu.memory_space<vmem>>, vector<1x32x32xf32>
    %101 = vector.shape_cast %100 : vector<1x32x32xf32> to vector<32x32xf32>
    %cst_43 = arith.constant dense<0.000000e+00> : vector<8x32xf32>
    %102 = tpu.matmul %99, %101, %cst_43 {dimension_numbers = #tpu.dot_dimension_numbers<[1], [0], [0], [1], [0, 0, 1, 1], [], []>} : vector<8x32xf32>, vector<32x32xf32>, vector<8x32xf32> -> vector<8x32xf32>
    %c0_44 = arith.constant 0 : index
    %c0_45 = arith.constant 0 : index
    %c0_46 = arith.constant 0 : index
    %103 = vector.load %arg13[%c0_44, %c0_45, %c0_46] : memref<2x1x32xf32, #tpu.memory_space<vmem>>, vector<1x1x32xf32>
    %104 = vector.shape_cast %103 : vector<1x1x32xf32> to vector<1x32xf32>
    %105 = vector.broadcast %104 : vector<1x32xf32> to vector<8x32xf32>
    %106 = arith.addf %102, %105 : vector<8x32xf32>
    %107 = arith.addf %42, %106 : vector<8x32xf32>
    %c0_47 = arith.constant 0 : index
    %c0_48 = arith.constant 0 : index
    %c0_49 = arith.constant 0 : index
    %108 = vector.load %arg14[%c0_47, %c0_48, %c0_49] : memref<2x1x32xf32, #tpu.memory_space<vmem>>, vector<1x1x32xf32>
    %109 = vector.shape_cast %108 : vector<1x1x32xf32> to vector<1x32xf32>
    %c0_50 = arith.constant 0 : index
    %c0_51 = arith.constant 0 : index
    %c0_52 = arith.constant 0 : index
    %110 = vector.load %arg15[%c0_50, %c0_51, %c0_52] : memref<2x1x32xf32, #tpu.memory_space<vmem>>, vector<1x1x32xf32>
    %111 = vector.shape_cast %110 : vector<1x1x32xf32> to vector<1x32xf32>
    %cst_53 = arith.constant dense<0.000000e+00> : vector<8xf32>
    %112 = vector.multi_reduction <add>, %107, %cst_53 [1] : vector<8x32xf32> to vector<8xf32>
    %113 = vector.shape_cast %112 : vector<8xf32> to vector<8x1xf32>
    %cst_54 = arith.constant 3.200000e+01 : f32
    %114 = vector.broadcast %cst_54 : f32 to vector<8x1xf32>
    %115 = arith.divf %113, %114 : vector<8x1xf32>
    %116 = vector.broadcast %115 : vector<8x1xf32> to vector<8x32xf32>
    %117 = arith.subf %107, %116 : vector<8x32xf32>
    %118 = arith.mulf %117, %117 : vector<8x32xf32>
    %cst_55 = arith.constant dense<0.000000e+00> : vector<8xf32>
    %119 = vector.multi_reduction <add>, %118, %cst_55 [1] : vector<8x32xf32> to vector<8xf32>
    %120 = vector.shape_cast %119 : vector<8xf32> to vector<8x1xf32>
    %cst_56 = arith.constant 3.200000e+01 : f32
    %121 = vector.broadcast %cst_56 : f32 to vector<8x1xf32>
    %122 = arith.divf %120, %121 : vector<8x1xf32>
    %123 = vector.broadcast %115 : vector<8x1xf32> to vector<8x32xf32>
    %124 = arith.subf %107, %123 : vector<8x32xf32>
    %cst_57 = arith.constant 9.99999993E-9 : f32
    %125 = vector.broadcast %cst_57 : f32 to vector<8x1xf32>
    %126 = arith.addf %122, %125 : vector<8x1xf32>
    %127 = math.rsqrt %126 : vector<8x1xf32>
    %128 = vector.broadcast %127 : vector<8x1xf32> to vector<8x32xf32>
    %129 = arith.mulf %124, %128 : vector<8x32xf32>
    %130 = vector.broadcast %109 : vector<1x32xf32> to vector<8x32xf32>
    %131 = arith.mulf %129, %130 : vector<8x32xf32>
    %132 = vector.broadcast %111 : vector<1x32xf32> to vector<8x32xf32>
    %133 = arith.addf %131, %132 : vector<8x32xf32>
    %c0_58 = arith.constant 0 : index
    %c0_59 = arith.constant 0 : index
    %c0_60 = arith.constant 0 : index
    %134 = vector.load %arg16[%c0_58, %c0_59, %c0_60] : memref<2x32x32xf32, #tpu.memory_space<vmem>>, vector<1x32x32xf32>
    %135 = vector.shape_cast %134 : vector<1x32x32xf32> to vector<32x32xf32>
    %cst_61 = arith.constant dense<0.000000e+00> : vector<8x32xf32>
    %136 = tpu.matmul %133, %135, %cst_61 {dimension_numbers = #tpu.dot_dimension_numbers<[1], [0], [0], [1], [0, 0, 1, 1], [], []>} : vector<8x32xf32>, vector<32x32xf32>, vector<8x32xf32> -> vector<8x32xf32>
    %c0_62 = arith.constant 0 : index
    %c0_63 = arith.constant 0 : index
    %c0_64 = arith.constant 0 : index
    %137 = vector.load %arg17[%c0_62, %c0_63, %c0_64] : memref<2x1x32xf32, #tpu.memory_space<vmem>>, vector<1x1x32xf32>
    %138 = vector.shape_cast %137 : vector<1x1x32xf32> to vector<1x32xf32>
    %139 = vector.broadcast %138 : vector<1x32xf32> to vector<8x32xf32>
    %140 = arith.addf %136, %139 : vector<8x32xf32>
    %cst_65 = arith.constant 0.000000e+00 : f32
    %141 = vector.broadcast %cst_65 : f32 to vector<8x32xf32>
    %142 = arith.maximumf %140, %141 : vector<8x32xf32>
    %c0_66 = arith.constant 0 : index
    %c0_67 = arith.constant 0 : index
    %c0_68 = arith.constant 0 : index
    %143 = vector.load %arg18[%c0_66, %c0_67, %c0_68] : memref<2x32x32xf32, #tpu.memory_space<vmem>>, vector<1x32x32xf32>
    %144 = vector.shape_cast %143 : vector<1x32x32xf32> to vector<32x32xf32>
    %cst_69 = arith.constant dense<0.000000e+00> : vector<8x32xf32>
    %145 = tpu.matmul %142, %144, %cst_69 {dimension_numbers = #tpu.dot_dimension_numbers<[1], [0], [0], [1], [0, 0, 1, 1], [], []>} : vector<8x32xf32>, vector<32x32xf32>, vector<8x32xf32> -> vector<8x32xf32>
    %c0_70 = arith.constant 0 : index
    %c0_71 = arith.constant 0 : index
    %c0_72 = arith.constant 0 : index
    %146 = vector.load %arg19[%c0_70, %c0_71, %c0_72] : memref<2x1x32xf32, #tpu.memory_space<vmem>>, vector<1x1x32xf32>
    %147 = vector.shape_cast %146 : vector<1x1x32xf32> to vector<1x32xf32>
    %148 = vector.broadcast %147 : vector<1x32xf32> to vector<8x32xf32>
    %149 = arith.addf %145, %148 : vector<8x32xf32>
    %150 = arith.addf %133, %149 : vector<8x32xf32>
    %151 = vector.broadcast %1 : vector<8x1xf32> to vector<8x32xf32>
    %152 = arith.mulf %150, %151 : vector<8x32xf32>
    %c1 = arith.constant 1 : index
    %c0_73 = arith.constant 0 : index
    %c0_74 = arith.constant 0 : index
    %153 = vector.load %arg6[%c1, %c0_73, %c0_74] : memref<2x1x32xf32, #tpu.memory_space<vmem>>, vector<1x1x32xf32>
    %154 = vector.shape_cast %153 : vector<1x1x32xf32> to vector<1x32xf32>
    %c1_75 = arith.constant 1 : index
    %c0_76 = arith.constant 0 : index
    %c0_77 = arith.constant 0 : index
    %155 = vector.load %arg7[%c1_75, %c0_76, %c0_77] : memref<2x1x32xf32, #tpu.memory_space<vmem>>, vector<1x1x32xf32>
    %156 = vector.shape_cast %155 : vector<1x1x32xf32> to vector<1x32xf32>
    %cst_78 = arith.constant dense<0.000000e+00> : vector<8xf32>
    %157 = vector.multi_reduction <add>, %152, %cst_78 [1] : vector<8x32xf32> to vector<8xf32>
    %158 = vector.shape_cast %157 : vector<8xf32> to vector<8x1xf32>
    %cst_79 = arith.constant 3.200000e+01 : f32
    %159 = vector.broadcast %cst_79 : f32 to vector<8x1xf32>
    %160 = arith.divf %158, %159 : vector<8x1xf32>
    %161 = vector.broadcast %160 : vector<8x1xf32> to vector<8x32xf32>
    %162 = arith.subf %152, %161 : vector<8x32xf32>
    %163 = arith.mulf %162, %162 : vector<8x32xf32>
    %cst_80 = arith.constant dense<0.000000e+00> : vector<8xf32>
    %164 = vector.multi_reduction <add>, %163, %cst_80 [1] : vector<8x32xf32> to vector<8xf32>
    %165 = vector.shape_cast %164 : vector<8xf32> to vector<8x1xf32>
    %cst_81 = arith.constant 3.200000e+01 : f32
    %166 = vector.broadcast %cst_81 : f32 to vector<8x1xf32>
    %167 = arith.divf %165, %166 : vector<8x1xf32>
    %168 = vector.broadcast %160 : vector<8x1xf32> to vector<8x32xf32>
    %169 = arith.subf %152, %168 : vector<8x32xf32>
    %cst_82 = arith.constant 9.99999993E-9 : f32
    %170 = vector.broadcast %cst_82 : f32 to vector<8x1xf32>
    %171 = arith.addf %167, %170 : vector<8x1xf32>
    %172 = math.rsqrt %171 : vector<8x1xf32>
    %173 = vector.broadcast %172 : vector<8x1xf32> to vector<8x32xf32>
    %174 = arith.mulf %169, %173 : vector<8x32xf32>
    %175 = vector.broadcast %154 : vector<1x32xf32> to vector<8x32xf32>
    %176 = arith.mulf %174, %175 : vector<8x32xf32>
    %177 = vector.broadcast %156 : vector<1x32xf32> to vector<8x32xf32>
    %178 = arith.addf %176, %177 : vector<8x32xf32>
    %c1_83 = arith.constant 1 : index
    %c0_84 = arith.constant 0 : index
    %c0_85 = arith.constant 0 : index
    %179 = vector.load %arg8[%c1_83, %c0_84, %c0_85] : memref<2x32x32xf32, #tpu.memory_space<vmem>>, vector<1x32x32xf32>
    %180 = vector.shape_cast %179 : vector<1x32x32xf32> to vector<32x32xf32>
    %cst_86 = arith.constant dense<0.000000e+00> : vector<8x32xf32>
    %181 = tpu.matmul %178, %180, %cst_86 {dimension_numbers = #tpu.dot_dimension_numbers<[1], [0], [0], [1], [0, 0, 1, 1], [], []>} : vector<8x32xf32>, vector<32x32xf32>, vector<8x32xf32> -> vector<8x32xf32>
    %c1_87 = arith.constant 1 : index
    %c0_88 = arith.constant 0 : index
    %c0_89 = arith.constant 0 : index
    %182 = vector.load %arg9[%c1_87, %c0_88, %c0_89] : memref<2x1x32xf32, #tpu.memory_space<vmem>>, vector<1x1x32xf32>
    %183 = vector.shape_cast %182 : vector<1x1x32xf32> to vector<1x32xf32>
    %184 = vector.broadcast %183 : vector<1x32xf32> to vector<8x32xf32>
    %185 = arith.addf %181, %184 : vector<8x32xf32>
    %c1_90 = arith.constant 1 : index
    %c0_91 = arith.constant 0 : index
    %c0_92 = arith.constant 0 : index
    %186 = vector.load %arg10[%c1_90, %c0_91, %c0_92] : memref<2x32x64xf32, #tpu.memory_space<vmem>>, vector<1x32x64xf32>
    %187 = vector.shape_cast %186 : vector<1x32x64xf32> to vector<32x64xf32>
    %cst_93 = arith.constant dense<0.000000e+00> : vector<8x64xf32>
    %188 = tpu.matmul %152, %187, %cst_93 {dimension_numbers = #tpu.dot_dimension_numbers<[1], [0], [0], [1], [0, 0, 1, 1], [], []>} : vector<8x32xf32>, vector<32x64xf32>, vector<8x64xf32> -> vector<8x64xf32>
    %c1_94 = arith.constant 1 : index
    %c0_95 = arith.constant 0 : index
    %c0_96 = arith.constant 0 : index
    %189 = vector.load %arg11[%c1_94, %c0_95, %c0_96] : memref<2x1x64xf32, #tpu.memory_space<vmem>>, vector<1x1x64xf32>
    %190 = vector.shape_cast %189 : vector<1x1x64xf32> to vector<1x64xf32>
    %191 = vector.broadcast %190 : vector<1x64xf32> to vector<8x64xf32>
    %192 = arith.addf %188, %191 : vector<8x64xf32>
    %193 = vector.extract_strided_slice %185 {offsets = [0, 0], sizes = [8, 16], strides = [1, 1]} : vector<8x32xf32> to vector<8x16xf32>
    %194 = vector.shape_cast %193 : vector<8x16xf32> to vector<1x8x16xf32>
    %195 = vector.extract_strided_slice %192 {offsets = [0, 0], sizes = [8, 16], strides = [1, 1]} : vector<8x64xf32> to vector<8x16xf32>
    %196 = vector.shape_cast %195 : vector<8x16xf32> to vector<1x8x16xf32>
    %197 = vector.extract_strided_slice %192 {offsets = [0, 32], sizes = [8, 16], strides = [1, 1]} : vector<8x64xf32> to vector<8x16xf32>
    %198 = vector.shape_cast %197 : vector<8x16xf32> to vector<1x8x16xf32>
    "tpu.trace_start"() <{level = 10 : i32, message = "bqd,bkd->bqk"}> : () -> ()
    %cst_97 = arith.constant dense<0.000000e+00> : vector<1x8x8xf32>
    %199 = tpu.matmul %194, %196, %cst_97 {dimension_numbers = #tpu.dot_dimension_numbers<[2], [2], [1], [1], [0, 0, 0, 1, 1, 1], [0], [0]>} : vector<1x8x16xf32>, vector<1x8x16xf32>, vector<1x8x8xf32> -> vector<1x8x8xf32>
    %cst_98 = arith.constant -1.000000e+30 : f32
    "tpu.trace_stop"() : () -> ()
    %200 = vector.broadcast %cst_98 : f32 to vector<1x8x8xf32>
    %201 = arith.select %16, %199, %200 : vector<1x8x8xi1>, vector<1x8x8xf32>
    %cst_99 = arith.constant dense<0xFF800000> : vector<1x8xf32>
    %202 = vector.multi_reduction <maximumf>, %201, %cst_99 [2] : vector<1x8x8xf32> to vector<1x8xf32>
    %203 = vector.shape_cast %202 : vector<1x8xf32> to vector<1x8x1xf32>
    %204 = vector.broadcast %203 : vector<1x8x1xf32> to vector<1x8x8xf32>
    %205 = arith.subf %201, %204 : vector<1x8x8xf32>
    %206 = math.exp %205 : vector<1x8x8xf32>
    %cst_100 = arith.constant dense<0.000000e+00> : vector<1x8xf32>
    %207 = vector.multi_reduction <add>, %206, %cst_100 [2] : vector<1x8x8xf32> to vector<1x8xf32>
    %208 = vector.shape_cast %207 : vector<1x8xf32> to vector<1x8x1xf32>
    %209 = tpu.reciprocal %208 {approx = true} : vector<1x8x1xf32> -> vector<1x8x1xf32>
    %210 = vector.broadcast %209 : vector<1x8x1xf32> to vector<1x8x8xf32>
    %211 = arith.mulf %206, %210 : vector<1x8x8xf32>
    "tpu.trace_start"() <{level = 10 : i32, message = "bqk,bkd->bqd"}> : () -> ()
    %cst_101 = arith.constant dense<0.000000e+00> : vector<1x8x16xf32>
    %212 = tpu.matmul %211, %198, %cst_101 {dimension_numbers = #tpu.dot_dimension_numbers<[2], [1], [1], [2], [0, 0, 0, 1, 1, 2], [0], [0]>} : vector<1x8x8xf32>, vector<1x8x16xf32>, vector<1x8x16xf32> -> vector<1x8x16xf32>
    "tpu.trace_stop"() : () -> ()
    %213 = vector.shape_cast %212 : vector<1x8x16xf32> to vector<8x16xf32>
    %214 = vector.extract_strided_slice %185 {offsets = [0, 16], sizes = [8, 16], strides = [1, 1]} : vector<8x32xf32> to vector<8x16xf32>
    %215 = vector.shape_cast %214 : vector<8x16xf32> to vector<1x8x16xf32>
    %216 = vector.extract_strided_slice %192 {offsets = [0, 16], sizes = [8, 16], strides = [1, 1]} : vector<8x64xf32> to vector<8x16xf32>
    %217 = vector.shape_cast %216 : vector<8x16xf32> to vector<1x8x16xf32>
    %218 = vector.extract_strided_slice %192 {offsets = [0, 48], sizes = [8, 16], strides = [1, 1]} : vector<8x64xf32> to vector<8x16xf32>
    %219 = vector.shape_cast %218 : vector<8x16xf32> to vector<1x8x16xf32>
    "tpu.trace_start"() <{level = 10 : i32, message = "bqd,bkd->bqk"}> : () -> ()
    %cst_102 = arith.constant dense<0.000000e+00> : vector<1x8x8xf32>
    %220 = tpu.matmul %215, %217, %cst_102 {dimension_numbers = #tpu.dot_dimension_numbers<[2], [2], [1], [1], [0, 0, 0, 1, 1, 1], [0], [0]>} : vector<1x8x16xf32>, vector<1x8x16xf32>, vector<1x8x8xf32> -> vector<1x8x8xf32>
    %cst_103 = arith.constant -1.000000e+30 : f32
    "tpu.trace_stop"() : () -> ()
    %221 = vector.broadcast %cst_103 : f32 to vector<1x8x8xf32>
    %222 = arith.select %16, %220, %221 : vector<1x8x8xi1>, vector<1x8x8xf32>
    %cst_104 = arith.constant dense<0xFF800000> : vector<1x8xf32>
    %223 = vector.multi_reduction <maximumf>, %222, %cst_104 [2] : vector<1x8x8xf32> to vector<1x8xf32>
    %224 = vector.shape_cast %223 : vector<1x8xf32> to vector<1x8x1xf32>
    %225 = vector.broadcast %224 : vector<1x8x1xf32> to vector<1x8x8xf32>
    %226 = arith.subf %222, %225 : vector<1x8x8xf32>
    %227 = math.exp %226 : vector<1x8x8xf32>
    %cst_105 = arith.constant dense<0.000000e+00> : vector<1x8xf32>
    %228 = vector.multi_reduction <add>, %227, %cst_105 [2] : vector<1x8x8xf32> to vector<1x8xf32>
    %229 = vector.shape_cast %228 : vector<1x8xf32> to vector<1x8x1xf32>
    %230 = tpu.reciprocal %229 {approx = true} : vector<1x8x1xf32> -> vector<1x8x1xf32>
    %231 = vector.broadcast %230 : vector<1x8x1xf32> to vector<1x8x8xf32>
    %232 = arith.mulf %227, %231 : vector<1x8x8xf32>
    "tpu.trace_start"() <{level = 10 : i32, message = "bqk,bkd->bqd"}> : () -> ()
    %cst_106 = arith.constant dense<0.000000e+00> : vector<1x8x16xf32>
    %233 = tpu.matmul %232, %219, %cst_106 {dimension_numbers = #tpu.dot_dimension_numbers<[2], [1], [1], [2], [0, 0, 0, 1, 1, 2], [0], [0]>} : vector<1x8x8xf32>, vector<1x8x16xf32>, vector<1x8x16xf32> -> vector<1x8x16xf32>
    "tpu.trace_stop"() : () -> ()
    %234 = vector.shape_cast %233 : vector<1x8x16xf32> to vector<8x16xf32>
    %235 = tpu.concatenate %213, %234 in 1 : vector<8x16xf32>, vector<8x16xf32> -> vector<8x32xf32>
    %c1_107 = arith.constant 1 : index
    %c0_108 = arith.constant 0 : index
    %c0_109 = arith.constant 0 : index
    %236 = vector.load %arg12[%c1_107, %c0_108, %c0_109] : memref<2x32x32xf32, #tpu.memory_space<vmem>>, vector<1x32x32xf32>
    %237 = vector.shape_cast %236 : vector<1x32x32xf32> to vector<32x32xf32>
    %cst_110 = arith.constant dense<0.000000e+00> : vector<8x32xf32>
    %238 = tpu.matmul %235, %237, %cst_110 {dimension_numbers = #tpu.dot_dimension_numbers<[1], [0], [0], [1], [0, 0, 1, 1], [], []>} : vector<8x32xf32>, vector<32x32xf32>, vector<8x32xf32> -> vector<8x32xf32>
    %c1_111 = arith.constant 1 : index
    %c0_112 = arith.constant 0 : index
    %c0_113 = arith.constant 0 : index
    %239 = vector.load %arg13[%c1_111, %c0_112, %c0_113] : memref<2x1x32xf32, #tpu.memory_space<vmem>>, vector<1x1x32xf32>
    %240 = vector.shape_cast %239 : vector<1x1x32xf32> to vector<1x32xf32>
    %241 = vector.broadcast %240 : vector<1x32xf32> to vector<8x32xf32>
    %242 = arith.addf %238, %241 : vector<8x32xf32>
    %243 = arith.addf %178, %242 : vector<8x32xf32>
    %c1_114 = arith.constant 1 : index
    %c0_115 = arith.constant 0 : index
    %c0_116 = arith.constant 0 : index
    %244 = vector.load %arg14[%c1_114, %c0_115, %c0_116] : memref<2x1x32xf32, #tpu.memory_space<vmem>>, vector<1x1x32xf32>
    %245 = vector.shape_cast %244 : vector<1x1x32xf32> to vector<1x32xf32>
    %c1_117 = arith.constant 1 : index
    %c0_118 = arith.constant 0 : index
    %c0_119 = arith.constant 0 : index
    %246 = vector.load %arg15[%c1_117, %c0_118, %c0_119] : memref<2x1x32xf32, #tpu.memory_space<vmem>>, vector<1x1x32xf32>
    %247 = vector.shape_cast %246 : vector<1x1x32xf32> to vector<1x32xf32>
    %cst_120 = arith.constant dense<0.000000e+00> : vector<8xf32>
    %248 = vector.multi_reduction <add>, %243, %cst_120 [1] : vector<8x32xf32> to vector<8xf32>
    %249 = vector.shape_cast %248 : vector<8xf32> to vector<8x1xf32>
    %cst_121 = arith.constant 3.200000e+01 : f32
    %250 = vector.broadcast %cst_121 : f32 to vector<8x1xf32>
    %251 = arith.divf %249, %250 : vector<8x1xf32>
    %252 = vector.broadcast %251 : vector<8x1xf32> to vector<8x32xf32>
    %253 = arith.subf %243, %252 : vector<8x32xf32>
    %254 = arith.mulf %253, %253 : vector<8x32xf32>
    %cst_122 = arith.constant dense<0.000000e+00> : vector<8xf32>
    %255 = vector.multi_reduction <add>, %254, %cst_122 [1] : vector<8x32xf32> to vector<8xf32>
    %256 = vector.shape_cast %255 : vector<8xf32> to vector<8x1xf32>
    %cst_123 = arith.constant 3.200000e+01 : f32
    %257 = vector.broadcast %cst_123 : f32 to vector<8x1xf32>
    %258 = arith.divf %256, %257 : vector<8x1xf32>
    %259 = vector.broadcast %251 : vector<8x1xf32> to vector<8x32xf32>
    %260 = arith.subf %243, %259 : vector<8x32xf32>
    %cst_124 = arith.constant 9.99999993E-9 : f32
    %261 = vector.broadcast %cst_124 : f32 to vector<8x1xf32>
    %262 = arith.addf %258, %261 : vector<8x1xf32>
    %263 = math.rsqrt %262 : vector<8x1xf32>
    %264 = vector.broadcast %263 : vector<8x1xf32> to vector<8x32xf32>
    %265 = arith.mulf %260, %264 : vector<8x32xf32>
    %266 = vector.broadcast %245 : vector<1x32xf32> to vector<8x32xf32>
    %267 = arith.mulf %265, %266 : vector<8x32xf32>
    %268 = vector.broadcast %247 : vector<1x32xf32> to vector<8x32xf32>
    %269 = arith.addf %267, %268 : vector<8x32xf32>
    %c1_125 = arith.constant 1 : index
    %c0_126 = arith.constant 0 : index
    %c0_127 = arith.constant 0 : index
    %270 = vector.load %arg16[%c1_125, %c0_126, %c0_127] : memref<2x32x32xf32, #tpu.memory_space<vmem>>, vector<1x32x32xf32>
    %271 = vector.shape_cast %270 : vector<1x32x32xf32> to vector<32x32xf32>
    %cst_128 = arith.constant dense<0.000000e+00> : vector<8x32xf32>
    %272 = tpu.matmul %269, %271, %cst_128 {dimension_numbers = #tpu.dot_dimension_numbers<[1], [0], [0], [1], [0, 0, 1, 1], [], []>} : vector<8x32xf32>, vector<32x32xf32>, vector<8x32xf32> -> vector<8x32xf32>
    %c1_129 = arith.constant 1 : index
    %c0_130 = arith.constant 0 : index
    %c0_131 = arith.constant 0 : index
    %273 = vector.load %arg17[%c1_129, %c0_130, %c0_131] : memref<2x1x32xf32, #tpu.memory_space<vmem>>, vector<1x1x32xf32>
    %274 = vector.shape_cast %273 : vector<1x1x32xf32> to vector<1x32xf32>
    %275 = vector.broadcast %274 : vector<1x32xf32> to vector<8x32xf32>
    %276 = arith.addf %272, %275 : vector<8x32xf32>
    %cst_132 = arith.constant 0.000000e+00 : f32
    %277 = vector.broadcast %cst_132 : f32 to vector<8x32xf32>
    %278 = arith.maximumf %276, %277 : vector<8x32xf32>
    %c1_133 = arith.constant 1 : index
    %c0_134 = arith.constant 0 : index
    %c0_135 = arith.constant 0 : index
    %279 = vector.load %arg18[%c1_133, %c0_134, %c0_135] : memref<2x32x32xf32, #tpu.memory_space<vmem>>, vector<1x32x32xf32>
    %280 = vector.shape_cast %279 : vector<1x32x32xf32> to vector<32x32xf32>
    %cst_136 = arith.constant dense<0.000000e+00> : vector<8x32xf32>
    %281 = tpu.matmul %278, %280, %cst_136 {dimension_numbers = #tpu.dot_dimension_numbers<[1], [0], [0], [1], [0, 0, 1, 1], [], []>} : vector<8x32xf32>, vector<32x32xf32>, vector<8x32xf32> -> vector<8x32xf32>
    %c1_137 = arith.constant 1 : index
    %c0_138 = arith.constant 0 : index
    %c0_139 = arith.constant 0 : index
    %282 = vector.load %arg19[%c1_137, %c0_138, %c0_139] : memref<2x1x32xf32, #tpu.memory_space<vmem>>, vector<1x1x32xf32>
    %283 = vector.shape_cast %282 : vector<1x1x32xf32> to vector<1x32xf32>
    %284 = vector.broadcast %283 : vector<1x32xf32> to vector<8x32xf32>
    %285 = arith.addf %281, %284 : vector<8x32xf32>
    %286 = arith.addf %269, %285 : vector<8x32xf32>
    %287 = vector.broadcast %1 : vector<8x1xf32> to vector<8x32xf32>
    %288 = arith.mulf %286, %287 : vector<8x32xf32>
    %c0_140 = arith.constant 0 : index
    %c0_141 = arith.constant 0 : index
    %289 = vector.load %arg20[%c0_140, %c0_141] : memref<1x32xf32, #tpu.memory_space<vmem>>, vector<1x32xf32>
    %c0_142 = arith.constant 0 : index
    %c0_143 = arith.constant 0 : index
    %290 = vector.load %arg21[%c0_142, %c0_143] : memref<1x32xf32, #tpu.memory_space<vmem>>, vector<1x32xf32>
    %cst_144 = arith.constant dense<0.000000e+00> : vector<8xf32>
    %291 = vector.multi_reduction <add>, %288, %cst_144 [1] : vector<8x32xf32> to vector<8xf32>
    %292 = vector.shape_cast %291 : vector<8xf32> to vector<8x1xf32>
    %cst_145 = arith.constant 3.200000e+01 : f32
    %293 = vector.broadcast %cst_145 : f32 to vector<8x1xf32>
    %294 = arith.divf %292, %293 : vector<8x1xf32>
    %295 = vector.broadcast %294 : vector<8x1xf32> to vector<8x32xf32>
    %296 = arith.subf %288, %295 : vector<8x32xf32>
    %297 = arith.mulf %296, %296 : vector<8x32xf32>
    %cst_146 = arith.constant dense<0.000000e+00> : vector<8xf32>
    %298 = vector.multi_reduction <add>, %297, %cst_146 [1] : vector<8x32xf32> to vector<8xf32>
    %299 = vector.shape_cast %298 : vector<8xf32> to vector<8x1xf32>
    %cst_147 = arith.constant 3.200000e+01 : f32
    %300 = vector.broadcast %cst_147 : f32 to vector<8x1xf32>
    %301 = arith.divf %299, %300 : vector<8x1xf32>
    %302 = vector.broadcast %294 : vector<8x1xf32> to vector<8x32xf32>
    %303 = arith.subf %288, %302 : vector<8x32xf32>
    %cst_148 = arith.constant 9.99999993E-9 : f32
    %304 = vector.broadcast %cst_148 : f32 to vector<8x1xf32>
    %305 = arith.addf %301, %304 : vector<8x1xf32>
    %306 = math.rsqrt %305 : vector<8x1xf32>
    %307 = vector.broadcast %306 : vector<8x1xf32> to vector<8x32xf32>
    %308 = arith.mulf %303, %307 : vector<8x32xf32>
    %309 = vector.broadcast %289 : vector<1x32xf32> to vector<8x32xf32>
    %310 = arith.mulf %308, %309 : vector<8x32xf32>
    %311 = vector.broadcast %290 : vector<1x32xf32> to vector<8x32xf32>
    %312 = arith.addf %310, %311 : vector<8x32xf32>
    %c0_149 = arith.constant 0 : index
    %c0_150 = arith.constant 0 : index
    %313 = vector.load %arg2[%c0_149, %c0_150] : memref<8x32xf32, #tpu.memory_space<vmem>>, vector<8x32xf32>
    %314 = arith.mulf %312, %313 : vector<8x32xf32>
    %cst_151 = arith.constant dense<0.000000e+00> : vector<8xf32>
    %315 = vector.multi_reduction <add>, %314, %cst_151 [1] : vector<8x32xf32> to vector<8xf32>
    %316 = vector.shape_cast %315 : vector<8xf32> to vector<8x1xf32>
    %c0_152 = arith.constant 0 : index
    %c0_153 = arith.constant 0 : index
    %317 = vector.load %arg3[%c0_152, %c0_153] : memref<8x32xf32, #tpu.memory_space<vmem>>, vector<8x32xf32>
    %318 = arith.mulf %312, %317 : vector<8x32xf32>
    %cst_154 = arith.constant dense<0.000000e+00> : vector<8xf32>
    %319 = vector.multi_reduction <add>, %318, %cst_154 [1] : vector<8x32xf32> to vector<8xf32>
    %320 = vector.shape_cast %319 : vector<8xf32> to vector<8x1xf32>
    %cst_155 = arith.constant 0.000000e+00 : f32
    %321 = vector.broadcast %cst_155 : f32 to vector<8x1xf32>
    %322 = arith.subf %321, %316 : vector<8x1xf32>
    %cst_156 = arith.constant 0.000000e+00 : f32
    %323 = vector.broadcast %cst_156 : f32 to vector<8x1xf32>
    %324 = arith.maximumf %322, %323 : vector<8x1xf32>
    %325 = math.absf %322 : vector<8x1xf32>
    %cst_157 = arith.constant 0.000000e+00 : f32
    %326 = vector.broadcast %cst_157 : f32 to vector<8x1xf32>
    %327 = arith.subf %326, %325 : vector<8x1xf32>
    %328 = math.exp %327 : vector<8x1xf32>
    %cst_158 = arith.constant 1.000000e+00 : f32
    %329 = vector.broadcast %cst_158 : f32 to vector<8x1xf32>
    %330 = arith.addf %329, %328 : vector<8x1xf32>
    %331 = math.log %330 : vector<8x1xf32>
    %332 = arith.addf %324, %331 : vector<8x1xf32>
    %333 = arith.mulf %2, %332 : vector<8x1xf32>
    %334 = vector.shape_cast %333 : vector<8x1xf32> to vector<1x8x1xf32>
    %cst_159 = arith.constant dense<0.000000e+00> : vector<1xf32>
    %335 = vector.multi_reduction <add>, %334, %cst_159 [1, 2] : vector<1x8x1xf32> to vector<1xf32>
    %336 = vector.shape_cast %335 : vector<1xf32> to vector<1x1x1xf32>
    %337 = vector.extract %336[0, 0, 0] : f32 from vector<1x1x1xf32>
    %cst_160 = arith.constant 0.000000e+00 : f32
    %338 = vector.broadcast %cst_160 : f32 to vector<8x1xf32>
    %339 = arith.maximumf %320, %338 : vector<8x1xf32>
    %340 = math.absf %320 : vector<8x1xf32>
    %cst_161 = arith.constant 0.000000e+00 : f32
    %341 = vector.broadcast %cst_161 : f32 to vector<8x1xf32>
    %342 = arith.subf %341, %340 : vector<8x1xf32>
    %343 = math.exp %342 : vector<8x1xf32>
    %cst_162 = arith.constant 1.000000e+00 : f32
    %344 = vector.broadcast %cst_162 : f32 to vector<8x1xf32>
    %345 = arith.addf %344, %343 : vector<8x1xf32>
    %346 = math.log %345 : vector<8x1xf32>
    %347 = arith.addf %339, %346 : vector<8x1xf32>
    %348 = arith.mulf %2, %347 : vector<8x1xf32>
    %349 = vector.shape_cast %348 : vector<8x1xf32> to vector<1x8x1xf32>
    %cst_163 = arith.constant dense<0.000000e+00> : vector<1xf32>
    %350 = vector.multi_reduction <add>, %349, %cst_163 [1, 2] : vector<1x8x1xf32> to vector<1xf32>
    %351 = vector.shape_cast %350 : vector<1xf32> to vector<1x1x1xf32>
    %352 = vector.extract %351[0, 0, 0] : f32 from vector<1x1x1xf32>
    %353 = vector.shape_cast %2 : vector<8x1xf32> to vector<1x8x1xf32>
    %cst_164 = arith.constant dense<0.000000e+00> : vector<1xf32>
    %354 = vector.multi_reduction <add>, %353, %cst_164 [1, 2] : vector<1x8x1xf32> to vector<1xf32>
    %355 = vector.shape_cast %354 : vector<1xf32> to vector<1x1x1xf32>
    %356 = vector.extract %355[0, 0, 0] : f32 from vector<1x1x1xf32>
    %357 = tpu.iota {dimensions = array<i32: 0>} : vector<8x128xi32>
    %358 = tpu.iota {dimensions = array<i32: 1>} : vector<8x128xi32>
    %c0_i32 = arith.constant 0 : i32
    %359 = vector.broadcast %c0_i32 : i32 to vector<8x128xi32>
    %360 = arith.cmpi eq, %357, %359 : vector<8x128xi32>
    %c0_i32_165 = arith.constant 0 : i32
    %361 = vector.broadcast %c0_i32_165 : i32 to vector<8x128xi32>
    %362 = arith.cmpi eq, %358, %361 : vector<8x128xi32>
    %363 = arith.andi %360, %362 : vector<8x128xi1>
    %c0_i32_166 = arith.constant 0 : i32
    %364 = vector.broadcast %c0_i32_166 : i32 to vector<8x128xi32>
    %365 = arith.cmpi eq, %357, %364 : vector<8x128xi32>
    %c1_i32 = arith.constant 1 : i32
    %366 = vector.broadcast %c1_i32 : i32 to vector<8x128xi32>
    %367 = arith.cmpi eq, %358, %366 : vector<8x128xi32>
    %368 = arith.andi %365, %367 : vector<8x128xi1>
    %c0_i32_167 = arith.constant 0 : i32
    %369 = vector.broadcast %c0_i32_167 : i32 to vector<8x128xi32>
    %370 = arith.cmpi eq, %357, %369 : vector<8x128xi32>
    %c2_i32 = arith.constant 2 : i32
    %371 = vector.broadcast %c2_i32 : i32 to vector<8x128xi32>
    %372 = arith.cmpi eq, %358, %371 : vector<8x128xi32>
    %373 = arith.andi %370, %372 : vector<8x128xi1>
    %cst_168 = arith.constant 0.000000e+00 : f32
    %374 = vector.broadcast %356 : f32 to vector<8x128xf32>
    %375 = vector.broadcast %cst_168 : f32 to vector<8x128xf32>
    %376 = arith.select %373, %374, %375 : vector<8x128xi1>, vector<8x128xf32>
    %377 = vector.broadcast %352 : f32 to vector<8x128xf32>
    %378 = arith.select %368, %377, %376 : vector<8x128xi1>, vector<8x128xf32>
    %379 = vector.broadcast %337 : f32 to vector<8x128xf32>
    %380 = arith.select %363, %379, %378 : vector<8x128xi1>, vector<8x128xf32>
    %c0_169 = arith.constant 0 : index
    %c0_170 = arith.constant 0 : index
    %c0_171 = arith.constant 0 : index
    %381 = vector.load %arg22[%c0_169, %c0_170, %c0_171] : memref<1x8x128xf32, #tpu.memory_space<vmem>>, vector<1x8x128xf32>
    %382 = vector.shape_cast %381 : vector<1x8x128xf32> to vector<8x128xf32>
    %383 = vector.shape_cast %380 : vector<8x128xf32> to vector<1x8x128xf32>
    tpu.vector_store %arg22[%c0_169, %c0_170, %c0_171], %383 {strides = array<i32>} : memref<1x8x128xf32, #tpu.memory_space<vmem>>, vector<1x8x128xf32>,
    return
  }
  func.func @transform_0(%arg0: i32) -> (i32, i32) {
    %c0_i32 = arith.constant 0 : i32
    %c0_i32_0 = arith.constant 0 : i32
    return %arg0, %c0_i32 : i32, i32
  }
  func.func @transform_1(%arg0: i32) -> (i32, i32) {
    %c0_i32 = arith.constant 0 : i32
    %c0_i32_0 = arith.constant 0 : i32
    return %arg0, %c0_i32 : i32, i32
  }
  func.func @transform_2(%arg0: i32) -> (i32, i32) {
    %c0_i32 = arith.constant 0 : i32
    %c0_i32_0 = arith.constant 0 : i32
    return %arg0, %c0_i32 : i32, i32
  }
  func.func @transform_3(%arg0: i32) -> (i32, i32) {
    %c0_i32 = arith.constant 0 : i32
    %c0_i32_0 = arith.constant 0 : i32
    return %arg0, %c0_i32 : i32, i32
  }
  func.func @transform_4(%arg0: i32) -> (i32, i32) {
    %c0_i32 = arith.constant 0 : i32
    %c0_i32_0 = arith.constant 0 : i32
    %c0_i32_1 = arith.constant 0 : i32
    return %c0_i32, %c0_i32_0 : i32, i32
  }
  func.func @transform_5(%arg0: i32) -> (i32, i32, i32) {
    %c0_i32 = arith.constant 0 : i32
    %c0_i32_0 = arith.constant 0 : i32
    %c0_i32_1 = arith.constant 0 : i32
    %c0_i32_2 = arith.constant 0 : i32
    return %c0_i32, %c0_i32_0, %c0_i32_1 : i32, i32, i32
  }
  func.func @transform_6(%arg0: i32) -> (i32, i32, i32) {
    %c0_i32 = arith.constant 0 : i32
    %c0_i32_0 = arith.constant 0 : i32
    %c0_i32_1 = arith.constant 0 : i32
    %c0_i32_2 = arith.constant 0 : i32
    return %c0_i32, %c0_i32_0, %c0_i32_1 : i32, i32, i32
  }
  func.func @transform_7(%arg0: i32) -> (i32, i32, i32) {
    %c0_i32 = arith.constant 0 : i32
    %c0_i32_0 = arith.constant 0 : i32
    %c0_i32_1 = arith.constant 0 : i32
    %c0_i32_2 = arith.constant 0 : i32
    return %c0_i32, %c0_i32_0, %c0_i32_1 : i32, i32, i32
  }
  func.func @transform_8(%arg0: i32) -> (i32, i32, i32) {
    %c0_i32 = arith.constant 0 : i32
    %c0_i32_0 = arith.constant 0 : i32
    %c0_i32_1 = arith.constant 0 : i32
    %c0_i32_2 = arith.constant 0 : i32
    return %c0_i32, %c0_i32_0, %c0_i32_1 : i32, i32, i32
  }
  func.func @transform_9(%arg0: i32) -> (i32, i32, i32) {
    %c0_i32 = arith.constant 0 : i32
    %c0_i32_0 = arith.constant 0 : i32
    %c0_i32_1 = arith.constant 0 : i32
    %c0_i32_2 = arith.constant 0 : i32
    return %c0_i32, %c0_i32_0, %c0_i32_1 : i32, i32, i32
  }
  func.func @transform_10(%arg0: i32) -> (i32, i32, i32) {
    %c0_i32 = arith.constant 0 : i32
    %c0_i32_0 = arith.constant 0 : i32
    %c0_i32_1 = arith.constant 0 : i32
    %c0_i32_2 = arith.constant 0 : i32
    return %c0_i32, %c0_i32_0, %c0_i32_1 : i32, i32, i32
  }
  func.func @transform_11(%arg0: i32) -> (i32, i32, i32) {
    %c0_i32 = arith.constant 0 : i32
    %c0_i32_0 = arith.constant 0 : i32
    %c0_i32_1 = arith.constant 0 : i32
    %c0_i32_2 = arith.constant 0 : i32
    return %c0_i32, %c0_i32_0, %c0_i32_1 : i32, i32, i32
  }
  func.func @transform_12(%arg0: i32) -> (i32, i32, i32) {
    %c0_i32 = arith.constant 0 : i32
    %c0_i32_0 = arith.constant 0 : i32
    %c0_i32_1 = arith.constant 0 : i32
    %c0_i32_2 = arith.constant 0 : i32
    return %c0_i32, %c0_i32_0, %c0_i32_1 : i32, i32, i32
  }
  func.func @transform_13(%arg0: i32) -> (i32, i32, i32) {
    %c0_i32 = arith.constant 0 : i32
    %c0_i32_0 = arith.constant 0 : i32
    %c0_i32_1 = arith.constant 0 : i32
    %c0_i32_2 = arith.constant 0 : i32
    return %c0_i32, %c0_i32_0, %c0_i32_1 : i32, i32, i32
  }
  func.func @transform_14(%arg0: i32) -> (i32, i32, i32) {
    %c0_i32 = arith.constant 0 : i32
    %c0_i32_0 = arith.constant 0 : i32
    %c0_i32_1 = arith.constant 0 : i32
    %c0_i32_2 = arith.constant 0 : i32
    return %c0_i32, %c0_i32_0, %c0_i32_1 : i32, i32, i32
  }
  func.func @transform_15(%arg0: i32) -> (i32, i32, i32) {
    %c0_i32 = arith.constant 0 : i32
    %c0_i32_0 = arith.constant 0 : i32
    %c0_i32_1 = arith.constant 0 : i32
    %c0_i32_2 = arith.constant 0 : i32
    return %c0_i32, %c0_i32_0, %c0_i32_1 : i32, i32, i32
  }
  func.func @transform_16(%arg0: i32) -> (i32, i32, i32) {
    %c0_i32 = arith.constant 0 : i32
    %c0_i32_0 = arith.constant 0 : i32
    %c0_i32_1 = arith.constant 0 : i32
    %c0_i32_2 = arith.constant 0 : i32
    return %c0_i32, %c0_i32_0, %c0_i32_1 : i32, i32, i32
  }
  func.func @transform_17(%arg0: i32) -> (i32, i32, i32) {
    %c0_i32 = arith.constant 0 : i32
    %c0_i32_0 = arith.constant 0 : i32
    %c0_i32_1 = arith.constant 0 : i32
    %c0_i32_2 = arith.constant 0 : i32
    return %c0_i32, %c0_i32_0, %c0_i32_1 : i32, i32, i32
  }
  func.func @transform_18(%arg0: i32) -> (i32, i32, i32) {
    %c0_i32 = arith.constant 0 : i32
    %c0_i32_0 = arith.constant 0 : i32
    %c0_i32_1 = arith.constant 0 : i32
    %c0_i32_2 = arith.constant 0 : i32
    return %c0_i32, %c0_i32_0, %c0_i32_1 : i32, i32, i32
  }
  func.func @transform_19(%arg0: i32) -> (i32, i32) {
    %c0_i32 = arith.constant 0 : i32
    %c0_i32_0 = arith.constant 0 : i32
    %c0_i32_1 = arith.constant 0 : i32
    return %c0_i32, %c0_i32_0 : i32, i32
  }
  func.func @transform_20(%arg0: i32) -> (i32, i32) {
    %c0_i32 = arith.constant 0 : i32
    %c0_i32_0 = arith.constant 0 : i32
    %c0_i32_1 = arith.constant 0 : i32
    return %c0_i32, %c0_i32_0 : i32, i32
  }
  func.func @transform_21(%arg0: i32) -> (i32, i32, i32) {
    %c0_i32 = arith.constant 0 : i32
    %c0_i32_0 = arith.constant 0 : i32
    %c0_i32_1 = arith.constant 0 : i32
    return %arg0, %c0_i32, %c0_i32_0 : i32, i32, i32
  }
}

</mosaic_0001>

<llo_original>
// kernel: tpu_custom_call.1
$region0: #{tpu_custom_call.1}
  #allocation0 [shape = 'u32[]', space=smem, size = 0x4, offset = 0x4, fixed_abs, tag = 'smem constant byte address 0x4 - core index']
  #allocation1 [shape = 'u32[144,128]{1,0:T(1,128)}', space=vmem, size = 0x12000, scoped, tag = 'internal scratch']
  %s0 = inlined_call_operand.vmem [shape: f32[16,32], index: 0, kind: input, shape index: {}]
  %s1 = inlined_call_operand.hbm [shape: f32[16,32], index: 1, kind: input, shape index: {}]
  %s2 = inlined_call_operand.hbm [shape: f32[16,32], index: 2, kind: input, shape index: {}]
  %s3 = inlined_call_operand.vmem [shape: f32[16,2], index: 3, kind: input, shape index: {}]
  %s4 = inlined_call_operand.vmem [shape: f32[8,32], index: 4, kind: input, shape index: {}]
  %s5 = inlined_call_operand.vmem [shape: f32[2,1,32], index: 5, kind: input, shape index: {}]
  %s6 = inlined_call_operand.vmem [shape: f32[2,1,32], index: 6, kind: input, shape index: {}]
  %s7 = inlined_call_operand.hbm [shape: f32[2,32,32], index: 7, kind: input, shape index: {}]
  %s8 = inlined_call_operand.vmem [shape: f32[2,1,32], index: 8, kind: input, shape index: {}]
  %s9 = inlined_call_operand.hbm [shape: f32[2,32,64], index: 9, kind: input, shape index: {}]
  %s10 = inlined_call_operand.vmem [shape: f32[2,1,64], index: 10, kind: input, shape index: {}]
  %s11 = inlined_call_operand.hbm [shape: f32[2,32,32], index: 11, kind: input, shape index: {}]
  %s12 = inlined_call_operand.vmem [shape: f32[2,1,32], index: 12, kind: input, shape index: {}]
  %s13 = inlined_call_operand.vmem [shape: f32[2,1,32], index: 13, kind: input, shape index: {}]
  %s14 = inlined_call_operand.vmem [shape: f32[2,1,32], index: 14, kind: input, shape index: {}]
  %s15 = inlined_call_operand.hbm [shape: f32[2,32,32], index: 15, kind: input, shape index: {}]
  %s16 = inlined_call_operand.vmem [shape: f32[2,1,32], index: 16, kind: input, shape index: {}]
  %s17 = inlined_call_operand.hbm [shape: f32[2,32,32], index: 17, kind: input, shape index: {}]
  %s18 = inlined_call_operand.vmem [shape: f32[2,1,32], index: 18, kind: input, shape index: {}]
  %s19 = inlined_call_operand.vmem [shape: f32[1,32], index: 19, kind: input, shape index: {}]
  %s20 = inlined_call_operand.vmem [shape: f32[1,32], index: 20, kind: input, shape index: {}]
  %s21 = inlined_call_operand.hbm [shape: f32[2,8,128], index: 21, kind: output, shape index: {}]
  %s22 = sld [smem:[#allocation0]]
  $region145: #{tpu_custom_call.1} parent=0
    _
  %s24 = ssub.s32 1, %s22
  %s25 = scalar_select 0, %s24, %s22
  $region1: #{tpu_custom_call.1} parent=0
    #allocation2 [shape = 'u8[8192]{0}', space=vmem, size = 0x2000, scoped, tag = 'input window, operand 1']
    #allocation3 [shape = 's32[2]{0}', space=sflag, size = 0x8, scoped, tag = 'scoped memory for tpu_custom_call.1']
    #allocation4 [shape = 's32[2]{0}', space=sflag, size = 0x8, scoped, tag = 'scoped memory for tpu_custom_call.1']
    #allocation5 [shape = 'u8[8192]{0}', space=vmem, size = 0x2000, scoped, tag = 'input window, operand 2']
    #allocation6 [shape = 's32[2]{0}', space=sflag, size = 0x8, scoped, tag = 'scoped memory for tpu_custom_call.1']
    #allocation7 [shape = 'u8[32768]{0}', space=vmem, size = 0x8000, scoped, tag = 'input window, operand 7, single buffered']
    #allocation8 [shape = 'u8[32768]{0}', space=vmem, size = 0x8000, scoped, tag = 'input window, operand 9, single buffered']
    #allocation9 [shape = 's32[1]{0}', space=sflag, size = 0x4, scoped, tag = 'scoped memory for tpu_custom_call.1']
    #allocation10 [shape = 'u8[32768]{0}', space=vmem, size = 0x8000, scoped, tag = 'input window, operand 11, single buffered']
    #allocation11 [shape = 'u8[32768]{0}', space=vmem, size = 0x8000, scoped, tag = 'input window, operand 15, single buffered']
    #allocation12 [shape = 's32[1]{0}', space=sflag, size = 0x4, scoped, tag = 'scoped memory for tpu_custom_call.1']
    #allocation13 [shape = 'u8[32768]{0}', space=vmem, size = 0x8000, scoped, tag = 'input window, operand 17, single buffered']
    #allocation14 [shape = 'u8[8192]{0}', space=vmem, size = 0x2000, scoped, tag = 'output window, operand 0']
    %26 = vsyncpa [#allocation3], 0
    %s27 = scalar_lea.sflag [#allocation3], 1
    %28 = vsyncpa %s27, 0
    %29 = vsyncpa [#allocation6], 0
    %s30 = scalar_lea.sflag [#allocation6], 1
    %31 = vsyncpa %s30, 0
    %32 = vsyncpa [#allocation9], 0
    %33 = vsyncpa [#allocation12], 0
    %34 = vsyncpa [#allocation4], 0
    %s35 = scalar_lea.sflag [#allocation4], 1
    %36 = vsyncpa %s35, 0
    loop: start=0, step=1, limit=4
    $region2: #{tpu_custom_call.1} parent=1 // loop_pre_header
      _
    $region3: #{tpu_custom_call.1} parent=1 // loop_header
      %s38 = sphi 0, %s42
      %p39 = scmp.ge.s32.totalorder %s38, 4
      %s48 = sphi 0, %s50
      %s51 = sphi 0, %s48
      %s52 = sphi 0, %s51
      %s68 = sphi 0, %s52
      %s74 = sphi 0, %s76
      %s77 = sphi 0, %s74
      %s78 = sphi 0, %s77
      %s94 = sphi 0, %s78
      %s100 = sphi 0, %s102
      %s103 = sphi 0, %s100
      %s104 = sphi 0, %s103
      %s120 = sphi 0, %s104
      %s126 = sphi 0, %s128
      %s129 = sphi 0, %s126
      %s130 = sphi 0, %s129
      %s146 = sphi 0, %s130
      %s150 = sphi 0, %s150
      %s152 = sphi 0, %s150
      %s153 = sphi 0, %s152
      %s167 = sphi 0, %s153
      %s171 = sphi 0, %s171
      %s173 = sphi 0, %s171
      %s174 = sphi 0, %s173
      %s188 = sphi 0, %s174
      %s192 = sphi 0, %s192
      %s194 = sphi 0, %s192
      %s195 = sphi 0, %s194
      %s209 = sphi 0, %s195
      %s213 = sphi 0, %s213
      %s215 = sphi 0, %s213
      %s216 = sphi 0, %s215
      %s230 = sphi 0, %s216
      %s234 = sphi 0, %s234
      %s236 = sphi 0, %s234
      %s237 = sphi 0, %s236
      %s251 = sphi 0, %s237
      %s255 = sphi 0, %s255
      %s257 = sphi 0, %s255
      %s258 = sphi 0, %s257
      %s272 = sphi 0, %s258
      %s276 = sphi 0, %s276
      %s278 = sphi 0, %s276
      %s279 = sphi 0, %s278
      %s293 = sphi 0, %s279
      %s297 = sphi 0, %s297
      %s299 = sphi 0, %s297
      %s300 = sphi 0, %s299
      %s314 = sphi 0, %s300
      %s318 = sphi 0, %s318
      %s320 = sphi 0, %s318
      %s321 = sphi 0, %s320
      %s335 = sphi 0, %s321
      %s339 = sphi 0, %s339
      %s341 = sphi 0, %s339
      %s342 = sphi 0, %s341
      %s356 = sphi 0, %s342
      %s360 = sphi 0, %s360
      %s362 = sphi 0, %s360
      %s363 = sphi 0, %s362
      %s377 = sphi 0, %s363
      %s381 = sphi 0, %s381
      %s383 = sphi 0, %s381
      %s384 = sphi 0, %s383
      %s398 = sphi 0, %s384
      %s402 = sphi 0, %s402
      %s404 = sphi 0, %s402
      %s405 = sphi 0, %s404
      %s419 = sphi 0, %s405
      %s423 = sphi 0, %s423
      %s425 = sphi 0, %s423
      %s426 = sphi 0, %s425
      %s440 = sphi 0, %s426
      %s444 = sphi 0, %s444
      %s446 = sphi 0, %s444
      %s447 = sphi 0, %s446
      %s461 = sphi 0, %s447
      %s465 = sphi 0, %s465
      %s467 = sphi 0, %s465
      %s468 = sphi 0, %s467
      %s482 = sphi 0, %s468
      %s486 = sphi 0, %s486
      %s488 = sphi 0, %s486
      %s489 = sphi 0, %s488
      %s503 = sphi 0, %s489
      %s509 = sphi 0, %s511
      %s512 = sphi 0, %s509
      %s513 = sphi 0, %s512
      %s529 = sphi 0, %s513
    $region4: #{tpu_custom_call.1} parent=1 // loop_header_branch
      %41 = sbr.rel (%p39) target = $region8
    $region5: #{tpu_custom_call.1} parent=1 // loop_body
      %s43 = ssub.s32 %s38, 1
      %s44 = ssub.s32 %s38, 2
      %s45 = sadd.s32 %s38, 1
      %s46 = ssub.s32 %s38, %s45
      %p47 = scmp.eq.s32.totalorder %s46, 0
      %s49 = sadd.s32 %s48, 1
      %s50 = scalar_select %p47, %s48, %s49
      %p53 = pneg %p47
      %p54 = scmp.eq.s32.totalorder %s38, 1
      %p55 = por %p53, %p54
      %p56 = scmp.ne.s32.totalorder %s48, %s51
      %p57 = scmp.eq.s32.totalorder %s38, 0
      %p58 = por %p56, %p57
      %p59 = scmp.ne.s32.totalorder %s48, %s51
      %p60 = scmp.eq.s32.totalorder %s43, 1
      %p61 = por %p59, %p60
      %p62 = scmp.ne.s32.totalorder %s51, %s52
      %p63 = scmp.eq.s32.totalorder %s43, 0
      %p64 = por %p62, %p63
      %p65 = scmp.ne.s32.totalorder %s51, %s52
      %p66 = scmp.eq.s32.totalorder %s44, 1
      %p67 = por %p65, %p66
      %p69 = scmp.ne.s32.totalorder %s52, %s68
      %p70 = scmp.eq.s32.totalorder %s44, 0
      %p71 = por %p69, %p70
      %s72 = ssub.s32 %s38, %s45
      %p73 = scmp.eq.s32.totalorder %s72, 0
      %s75 = sadd.s32 %s74, 1
      %s76 = scalar_select %p73, %s74, %s75
      %p79 = pneg %p73
      %p80 = scmp.eq.s32.totalorder %s38, 1
      %p81 = por %p79, %p80
      %p82 = scmp.ne.s32.totalorder %s74, %s77
      %p83 = scmp.eq.s32.totalorder %s38, 0
      %p84 = por %p82, %p83
      %p85 = scmp.ne.s32.totalorder %s74, %s77
      %p86 = scmp.eq.s32.totalorder %s43, 1
      %p87 = por %p85, %p86
      %p88 = scmp.ne.s32.totalorder %s77, %s78
      %p89 = scmp.eq.s32.totalorder %s43, 0
      %p90 = por %p88, %p89
      %p91 = scmp.ne.s32.totalorder %s77, %s78
      %p92 = scmp.eq.s32.totalorder %s44, 1
      %p93 = por %p91, %p92
      %p95 = scmp.ne.s32.totalorder %s78, %s94
      %p96 = scmp.eq.s32.totalorder %s44, 0
      %p97 = por %p95, %p96
      %s98 = ssub.s32 %s38, %s45
      %p99 = scmp.eq.s32.totalorder %s98, 0
      %s101 = sadd.s32 %s100, 1
      %s102 = scalar_select %p99, %s100, %s101
      %p105 = pneg %p99
      %p106 = scmp.eq.s32.totalorder %s38, 1
      %p107 = por %p105, %p106
      %p108 = scmp.ne.s32.totalorder %s100, %s103
      %p109 = scmp.eq.s32.totalorder %s38, 0
      %p110 = por %p108, %p109
      %p111 = scmp.ne.s32.totalorder %s100, %s103
      %p112 = scmp.eq.s32.totalorder %s43, 1
      %p113 = por %p111, %p112
      %p114 = scmp.ne.s32.totalorder %s103, %s104
      %p115 = scmp.eq.s32.totalorder %s43, 0
      %p116 = por %p114, %p115
      %p117 = scmp.ne.s32.totalorder %s103, %s104
      %p118 = scmp.eq.s32.totalorder %s44, 1
      %p119 = por %p117, %p118
      %p121 = scmp.ne.s32.totalorder %s104, %s120
      %p122 = scmp.eq.s32.totalorder %s44, 0
      %p123 = por %p121, %p122
      %s124 = ssub.s32 %s38, %s45
      %p125 = scmp.eq.s32.totalorder %s124, 0
      %s127 = sadd.s32 %s126, 1
      %s128 = scalar_select %p125, %s126, %s127
      %p131 = pneg %p125
      %p132 = scmp.eq.s32.totalorder %s38, 1
      %p133 = por %p131, %p132
      %p134 = scmp.ne.s32.totalorder %s126, %s129
      %p135 = scmp.eq.s32.totalorder %s38, 0
      %p136 = por %p134, %p135
      %p137 = scmp.ne.s32.totalorder %s126, %s129
      %p138 = scmp.eq.s32.totalorder %s43, 1
      %p139 = por %p137, %p138
      %p140 = scmp.ne.s32.totalorder %s129, %s130
      %p141 = scmp.eq.s32.totalorder %s43, 0
      %p142 = por %p140, %p141
      %p143 = scmp.ne.s32.totalorder %s129, %s130
      %p144 = scmp.eq.s32.totalorder %s44, 1
      %p145 = por %p143, %p144
      %p147 = scmp.ne.s32.totalorder %s130, %s146
      %p148 = scmp.eq.s32.totalorder %s44, 0
      %p149 = por %p147, %p148
      %s151 = sadd.s32 %s150, 1
      %p154 = scmp.eq.s32.totalorder %s38, 1
      %p155 = scmp.ne.s32.totalorder %s150, %s152
      %p156 = scmp.eq.s32.totalorder %s38, 0
      %p157 = por %p155, %p156
      %p158 = scmp.ne.s32.totalorder %s150, %s152
      %p159 = scmp.eq.s32.totalorder %s43, 1
      %p160 = por %p158, %p159
      %p161 = scmp.ne.s32.totalorder %s152, %s153
      %p162 = scmp.eq.s32.totalorder %s43, 0
      %p163 = por %p161, %p162
      %p164 = scmp.ne.s32.totalorder %s152, %s153
      %p165 = scmp.eq.s32.totalorder %s44, 1
      %p166 = por %p164, %p165
      %p168 = scmp.ne.s32.totalorder %s153, %s167
      %p169 = scmp.eq.s32.totalorder %s44, 0
      %p170 = por %p168, %p169
      %s172 = sadd.s32 %s171, 1
      %p175 = scmp.eq.s32.totalorder %s38, 1
      %p176 = scmp.ne.s32.totalorder %s171, %s173
      %p177 = scmp.eq.s32.totalorder %s38, 0
      %p178 = por %p176, %p177
      %p179 = scmp.ne.s32.totalorder %s171, %s173
      %p180 = scmp.eq.s32.totalorder %s43, 1
      %p181 = por %p179, %p180
      %p182 = scmp.ne.s32.totalorder %s173, %s174
      %p183 = scmp.eq.s32.totalorder %s43, 0
      %p184 = por %p182, %p183
      %p185 = scmp.ne.s32.totalorder %s173, %s174
      %p186 = scmp.eq.s32.totalorder %s44, 1
      %p187 = por %p185, %p186
      %p189 = scmp.ne.s32.totalorder %s174, %s188
      %p190 = scmp.eq.s32.totalorder %s44, 0
      %p191 = por %p189, %p190
      %s193 = sadd.s32 %s192, 1
      %p196 = scmp.eq.s32.totalorder %s38, 1
      %p197 = scmp.ne.s32.totalorder %s192, %s194
      %p198 = scmp.eq.s32.totalorder %s38, 0
      %p199 = por %p197, %p198
      %p200 = scmp.ne.s32.totalorder %s192, %s194
      %p201 = scmp.eq.s32.totalorder %s43, 1
      %p202 = por %p200, %p201
      %p203 = scmp.ne.s32.totalorder %s194, %s195
      %p204 = scmp.eq.s32.totalorder %s43, 0
      %p205 = por %p203, %p204
      %p206 = scmp.ne.s32.totalorder %s194, %s195
      %p207 = scmp.eq.s32.totalorder %s44, 1
      %p208 = por %p206, %p207
      %p210 = scmp.ne.s32.totalorder %s195, %s209
      %p211 = scmp.eq.s32.totalorder %s44, 0
      %p212 = por %p210, %p211
      %s214 = sadd.s32 %s213, 1
      %p217 = scmp.eq.s32.totalorder %s38, 1
      %p218 = scmp.ne.s32.totalorder %s213, %s215
      %p219 = scmp.eq.s32.totalorder %s38, 0
      %p220 = por %p218, %p219
      %p221 = scmp.ne.s32.totalorder %s213, %s215
      %p222 = scmp.eq.s32.totalorder %s43, 1
      %p223 = por %p221, %p222
      %p224 = scmp.ne.s32.totalorder %s215, %s216
      %p225 = scmp.eq.s32.totalorder %s43, 0
      %p226 = por %p224, %p225
      %p227 = scmp.ne.s32.totalorder %s215, %s216
      %p228 = scmp.eq.s32.totalorder %s44, 1
      %p229 = por %p227, %p228
      %p231 = scmp.ne.s32.totalorder %s216, %s230
      %p232 = scmp.eq.s32.totalorder %s44, 0
      %p233 = por %p231, %p232
      %s235 = sadd.s32 %s234, 1
      %p238 = scmp.eq.s32.totalorder %s38, 1
      %p239 = scmp.ne.s32.totalorder %s234, %s236
      %p240 = scmp.eq.s32.totalorder %s38, 0
      %p241 = por %p239, %p240
      %p242 = scmp.ne.s32.totalorder %s234, %s236
      %p243 = scmp.eq.s32.totalorder %s43, 1
      %p244 = por %p242, %p243
      %p245 = scmp.ne.s32.totalorder %s236, %s237
      %p246 = scmp.eq.s32.totalorder %s43, 0
      %p247 = por %p245, %p246
      %p248 = scmp.ne.s32.totalorder %s236, %s237
      %p249 = scmp.eq.s32.totalorder %s44, 1
      %p250 = por %p248, %p249
      %p252 = scmp.ne.s32.totalorder %s237, %s251
      %p253 = scmp.eq.s32.totalorder %s44, 0
      %p254 = por %p252, %p253
      %s256 = sadd.s32 %s255, 1
      %p259 = scmp.eq.s32.totalorder %s38, 1
      %p260 = scmp.ne.s32.totalorder %s255, %s257
      %p261 = scmp.eq.s32.totalorder %s38, 0
      %p262 = por %p260, %p261
      %p263 = scmp.ne.s32.totalorder %s255, %s257
      %p264 = scmp.eq.s32.totalorder %s43, 1
      %p265 = por %p263, %p264
      %p266 = scmp.ne.s32.totalorder %s257, %s258
      %p267 = scmp.eq.s32.totalorder %s43, 0
      %p268 = por %p266, %p267
      %p269 = scmp.ne.s32.totalorder %s257, %s258
      %p270 = scmp.eq.s32.totalorder %s44, 1
      %p271 = por %p269, %p270
      %p273 = scmp.ne.s32.totalorder %s258, %s272
      %p274 = scmp.eq.s32.totalorder %s44, 0
      %p275 = por %p273, %p274
      %s277 = sadd.s32 %s276, 1
      %p280 = scmp.eq.s32.totalorder %s38, 1
      %p281 = scmp.ne.s32.totalorder %s276, %s278
      %p282 = scmp.eq.s32.totalorder %s38, 0
      %p283 = por %p281, %p282
      %p284 = scmp.ne.s32.totalorder %s276, %s278
      %p285 = scmp.eq.s32.totalorder %s43, 1
      %p286 = por %p284, %p285
      %p287 = scmp.ne.s32.totalorder %s278, %s279
      %p288 = scmp.eq.s32.totalorder %s43, 0
      %p289 = por %p287, %p288
      %p290 = scmp.ne.s32.totalorder %s278, %s279
      %p291 = scmp.eq.s32.totalorder %s44, 1
      %p292 = por %p290, %p291
      %p294 = scmp.ne.s32.totalorder %s279, %s293
      %p295 = scmp.eq.s32.totalorder %s44, 0
      %p296 = por %p294, %p295
      %s298 = sadd.s32 %s297, 1
      %p301 = scmp.eq.s32.totalorder %s38, 1
      %p302 = scmp.ne.s32.totalorder %s297, %s299
      %p303 = scmp.eq.s32.totalorder %s38, 0
      %p304 = por %p302, %p303
      %p305 = scmp.ne.s32.totalorder %s297, %s299
      %p306 = scmp.eq.s32.totalorder %s43, 1
      %p307 = por %p305, %p306
      %p308 = scmp.ne.s32.totalorder %s299, %s300
      %p309 = scmp.eq.s32.totalorder %s43, 0
      %p310 = por %p308, %p309
      %p311 = scmp.ne.s32.totalorder %s299, %s300
      %p312 = scmp.eq.s32.totalorder %s44, 1
      %p313 = por %p311, %p312
      %p315 = scmp.ne.s32.totalorder %s300, %s314
      %p316 = scmp.eq.s32.totalorder %s44, 0
      %p317 = por %p315, %p316
      %s319 = sadd.s32 %s318, 1
      %p322 = scmp.eq.s32.totalorder %s38, 1
      %p323 = scmp.ne.s32.totalorder %s318, %s320
      %p324 = scmp.eq.s32.totalorder %s38, 0
      %p325 = por %p323, %p324
      %p326 = scmp.ne.s32.totalorder %s318, %s320
      %p327 = scmp.eq.s32.totalorder %s43, 1
      %p328 = por %p326, %p327
      %p329 = scmp.ne.s32.totalorder %s320, %s321
      %p330 = scmp.eq.s32.totalorder %s43, 0
      %p331 = por %p329, %p330
      %p332 = scmp.ne.s32.totalorder %s320, %s321
      %p333 = scmp.eq.s32.totalorder %s44, 1
      %p334 = por %p332, %p333
      %p336 = scmp.ne.s32.totalorder %s321, %s335
      %p337 = scmp.eq.s32.totalorder %s44, 0
      %p338 = por %p336, %p337
      %s340 = sadd.s32 %s339, 1
      %p343 = scmp.eq.s32.totalorder %s38, 1
      %p344 = scmp.ne.s32.totalorder %s339, %s341
      %p345 = scmp.eq.s32.totalorder %s38, 0
      %p346 = por %p344, %p345
      %p347 = scmp.ne.s32.totalorder %s339, %s341
      %p348 = scmp.eq.s32.totalorder %s43, 1
      %p349 = por %p347, %p348
      %p350 = scmp.ne.s32.totalorder %s341, %s342
      %p351 = scmp.eq.s32.totalorder %s43, 0
      %p352 = por %p350, %p351
      %p353 = scmp.ne.s32.totalorder %s341, %s342
      %p354 = scmp.eq.s32.totalorder %s44, 1
      %p355 = por %p353, %p354
      %p357 = scmp.ne.s32.totalorder %s342, %s356
      %p358 = scmp.eq.s32.totalorder %s44, 0
      %p359 = por %p357, %p358
      %s361 = sadd.s32 %s360, 1
      %p364 = scmp.eq.s32.totalorder %s38, 1
      %p365 = scmp.ne.s32.totalorder %s360, %s362
      %p366 = scmp.eq.s32.totalorder %s38, 0
      %p367 = por %p365, %p366
      %p368 = scmp.ne.s32.totalorder %s360, %s362
      %p369 = scmp.eq.s32.totalorder %s43, 1
      %p370 = por %p368, %p369
      %p371 = scmp.ne.s32.totalorder %s362, %s363
      %p372 = scmp.eq.s32.totalorder %s43, 0
      %p373 = por %p371, %p372
      %p374 = scmp.ne.s32.totalorder %s362, %s363
      %p375 = scmp.eq.s32.totalorder %s44, 1
      %p376 = por %p374, %p375
      %p378 = scmp.ne.s32.totalorder %s363, %s377
      %p379 = scmp.eq.s32.totalorder %s44, 0
      %p380 = por %p378, %p379
      %s382 = sadd.s32 %s381, 1
      %p385 = scmp.eq.s32.totalorder %s38, 1
      %p386 = scmp.ne.s32.totalorder %s381, %s383
      %p387 = scmp.eq.s32.totalorder %s38, 0
      %p388 = por %p386, %p387
      %p389 = scmp.ne.s32.totalorder %s381, %s383
      %p390 = scmp.eq.s32.totalorder %s43, 1
      %p391 = por %p389, %p390
      %p392 = scmp.ne.s32.totalorder %s383, %s384
      %p393 = scmp.eq.s32.totalorder %s43, 0
      %p394 = por %p392, %p393
      %p395 = scmp.ne.s32.totalorder %s383, %s384
      %p396 = scmp.eq.s32.totalorder %s44, 1
      %p397 = por %p395, %p396
      %p399 = scmp.ne.s32.totalorder %s384, %s398
      %p400 = scmp.eq.s32.totalorder %s44, 0
      %p401 = por %p399, %p400
      %s403 = sadd.s32 %s402, 1
      %p406 = scmp.eq.s32.totalorder %s38, 1
      %p407 = scmp.ne.s32.totalorder %s402, %s404
      %p408 = scmp.eq.s32.totalorder %s38, 0
      %p409 = por %p407, %p408
      %p410 = scmp.ne.s32.totalorder %s402, %s404
      %p411 = scmp.eq.s32.totalorder %s43, 1
      %p412 = por %p410, %p411
      %p413 = scmp.ne.s32.totalorder %s404, %s405
      %p414 = scmp.eq.s32.totalorder %s43, 0
      %p415 = por %p413, %p414
      %p416 = scmp.ne.s32.totalorder %s404, %s405
      %p417 = scmp.eq.s32.totalorder %s44, 1
      %p418 = por %p416, %p417
      %p420 = scmp.ne.s32.totalorder %s405, %s419
      %p421 = scmp.eq.s32.totalorder %s44, 0
      %p422 = por %p420, %p421
      %s424 = sadd.s32 %s423, 1
      %p427 = scmp.eq.s32.totalorder %s38, 1
      %p428 = scmp.ne.s32.totalorder %s423, %s425
      %p429 = scmp.eq.s32.totalorder %s38, 0
      %p430 = por %p428, %p429
      %p431 = scmp.ne.s32.totalorder %s423, %s425
      %p432 = scmp.eq.s32.totalorder %s43, 1
      %p433 = por %p431, %p432
      %p434 = scmp.ne.s32.totalorder %s425, %s426
      %p435 = scmp.eq.s32.totalorder %s43, 0
      %p436 = por %p434, %p435
      %p437 = scmp.ne.s32.totalorder %s425, %s426
      %p438 = scmp.eq.s32.totalorder %s44, 1
      %p439 = por %p437, %p438
      %p441 = scmp.ne.s32.totalorder %s426, %s440
      %p442 = scmp.eq.s32.totalorder %s44, 0
      %p443 = por %p441, %p442
      %s445 = sadd.s32 %s444, 1
      %p448 = scmp.eq.s32.totalorder %s38, 1
      %p449 = scmp.ne.s32.totalorder %s444, %s446
      %p450 = scmp.eq.s32.totalorder %s38, 0
      %p451 = por %p449, %p450
      %p452 = scmp.ne.s32.totalorder %s444, %s446
      %p453 = scmp.eq.s32.totalorder %s43, 1
      %p454 = por %p452, %p453
      %p455 = scmp.ne.s32.totalorder %s446, %s447
      %p456 = scmp.eq.s32.totalorder %s43, 0
      %p457 = por %p455, %p456
      %p458 = scmp.ne.s32.totalorder %s446, %s447
      %p459 = scmp.eq.s32.totalorder %s44, 1
      %p460 = por %p458, %p459
      %p462 = scmp.ne.s32.totalorder %s447, %s461
      %p463 = scmp.eq.s32.totalorder %s44, 0
      %p464 = por %p462, %p463
      %s466 = sadd.s32 %s465, 1
      %p469 = scmp.eq.s32.totalorder %s38, 1
      %p470 = scmp.ne.s32.totalorder %s465, %s467
      %p471 = scmp.eq.s32.totalorder %s38, 0
      %p472 = por %p470, %p471
      %p473 = scmp.ne.s32.totalorder %s465, %s467
      %p474 = scmp.eq.s32.totalorder %s43, 1
      %p475 = por %p473, %p474
      %p476 = scmp.ne.s32.totalorder %s467, %s468
      %p477 = scmp.eq.s32.totalorder %s43, 0
      %p478 = por %p476, %p477
      %p479 = scmp.ne.s32.totalorder %s467, %s468
      %p480 = scmp.eq.s32.totalorder %s44, 1
      %p481 = por %p479, %p480
      %p483 = scmp.ne.s32.totalorder %s468, %s482
      %p484 = scmp.eq.s32.totalorder %s44, 0
      %p485 = por %p483, %p484
      %s487 = sadd.s32 %s486, 1
      %p490 = scmp.eq.s32.totalorder %s38, 1
      %p491 = scmp.ne.s32.totalorder %s486, %s488
      %p492 = scmp.eq.s32.totalorder %s38, 0
      %p493 = por %p491, %p492
      %p494 = scmp.ne.s32.totalorder %s486, %s488
      %p495 = scmp.eq.s32.totalorder %s43, 1
      %p496 = por %p494, %p495
      %p497 = scmp.ne.s32.totalorder %s488, %s489
      %p498 = scmp.eq.s32.totalorder %s43, 0
      %p499 = por %p497, %p498
      %p500 = scmp.ne.s32.totalorder %s488, %s489
      %p501 = scmp.eq.s32.totalorder %s44, 1
      %p502 = por %p500, %p501
      %p504 = scmp.ne.s32.totalorder %s489, %s503
      %p505 = scmp.eq.s32.totalorder %s44, 0
      %p506 = por %p504, %p505
      %s507 = ssub.s32 %s38, %s45
      %p508 = scmp.eq.s32.totalorder %s507, 0
      %s510 = sadd.s32 %s509, 1
      %s511 = scalar_select %p508, %s509, %s510
      %p514 = pneg %p508
      %p515 = scmp.eq.s32.totalorder %s38, 1
      %p516 = por %p514, %p515
      %p517 = scmp.ne.s32.totalorder %s509, %s512
      %p518 = scmp.eq.s32.totalorder %s38, 0
      %p519 = por %p517, %p518
      %p520 = scmp.ne.s32.totalorder %s509, %s512
      %p521 = scmp.eq.s32.totalorder %s43, 1
      %p522 = por %p520, %p521
      %p523 = scmp.ne.s32.totalorder %s512, %s513
      %p524 = scmp.eq.s32.totalorder %s43, 0
      %p525 = por %p523, %p524
      %p526 = scmp.ne.s32.totalorder %s512, %s513
      %p527 = scmp.eq.s32.totalorder %s44, 1
      %p528 = por %p526, %p527
      %p530 = scmp.ne.s32.totalorder %s513, %s529
      %p531 = scmp.eq.s32.totalorder %s44, 0
      %p532 = por %p530, %p531
      %p533 = scmp.le.s32.totalorder 1, %s38
      %p534 = scmp.lt.s32.totalorder %s38, 3
      %p535 = pnand %p533, %p534
      %p536 = pneg %p535
      // Predicated region
      $region9: #{tpu_custom_call.1} parent=5 // pred_check
        _
      $region10: #{tpu_custom_call.1} parent=5 // pred_check_branch
        %538 = sbr.rel (%p535) target = $region12
      $region11: #{tpu_custom_call.1} parent=5 // pred_region
        %s539 = ssub.s32 %s38, 1
        // Predicated region
        $region13: #{tpu_custom_call.1} parent=11 // pred_check
          %p540 = pneg %p163
        $region14: #{tpu_custom_call.1} parent=11 // pred_check_branch
          %542 = sbr.rel (%p540) target = $region16
        $region15: #{tpu_custom_call.1} parent=11 // pred_region
          _
        $region16: #{tpu_custom_call.1} parent=11 // pred_fallthru
          _
        // Predicated region
        $region17: #{tpu_custom_call.1} parent=11 // pred_check
          %p543 = pneg %p184
        $region18: #{tpu_custom_call.1} parent=11 // pred_check_branch
          %545 = sbr.rel (%p543) target = $region20
        $region19: #{tpu_custom_call.1} parent=11 // pred_region
          _
        $region20: #{tpu_custom_call.1} parent=11 // pred_fallthru
          _
        // Predicated region
        $region21: #{tpu_custom_call.1} parent=11 // pred_check
          %p546 = pneg %p205
        $region22: #{tpu_custom_call.1} parent=11 // pred_check_branch
          %548 = sbr.rel (%p546) target = $region24
        $region23: #{tpu_custom_call.1} parent=11 // pred_region
          _
        $region24: #{tpu_custom_call.1} parent=11 // pred_fallthru
          _
        // Predicated region
        $region25: #{tpu_custom_call.1} parent=11 // pred_check
          %p549 = pneg %p226
        $region26: #{tpu_custom_call.1} parent=11 // pred_check_branch
          %551 = sbr.rel (%p549) target = $region28
        $region27: #{tpu_custom_call.1} parent=11 // pred_region
          %s553 = ssub.s32 1024, 1024
          %554 = vsyncadd [#allocation6], %s553
          %s555 = sshll.u32 [#allocation7], 4
          %s556 = int_to_ptr.vmem [resolvable:$true] %s555
          %561 = dma.hbm_to_vmem [thread:$0]  %s7, 1024, %s556, [#allocation6], 128, 128, 8
        $region28: #{tpu_custom_call.1} parent=11 // pred_fallthru
          _
        // Predicated region
        $region29: #{tpu_custom_call.1} parent=11 // pred_check
          %p562 = pneg %p247
        $region30: #{tpu_custom_call.1} parent=11 // pred_check_branch
          %564 = sbr.rel (%p562) target = $region32
        $region31: #{tpu_custom_call.1} parent=11 // pred_region
          _
        $region32: #{tpu_custom_call.1} parent=11 // pred_fallthru
          _
        // Predicated region
        $region33: #{tpu_custom_call.1} parent=11 // pred_check
          %p565 = pneg %p268
        $region34: #{tpu_custom_call.1} parent=11 // pred_check_branch
          %567 = sbr.rel (%p565) target = $region36
        $region35: #{tpu_custom_call.1} parent=11 // pred_region
          %s569 = ssub.s32 1024, 1024
          %570 = vsyncadd [#allocation9], %s569
          %s571 = sshll.u32 [#allocation8], 4
          %s572 = int_to_ptr.vmem [resolvable:$true] %s571
          %577 = dma.hbm_to_vmem [thread:$0]  %s9, 1024, %s572, [#allocation9], 128, 128, 8
        $region36: #{tpu_custom_call.1} parent=11 // pred_fallthru
          _
        // Predicated region
        $region37: #{tpu_custom_call.1} parent=11 // pred_check
          %p578 = pneg %p289
        $region38: #{tpu_custom_call.1} parent=11 // pred_check_branch
          %580 = sbr.rel (%p578) target = $region40
        $region39: #{tpu_custom_call.1} parent=11 // pred_region
          _
        $region40: #{tpu_custom_call.1} parent=11 // pred_fallthru
          _
        // Predicated region
        $region41: #{tpu_custom_call.1} parent=11 // pred_check
          %p581 = pneg %p310
        $region42: #{tpu_custom_call.1} parent=11 // pred_check_branch
          %583 = sbr.rel (%p581) target = $region44
        $region43: #{tpu_custom_call.1} parent=11 // pred_region
          %s585 = ssub.s32 1024, 1024
          %586 = vsyncadd [#allocation9], %s585
          %s587 = sshll.u32 [#allocation10], 4
          %s588 = int_to_ptr.vmem [resolvable:$true] %s587
          %593 = dma.hbm_to_vmem [thread:$0]  %s11, 1024, %s588, [#allocation9], 128, 128, 8
        $region44: #{tpu_custom_call.1} parent=11 // pred_fallthru
          _
        // Predicated region
        $region45: #{tpu_custom_call.1} parent=11 // pred_check
          %p594 = pneg %p331
        $region46: #{tpu_custom_call.1} parent=11 // pred_check_branch
          %596 = sbr.rel (%p594) target = $region48
        $region47: #{tpu_custom_call.1} parent=11 // pred_region
          _
        $region48: #{tpu_custom_call.1} parent=11 // pred_fallthru
          _
        // Predicated region
        $region49: #{tpu_custom_call.1} parent=11 // pred_check
          %p597 = pneg %p352
        $region50: #{tpu_custom_call.1} parent=11 // pred_check_branch
          %599 = sbr.rel (%p597) target = $region52
        $region51: #{tpu_custom_call.1} parent=11 // pred_region
          _
        $region52: #{tpu_custom_call.1} parent=11 // pred_fallthru
          _
        // Predicated region
        $region53: #{tpu_custom_call.1} parent=11 // pred_check
          %p600 = pneg %p373
        $region54: #{tpu_custom_call.1} parent=11 // pred_check_branch
          %602 = sbr.rel (%p600) target = $region56
        $region55: #{tpu_custom_call.1} parent=11 // pred_region
          _
        $region56: #{tpu_custom_call.1} parent=11 // pred_fallthru
          _
        // Predicated region
        $region57: #{tpu_custom_call.1} parent=11 // pred_check
          %p603 = pneg %p394
        $region58: #{tpu_custom_call.1} parent=11 // pred_check_branch
          %605 = sbr.rel (%p603) target = $region60
        $region59: #{tpu_custom_call.1} parent=11 // pred_region
          %s607 = ssub.s32 1024, 1024
          %608 = vsyncadd [#allocation12], %s607
          %s609 = sshll.u32 [#allocation11], 4
          %s610 = int_to_ptr.vmem [resolvable:$true] %s609
          %615 = dma.hbm_to_vmem [thread:$0]  %s15, 1024, %s610, [#allocation12], 128, 128, 8
        $region60: #{tpu_custom_call.1} parent=11 // pred_fallthru
          _
        // Predicated region
        $region61: #{tpu_custom_call.1} parent=11 // pred_check
          %p616 = pneg %p415
        $region62: #{tpu_custom_call.1} parent=11 // pred_check_branch
          %618 = sbr.rel (%p616) target = $region64
        $region63: #{tpu_custom_call.1} parent=11 // pred_region
          _
        $region64: #{tpu_custom_call.1} parent=11 // pred_fallthru
          _
        // Predicated region
        $region65: #{tpu_custom_call.1} parent=11 // pred_check
          %p619 = pneg %p436
        $region66: #{tpu_custom_call.1} parent=11 // pred_check_branch
          %621 = sbr.rel (%p619) target = $region68
        $region67: #{tpu_custom_call.1} parent=11 // pred_region
          %s623 = ssub.s32 1024, 1024
          %624 = vsyncadd [#allocation12], %s623
          %s625 = sshll.u32 [#allocation13], 4
          %s626 = int_to_ptr.vmem [resolvable:$true] %s625
          %631 = dma.hbm_to_vmem [thread:$0]  %s17, 1024, %s626, [#allocation12], 128, 128, 8
        $region68: #{tpu_custom_call.1} parent=11 // pred_fallthru
          _
        // Predicated region
        $region69: #{tpu_custom_call.1} parent=11 // pred_check
          %p632 = pneg %p457
        $region70: #{tpu_custom_call.1} parent=11 // pred_check_branch
          %634 = sbr.rel (%p632) target = $region72
        $region71: #{tpu_custom_call.1} parent=11 // pred_region
          _
        $region72: #{tpu_custom_call.1} parent=11 // pred_fallthru
          _
        // Predicated region
        $region73: #{tpu_custom_call.1} parent=11 // pred_check
          %p635 = pneg %p478
        $region74: #{tpu_custom_call.1} parent=11 // pred_check_branch
          %637 = sbr.rel (%p635) target = $region76
        $region75: #{tpu_custom_call.1} parent=11 // pred_region
          _
        $region76: #{tpu_custom_call.1} parent=11 // pred_fallthru
          _
        // Predicated region
        $region77: #{tpu_custom_call.1} parent=11 // pred_check
          %p638 = pneg %p499
        $region78: #{tpu_custom_call.1} parent=11 // pred_check_branch
          %640 = sbr.rel (%p638) target = $region80
        $region79: #{tpu_custom_call.1} parent=11 // pred_region
          _
        $region80: #{tpu_custom_call.1} parent=11 // pred_fallthru
          _
      $region12: #{tpu_custom_call.1} parent=5 // pred_fallthru
        _
      %p641 = scmp.lt.s32.totalorder %s38, 2
      // Predicated region
      $region81: #{tpu_custom_call.1} parent=5 // pred_check
        %p642 = pneg %p641
      $region82: #{tpu_custom_call.1} parent=5 // pred_check_branch
        %644 = sbr.rel (%p642) target = $region84
      $region83: #{tpu_custom_call.1} parent=5 // pred_region
        // Predicated region
        $region85: #{tpu_custom_call.1} parent=83 // pred_check
          %p645 = pneg %p58
        $region86: #{tpu_custom_call.1} parent=83 // pred_check_branch
          %647 = sbr.rel (%p645) target = $region88
        $region87: #{tpu_custom_call.1} parent=83 // pred_region
          %p648 = scmp.lt.s32.totalorder %s38, 1
          %s649 = scalar_select %p648, %s38, 1
          %s650 = smul.addr %s649, 8
          %s651 = scalar_lea.vmem %s0, %s650
        $region88: #{tpu_custom_call.1} parent=83 // pred_fallthru
          _
        // Predicated region
        $region89: #{tpu_custom_call.1} parent=83 // pred_check
          %p652 = pneg %p84
        $region90: #{tpu_custom_call.1} parent=83 // pred_check_branch
          %654 = sbr.rel (%p652) target = $region92
        $region91: #{tpu_custom_call.1} parent=83 // pred_region
          %s655 = sand.u32 %s74, 1
          %s656 = scalar_lea.sflag [#allocation3], %s655
          %s657 = sand.u32 %s74, 1
          %s658 = smul.addr %s657, 8
          %s659 = scalar_lea.vmem [#allocation2], %s658
          %s661 = ssub.s32 128, 128
          %662 = vsyncadd %s656, %s661
          %s663 = smul.addr %s38, 128
          %s664 = scalar_lea.hbm %s1, %s663
          %s666 = sshll.u32 %s659, 4
          %s667 = int_to_ptr.vmem [resolvable:$true] %s666
          %669 = dma.hbm_to_vmem [thread:$0]  %s664, 128, %s667, %s656
        $region92: #{tpu_custom_call.1} parent=83 // pred_fallthru
          _
        // Predicated region
        $region93: #{tpu_custom_call.1} parent=83 // pred_check
          %p670 = pneg %p110
        $region94: #{tpu_custom_call.1} parent=83 // pred_check_branch
          %672 = sbr.rel (%p670) target = $region96
        $region95: #{tpu_custom_call.1} parent=83 // pred_region
          %s673 = sand.u32 %s38, 1
          %s674 = scalar_lea.sflag [#allocation6], %s673
          %s675 = sand.u32 %s100, 1
          %s676 = smul.addr %s675, 8
          %s677 = scalar_lea.vmem [#allocation5], %s676
          %s679 = ssub.s32 128, 128
          %680 = vsyncadd %s674, %s679
          %s681 = smul.addr %s38, 128
          %s682 = scalar_lea.hbm %s2, %s681
          %s684 = sshll.u32 %s677, 4
          %s685 = int_to_ptr.vmem [resolvable:$true] %s684
          %687 = dma.hbm_to_vmem [thread:$0]  %s682, 128, %s685, %s674
        $region96: #{tpu_custom_call.1} parent=83 // pred_fallthru
          _
        // Predicated region
        $region97: #{tpu_custom_call.1} parent=83 // pred_check
          %p688 = pneg %p136
        $region98: #{tpu_custom_call.1} parent=83 // pred_check_branch
          %690 = sbr.rel (%p688) target = $region100
        $region99: #{tpu_custom_call.1} parent=83 // pred_region
          %p691 = scmp.lt.s32.totalorder %s38, 1
          %s692 = scalar_select %p691, %s38, 1
          %s693 = smul.addr %s692, 8
          %s694 = scalar_lea.vmem %s3, %s693
        $region100: #{tpu_custom_call.1} parent=83 // pred_fallthru
          _
      $region84: #{tpu_custom_call.1} parent=5 // pred_fallthru
        _
      %p695 = scmp.le.s32.totalorder 1, %s38
      %p696 = scmp.lt.s32.totalorder %s38, 3
      %p697 = pnand %p695, %p696
      %p698 = pneg %p697
      // Predicated region
      $region101: #{tpu_custom_call.1} parent=5 // pred_check
        _
      $region102: #{tpu_custom_call.1} parent=5 // pred_check_branch
        %700 = sbr.rel (%p697) target = $region104
      $region103: #{tpu_custom_call.1} parent=5 // pred_region
        %s701 = ssub.s32 %s38, 1
        %s702 = sand.u32 %s77, 1
        %s703 = scalar_lea.sflag [#allocation3], %s702
        %s704 = sand.u32 %s77, 1
        %s705 = smul.addr %s704, 8
        %s706 = scalar_lea.vmem [#allocation2], %s705
        // Predicated region
        $region105: #{tpu_custom_call.1} parent=103 // pred_check
          %p707 = pneg %p90
        $region106: #{tpu_custom_call.1} parent=103 // pred_check_branch
          %709 = sbr.rel (%p707) target = $region108
        $region107: #{tpu_custom_call.1} parent=103 // pred_region
          %710 = dma.done %s703, 128
        $region108: #{tpu_custom_call.1} parent=103 // pred_fallthru
          _
        %s711 = sand.u32 %s43, 1
        %s712 = scalar_lea.sflag [#allocation6], %s711
        %s713 = sand.u32 %s103, 1
        %s714 = smul.addr %s713, 8
        %s715 = scalar_lea.vmem [#allocation5], %s714
        // Predicated region
        $region109: #{tpu_custom_call.1} parent=103 // pred_check
          %p716 = pneg %p116
        $region110: #{tpu_custom_call.1} parent=103 // pred_check_branch
          %718 = sbr.rel (%p716) target = $region112
        $region111: #{tpu_custom_call.1} parent=103 // pred_region
          %719 = dma.done %s712, 128
        $region112: #{tpu_custom_call.1} parent=103 // pred_fallthru
          _
        // Predicated region
        $region113: #{tpu_custom_call.1} parent=103 // pred_check
          %p720 = pneg %p226
        $region114: #{tpu_custom_call.1} parent=103 // pred_check_branch
          %722 = sbr.rel (%p720) target = $region116
        $region115: #{tpu_custom_call.1} parent=103 // pred_region
          %723 = dma.done [#allocation6], 1024
        $region116: #{tpu_custom_call.1} parent=103 // pred_fallthru
          _
        // Predicated region
        $region117: #{tpu_custom_call.1} parent=103 // pred_check
          %p724 = pneg %p268
        $region118: #{tpu_custom_call.1} parent=103 // pred_check_branch
          %726 = sbr.rel (%p724) target = $region120
        $region119: #{tpu_custom_call.1} parent=103 // pred_region
          %727 = dma.done [#allocation9], 1024
        $region120: #{tpu_custom_call.1} parent=103 // pred_fallthru
          _
        // Predicated region
        $region121: #{tpu_custom_call.1} parent=103 // pred_check
          %p728 = pneg %p310
        $region122: #{tpu_custom_call.1} parent=103 // pred_check_branch
          %730 = sbr.rel (%p728) target = $region124
        $region123: #{tpu_custom_call.1} parent=103 // pred_region
          %731 = dma.done [#allocation9], 1024
        $region124: #{tpu_custom_call.1} parent=103 // pred_fallthru
          _
        // Predicated region
        $region125: #{tpu_custom_call.1} parent=103 // pred_check
          %p732 = pneg %p394
        $region126: #{tpu_custom_call.1} parent=103 // pred_check_branch
          %734 = sbr.rel (%p732) target = $region128
        $region127: #{tpu_custom_call.1} parent=103 // pred_region
          %735 = dma.done [#allocation12], 1024
        $region128: #{tpu_custom_call.1} parent=103 // pred_fallthru
          _
        // Predicated region
        $region129: #{tpu_custom_call.1} parent=103 // pred_check
          %p736 = pneg %p436
        $region130: #{tpu_custom_call.1} parent=103 // pred_check_branch
          %738 = sbr.rel (%p736) target = $region132
        $region131: #{tpu_custom_call.1} parent=103 // pred_region
          %739 = dma.done [#allocation12], 1024
        $region132: #{tpu_custom_call.1} parent=103 // pred_fallthru
          _
        %p740 = scmp.lt.s32.totalorder %s43, 1
        %s741 = scalar_select %p740, %s43, 1
        %s742 = smul.addr %s741, 8
        %s743 = scalar_lea.vmem %s0, %s742
        %p744 = pneg %p64
        %p745 = pneg %p61
        %s746 = sand.u32 %s77, 1
        %s747 = scalar_lea.sflag [#allocation3], %s746
        %s748 = sand.u32 %s77, 1
        %s749 = smul.addr %s748, 8
        %s750 = scalar_lea.vmem [#allocation2], %s749
        %p751 = pneg %p90
        %p752 = pneg %p87
        %s753 = sand.u32 %s43, 1
        %s754 = scalar_lea.sflag [#allocation6], %s753
        %s755 = sand.u32 %s103, 1
        %s756 = smul.addr %s755, 8
        %s757 = scalar_lea.vmem [#allocation5], %s756
        %p758 = pneg %p116
        %p759 = pneg %p113
        %p760 = scmp.lt.s32.totalorder %s43, 1
        %s761 = scalar_select %p760, %s43, 1
        %s762 = smul.addr %s761, 8
        %s763 = scalar_lea.vmem %s3, %s762
        %p764 = pneg %p142
        %p765 = pneg %p139
        %p766 = pneg %p163
        %p767 = pneg %p160
        %p768 = pneg %p184
        %p769 = pneg %p181
        %p770 = pneg %p205
        %p771 = pneg %p202
        %p772 = pneg %p226
        %p773 = pneg %p223
        %p774 = pneg %p247
        %p775 = pneg %p244
        %p776 = pneg %p268
        %p777 = pneg %p265
        %p778 = pneg %p289
        %p779 = pneg %p286
        %p780 = pneg %p310
        %p781 = pneg %p307
        %p782 = pneg %p331
        %p783 = pneg %p328
        %p784 = pneg %p352
        %p785 = pneg %p349
        %p786 = pneg %p373
        %p787 = pneg %p370
        %p788 = pneg %p394
        %p789 = pneg %p391
        %p790 = pneg %p415
        %p791 = pneg %p412
        %p792 = pneg %p436
        %p793 = pneg %p433
        %p794 = pneg %p457
        %p795 = pneg %p454
        %p796 = pneg %p478
        %p797 = pneg %p475
        %p798 = pneg %p499
        %p799 = pneg %p496
        %p800 = pneg %p525
        %p801 = pneg %p522
        %s802 = sand.u32 %s512, 1
        %s803 = scalar_lea.sflag [#allocation4], %s802
        %s804 = sand.u32 %s512, 1
        %s805 = smul.addr %s804, 8
        %s806 = scalar_lea.vmem [#allocation14], %s805
        %p807 = scmp.lt.s32.totalorder %s43, 1
        %s808 = scalar_select %p807, %s43, 1
        %s809 = smul.addr %s808, 8
        %s810 = scalar_lea.vmem %s0, %s809
        %p811 = scmp.lt.s32.totalorder %s43, 1
        %s812 = scalar_select %p811, %s43, 1
        %s813 = smul.addr %s812, 8
        %s814 = scalar_lea.vmem %s3, %s813
        %v815 = vld [vmem:[%s814] sm:$0xff]
        %v816 = vld [vmem:[%s4] sm:$0xff]
        %v817 = vld [vmem:[%s810] sm:$0xff]
        %v818 = vmul.f32 %v817, 5.656854
        %v819 = vadd.f32 %v818, %v816
        %821 = vset.pattern.permute.xlu0 0
        %822 = vperm.xlu0 %821, %v815
        %v823 = vpop.permute.xlu0 %822
        %v825 = vmul.f32 %v819, %v823
        %v826 = vlaneseq
        %v827 = vshrl.u32 %v826, 7
        %v828 = vlaneseq
        %v829 = vand.u32 %v828, 127
        %vm830 = vcmp.le.s32.totalorder %v829, %v827
        %v831 = vld [vmem:[%s5] sm:$0x1]
        %v832 = vld [vmem:[%s6] sm:$0x1]
        %vm833 = vcmask 261120
        %v834 = vsel %vm833, %v825, 0.0
        %835 = vadd.xlane.f32.xlu0 %v834
        %v836 = vpop.xlane.xlu0 %835
        %v837 = vrcp.pop 32.0
        %v838 = vmul.f32 %v836, %v837
        %v839 = vsub.f32 %v825, %v838
        %v840 = vmul.f32 %v839, %v839
        %v841 = vsel %vm833, %v840, 0.0
        %842 = vadd.xlane.f32.xlu0 %v841
        %v843 = vpop.xlane.xlu0 %842
        %v844 = vmul.f32 %v843, %v837
        %v845 = vadd.f32 %v844, 1e-08
        %v846 = vrsqrt.pop %v845
        %v847 = vmul.f32 %v839, %v846
        %v849 = vlaneseq
        %v850 = vshrl.u32 %v849, 7
        %v851 = vsub.s32 0, %v850
        %v852 = vrot.slane %v831, %v851
        %v854 = vmul.f32 %v847, %v852
        %v856 = vlaneseq
        %v857 = vshrl.u32 %v856, 7
        %v858 = vsub.s32 0, %v857
        %v859 = vrot.slane %v832, %v858
        %v861 = vadd.f32 %v854, %v859
        %v862 = vld [vmem:[#allocation7] sm:$0xff]
        %v863 = vld [vmem:[#allocation7 + $0x8] sm:$0xff]
        %v864 = vld [vmem:[#allocation7 + $0x10] sm:$0xff]
        %v865 = vld [vmem:[#allocation7 + $0x18] sm:$0xff]
        %v866 = vld [vmem:[%s8] sm:$0x1]
        %v868 = vlaneseq
        %v869 = vshrl.u32 %v868, 7
        %v870 = vsub.s32 0, %v869
        %v871 = vrot.slane %v866, %v870
        %v874 = vsel %vm833, %v861, 0
        %876 = vmatprep.subr.mxu0 0.0
        %877 = vmatpush1.msra.mxu0 0.0
        %878 = vmatprep.subr.mxu0 0.0
        %879 = vmatpush1.msra.mxu0 0.0
        %880 = vmatprep.subr.mxu0 0.0
        %881 = vmatpush1.msra.mxu0 0.0
        %882 = vmatprep.subr.mxu0 0.0
        %883 = vmatpush1.msra.mxu0 0.0
        %884 = vmatprep.subr.mxu0 0.0
        %885 = vmatpush1.msra.mxu0 0.0
        %886 = vmatprep.subr.mxu0 0.0
        %887 = vmatpush1.msra.mxu0 0.0
        %888 = vmatprep.subr.mxu0 0.0
        %889 = vmatpush1.msra.mxu0 0.0
        %890 = vmatprep.subr.mxu0 0.0
        %891 = vmatpush1.msra.mxu0 0.0
        %892 = vmatprep.subr.mxu0 0.0
        %893 = vmatpush1.msra.mxu0 0.0
        %894 = vmatprep.subr.mxu0 0.0
        %895 = vmatpush1.msra.mxu0 0.0
        %896 = vmatprep.subr.mxu0 0.0
        %897 = vmatpush1.msra.mxu0 0.0
        %898 = vmatprep.subr.mxu0 0.0
        %899 = vmatpush1.msra.mxu0 0.0
        %900 = vmatprep.subr.mxu0 0.0
        %901 = vmatpush1.msra.mxu0 %v865
        %902 = vmatprep.subr.mxu0 0.0
        %903 = vmatpush1.msra.mxu0 %v864
        %904 = vmatprep.subr.mxu0 0.0
        %905 = vmatpush1.msra.mxu0 %v863
        %906 = vmatprep.subr.mxu0 0.0
        %907 = vmatpush1.msra.mxu0 %v862
        %908 = vmatprep.subr.mxu0 0.0
        %909 = vmatpush2.msra.mxu0 0.0
        %910 = vmatprep.subr.mxu0 0.0
        %911 = vmatpush2.msra.mxu0 0.0
        %912 = vmatprep.subr.mxu0 0.0
        %913 = vmatpush2.msra.mxu0 0.0
        %914 = vmatprep.subr.mxu0 0.0
        %915 = vmatpush2.msra.mxu0 0.0
        %916 = vmatprep.subr.mxu0 0.0
        %917 = vmatpush2.msra.mxu0 0.0
        %918 = vmatprep.subr.mxu0 0.0
        %919 = vmatpush2.msra.mxu0 0.0
        %920 = vmatprep.subr.mxu0 0.0
        %921 = vmatpush2.msra.mxu0 0.0
        %922 = vmatprep.subr.mxu0 0.0
        %923 = vmatpush2.msra.mxu0 0.0
        %924 = vmatprep.subr.mxu0 0.0
        %925 = vmatpush2.msra.mxu0 0.0
        %926 = vmatprep.subr.mxu0 0.0
        %927 = vmatpush2.msra.mxu0 0.0
        %928 = vmatprep.subr.mxu0 0.0
        %929 = vmatpush2.msra.mxu0 0.0
        %930 = vmatprep.subr.mxu0 0.0
        %931 = vmatpush2.msra.mxu0 0.0
        %932 = vmatprep.subr.mxu0 0.0
        %933 = vmatpush2.msra.mxu0 0.0
        %934 = vmatprep.subr.mxu0 0.0
        %935 = vmatpush2.msra.mxu0 0.0
        %936 = vmatprep.subr.mxu0 0.0
        %937 = vmatpush2.msra.mxu0 0.0
        %938 = vmatprep.subr.mxu0 0.0
        %939 = vmatpush2.msra.mxu0 0.0
        %940 = vmatprep.mubr.f32.mxu0 0.0
        %941 = vmatmul.mubr.f32.gmra.mxu0 %v874
        %v942 = vpop.f32.mrf.mxu0
        %v943 = vadd.f32 %v871, %v942
        %v944 = vpop.f32.mrf.mxu0
        %945 = vdwg.mxu0
        %v946 = vld [vmem:[#allocation8] sm:$0xff]
        %v947 = vld [vmem:[#allocation8 + $0x8] sm:$0xff]
        %v948 = vld [vmem:[#allocation8 + $0x10] sm:$0xff]
        %v949 = vld [vmem:[#allocation8 + $0x18] sm:$0xff]
        %v950 = vld [vmem:[%s10] sm:$0x1]
        %v952 = vlaneseq
        %v953 = vshrl.u32 %v952, 7
        %v954 = vsub.s32 0, %v953
        %v955 = vrot.slane %v950, %v954
        %v958 = vsel %vm833, %v825, 0
        %960 = vmatprep.subr.mxu0 0.0
        %961 = vmatpush1.msra.mxu0 0.0
        %962 = vmatprep.subr.mxu0 0.0
        %963 = vmatpush1.msra.mxu0 0.0
        %964 = vmatprep.subr.mxu0 0.0
        %965 = vmatpush1.msra.mxu0 0.0
        %966 = vmatprep.subr.mxu0 0.0
        %967 = vmatpush1.msra.mxu0 0.0
        %968 = vmatprep.subr.mxu0 0.0
        %969 = vmatpush1.msra.mxu0 0.0
        %970 = vmatprep.subr.mxu0 0.0
        %971 = vmatpush1.msra.mxu0 0.0
        %972 = vmatprep.subr.mxu0 0.0
        %973 = vmatpush1.msra.mxu0 0.0
        %974 = vmatprep.subr.mxu0 0.0
        %975 = vmatpush1.msra.mxu0 0.0
        %976 = vmatprep.subr.mxu0 0.0
        %977 = vmatpush1.msra.mxu0 0.0
        %978 = vmatprep.subr.mxu0 0.0
        %979 = vmatpush1.msra.mxu0 0.0
        %980 = vmatprep.subr.mxu0 0.0
        %981 = vmatpush1.msra.mxu0 0.0
        %982 = vmatprep.subr.mxu0 0.0
        %983 = vmatpush1.msra.mxu0 0.0
        %984 = vmatprep.subr.mxu0 0.0
        %985 = vmatpush1.msra.mxu0 %v949
        %986 = vmatprep.subr.mxu0 0.0
        %987 = vmatpush1.msra.mxu0 %v948
        %988 = vmatprep.subr.mxu0 0.0
        %989 = vmatpush1.msra.mxu0 %v947
        %990 = vmatprep.subr.mxu0 0.0
        %991 = vmatpush1.msra.mxu0 %v946
        %992 = vmatprep.subr.mxu0 0.0
        %993 = vmatpush2.msra.mxu0 0.0
        %994 = vmatprep.subr.mxu0 0.0
        %995 = vmatpush2.msra.mxu0 0.0
        %996 = vmatprep.subr.mxu0 0.0
        %997 = vmatpush2.msra.mxu0 0.0
        %998 = vmatprep.subr.mxu0 0.0
        %999 = vmatpush2.msra.mxu0 0.0
        %1000 = vmatprep.subr.mxu0 0.0
        %1001 = vmatpush2.msra.mxu0 0.0
        %1002 = vmatprep.subr.mxu0 0.0
        %1003 = vmatpush2.msra.mxu0 0.0
        %1004 = vmatprep.subr.mxu0 0.0
        %1005 = vmatpush2.msra.mxu0 0.0
        %1006 = vmatprep.subr.mxu0 0.0
        %1007 = vmatpush2.msra.mxu0 0.0
        %1008 = vmatprep.subr.mxu0 0.0
        %1009 = vmatpush2.msra.mxu0 0.0
        %1010 = vmatprep.subr.mxu0 0.0
        %1011 = vmatpush2.msra.mxu0 0.0
        %1012 = vmatprep.subr.mxu0 0.0
        %1013 = vmatpush2.msra.mxu0 0.0
        %1014 = vmatprep.subr.mxu0 0.0
        %1015 = vmatpush2.msra.mxu0 0.0
        %1016 = vmatprep.subr.mxu0 0.0
        %1017 = vmatpush2.msra.mxu0 0.0
        %1018 = vmatprep.subr.mxu0 0.0
        %1019 = vmatpush2.msra.mxu0 0.0
        %1020 = vmatprep.subr.mxu0 0.0
        %1021 = vmatpush2.msra.mxu0 0.0
        %1022 = vmatprep.subr.mxu0 0.0
        %1023 = vmatpush2.msra.mxu0 0.0
        %1024 = vmatprep.mubr.f32.mxu0 0.0
        %1025 = vmatmul.mubr.f32.gmra.mxu0 %v958
        %v1026 = vpop.f32.mrf.mxu0
        %v1027 = vadd.f32 %v955, %v1026
        %v1028 = vpop.f32.mrf.mxu0
        %1029 = vdwg.mxu0
        %vm1030 = vcmask 130048
        %v1032 = vsel %vm1030, %v943, 0
        %v1035 = vsel %vm1030, %v1027, 0
        %1037 = vmatprep.subr.mxu0 0.0
        %1038 = vmatpush1.xpose.msra.mxu0 0.0
        %1039 = vmatprep.subr.mxu0 0.0
        %1040 = vmatpush1.xpose.msra.mxu0 0.0
        %1041 = vmatprep.subr.mxu0 0.0
        %1042 = vmatpush1.xpose.msra.mxu0 0.0
        %1043 = vmatprep.subr.mxu0 0.0
        %1044 = vmatpush1.xpose.msra.mxu0 0.0
        %1045 = vmatprep.subr.mxu0 0.0
        %1046 = vmatpush1.xpose.msra.mxu0 0.0
        %1047 = vmatprep.subr.mxu0 0.0
        %1048 = vmatpush1.xpose.msra.mxu0 0.0
        %1049 = vmatprep.subr.mxu0 0.0
        %1050 = vmatpush1.xpose.msra.mxu0 0.0
        %1051 = vmatprep.subr.mxu0 0.0
        %1052 = vmatpush1.xpose.msra.mxu0 0.0
        %1053 = vmatprep.subr.mxu0 0.0
        %1054 = vmatpush1.xpose.msra.mxu0 0.0
        %1055 = vmatprep.subr.mxu0 0.0
        %1056 = vmatpush1.xpose.msra.mxu0 0.0
        %1057 = vmatprep.subr.mxu0 0.0
        %1058 = vmatpush1.xpose.msra.mxu0 0.0
        %1059 = vmatprep.subr.mxu0 0.0
        %1060 = vmatpush1.xpose.msra.mxu0 0.0
        %1061 = vmatprep.subr.mxu0 0.0
        %1062 = vmatpush1.xpose.msra.mxu0 0.0
        %1063 = vmatprep.subr.mxu0 0.0
        %1064 = vmatpush1.xpose.msra.mxu0 0.0
        %1065 = vmatprep.subr.mxu0 0.0
        %1066 = vmatpush1.xpose.msra.mxu0 0.0
        %1067 = vmatprep.subr.mxu0 0.0
        %1068 = vmatpush1.xpose.msra.mxu0 %v1035
        %1069 = vmatprep.subr.mxu0 0.0
        %1070 = vmatpush2.xpose.msra.mxu0 0.0
        %1071 = vmatprep.subr.mxu0 0.0
        %1072 = vmatpush2.xpose.msra.mxu0 0.0
        %1073 = vmatprep.subr.mxu0 0.0
        %1074 = vmatpush2.xpose.msra.mxu0 0.0
        %1075 = vmatprep.subr.mxu0 0.0
        %1076 = vmatpush2.xpose.msra.mxu0 0.0
        %1077 = vmatprep.subr.mxu0 0.0
        %1078 = vmatpush2.xpose.msra.mxu0 0.0
        %1079 = vmatprep.subr.mxu0 0.0
        %1080 = vmatpush2.xpose.msra.mxu0 0.0
        %1081 = vmatprep.subr.mxu0 0.0
        %1082 = vmatpush2.xpose.msra.mxu0 0.0
        %1083 = vmatprep.subr.mxu0 0.0
        %1084 = vmatpush2.xpose.msra.mxu0 0.0
        %1085 = vmatprep.subr.mxu0 0.0
        %1086 = vmatpush2.xpose.msra.mxu0 0.0
        %1087 = vmatprep.subr.mxu0 0.0
        %1088 = vmatpush2.xpose.msra.mxu0 0.0
        %1089 = vmatprep.subr.mxu0 0.0
        %1090 = vmatpush2.xpose.msra.mxu0 0.0
        %1091 = vmatprep.subr.mxu0 0.0
        %1092 = vmatpush2.xpose.msra.mxu0 0.0
        %1093 = vmatprep.subr.mxu0 0.0
        %1094 = vmatpush2.xpose.msra.mxu0 0.0
        %1095 = vmatprep.subr.mxu0 0.0
        %1096 = vmatpush2.xpose.msra.mxu0 0.0
        %1097 = vmatprep.subr.mxu0 0.0
        %1098 = vmatpush2.xpose.msra.mxu0 0.0
        %1099 = vmatprep.subr.mxu0 0.0
        %1100 = vmatpush2.xpose.msra.mxu0 0.0
        %1101 = vmatprep.mubr.f32.mxu0 0.0
        %1102 = vmatmul.mubr.f32.gmra.mxu0 %v1032
        %v1103 = vpop.f32.mrf.mxu0
        %v1104 = vadd.f32 0.0, %v1103
        %v1105 = vpop.f32.mrf.mxu0
        %1106 = vdwg.mxu0
        %v1107 = vsel %vm830, %v1104, -1e+30
        %vm1108 = vcmask 64512
        %v1109 = vsel %vm1108, %v1107, -inf
        %1110 = vmax.xlane.f32.xlu0 %v1109
        %v1111 = vpop.xlane.xlu0 %1110
        %v1112 = vsub.f32 %v1107, %v1111
        %v1113 = vmul.f32 %v1112, 1.442695
        %v1114 = vpow.pop %v1113
        %v1115 = vsel %vm1108, %v1114, 0.0
        %1116 = vadd.xlane.f32.xlu0 %v1115
        %v1117 = vpop.xlane.xlu0 %1116
        %v1118 = vrcp.pop %v1117
        %v1119 = vmul.f32 %v1114, %v1118
        %1120 = vrot.lane.b32.xlu0 %v1027, 96
        %v1121 = vpop.permute.xlu0 %1120
        %v1124 = vsel %vm1108, %v1119, 0
        %1126 = vmatprep.subr.mxu0 0.0
        %1127 = vmatpush1.msra.mxu0 0.0
        %1128 = vmatprep.subr.mxu0 0.0
        %1129 = vmatpush1.msra.mxu0 0.0
        %1130 = vmatprep.subr.mxu0 0.0
        %1131 = vmatpush1.msra.mxu0 0.0
        %1132 = vmatprep.subr.mxu0 0.0
        %1133 = vmatpush1.msra.mxu0 0.0
        %1134 = vmatprep.subr.mxu0 0.0
        %1135 = vmatpush1.msra.mxu0 0.0
        %1136 = vmatprep.subr.mxu0 0.0
        %1137 = vmatpush1.msra.mxu0 0.0
        %1138 = vmatprep.subr.mxu0 0.0
        %1139 = vmatpush1.msra.mxu0 0.0
        %1140 = vmatprep.subr.mxu0 0.0
        %1141 = vmatpush1.msra.mxu0 0.0
        %1142 = vmatprep.subr.mxu0 0.0
        %1143 = vmatpush1.msra.mxu0 0.0
        %1144 = vmatprep.subr.mxu0 0.0
        %1145 = vmatpush1.msra.mxu0 0.0
        %1146 = vmatprep.subr.mxu0 0.0
        %1147 = vmatpush1.msra.mxu0 0.0
        %1148 = vmatprep.subr.mxu0 0.0
        %1149 = vmatpush1.msra.mxu0 0.0
        %1150 = vmatprep.subr.mxu0 0.0
        %1151 = vmatpush1.msra.mxu0 0.0
        %1152 = vmatprep.subr.mxu0 0.0
        %1153 = vmatpush1.msra.mxu0 0.0
        %1154 = vmatprep.subr.mxu0 0.0
        %1155 = vmatpush1.msra.mxu0 0.0
        %1156 = vmatprep.subr.mxu0 0.0
        %1157 = vmatpush1.msra.mxu0 %v1121
        %1158 = vmatprep.subr.mxu0 0.0
        %1159 = vmatpush2.msra.mxu0 0.0
        %1160 = vmatprep.subr.mxu0 0.0
        %1161 = vmatpush2.msra.mxu0 0.0
        %1162 = vmatprep.subr.mxu0 0.0
        %1163 = vmatpush2.msra.mxu0 0.0
        %1164 = vmatprep.subr.mxu0 0.0
        %1165 = vmatpush2.msra.mxu0 0.0
        %1166 = vmatprep.subr.mxu0 0.0
        %1167 = vmatpush2.msra.mxu0 0.0
        %1168 = vmatprep.subr.mxu0 0.0
        %1169 = vmatpush2.msra.mxu0 0.0
        %1170 = vmatprep.subr.mxu0 0.0
        %1171 = vmatpush2.msra.mxu0 0.0
        %1172 = vmatprep.subr.mxu0 0.0
        %1173 = vmatpush2.msra.mxu0 0.0
        %1174 = vmatprep.subr.mxu0 0.0
        %1175 = vmatpush2.msra.mxu0 0.0
        %1176 = vmatprep.subr.mxu0 0.0
        %1177 = vmatpush2.msra.mxu0 0.0
        %1178 = vmatprep.subr.mxu0 0.0
        %1179 = vmatpush2.msra.mxu0 0.0
        %1180 = vmatprep.subr.mxu0 0.0
        %1181 = vmatpush2.msra.mxu0 0.0
        %1182 = vmatprep.subr.mxu0 0.0
        %1183 = vmatpush2.msra.mxu0 0.0
        %1184 = vmatprep.subr.mxu0 0.0
        %1185 = vmatpush2.msra.mxu0 0.0
        %1186 = vmatprep.subr.mxu0 0.0
        %1187 = vmatpush2.msra.mxu0 0.0
        %1188 = vmatprep.subr.mxu0 0.0
        %1189 = vmatpush2.msra.mxu0 0.0
        %1190 = vmatprep.mubr.f32.mxu0 0.0
        %1191 = vmatmul.mubr.f32.gmra.mxu0 %v1124
        %v1192 = vpop.f32.mrf.mxu0
        %v1193 = vadd.f32 0.0, %v1192
        %v1194 = vpop.f32.mrf.mxu0
        %1195 = vdwg.mxu0
        %1196 = vrot.lane.b32.xlu0 %v943, 112
        %v1197 = vpop.permute.xlu0 %1196
        %1198 = vrot.lane.b32.xlu0 %v1027, 112
        %v1199 = vpop.permute.xlu0 %1198
        %v1200 = vsel %vm1030, %v1197, 0
        %v1202 = vsel %vm1030, %v1199, 0
        %1204 = vmatprep.subr.mxu0 0.0
        %1205 = vmatpush1.xpose.msra.mxu0 0.0
        %1206 = vmatprep.subr.mxu0 0.0
        %1207 = vmatpush1.xpose.msra.mxu0 0.0
        %1208 = vmatprep.subr.mxu0 0.0
        %1209 = vmatpush1.xpose.msra.mxu0 0.0
        %1210 = vmatprep.subr.mxu0 0.0
        %1211 = vmatpush1.xpose.msra.mxu0 0.0
        %1212 = vmatprep.subr.mxu0 0.0
        %1213 = vmatpush1.xpose.msra.mxu0 0.0
        %1214 = vmatprep.subr.mxu0 0.0
        %1215 = vmatpush1.xpose.msra.mxu0 0.0
        %1216 = vmatprep.subr.mxu0 0.0
        %1217 = vmatpush1.xpose.msra.mxu0 0.0
        %1218 = vmatprep.subr.mxu0 0.0
        %1219 = vmatpush1.xpose.msra.mxu0 0.0
        %1220 = vmatprep.subr.mxu0 0.0
        %1221 = vmatpush1.xpose.msra.mxu0 0.0
        %1222 = vmatprep.subr.mxu0 0.0
        %1223 = vmatpush1.xpose.msra.mxu0 0.0
        %1224 = vmatprep.subr.mxu0 0.0
        %1225 = vmatpush1.xpose.msra.mxu0 0.0
        %1226 = vmatprep.subr.mxu0 0.0
        %1227 = vmatpush1.xpose.msra.mxu0 0.0
        %1228 = vmatprep.subr.mxu0 0.0
        %1229 = vmatpush1.xpose.msra.mxu0 0.0
        %1230 = vmatprep.subr.mxu0 0.0
        %1231 = vmatpush1.xpose.msra.mxu0 0.0
        %1232 = vmatprep.subr.mxu0 0.0
        %1233 = vmatpush1.xpose.msra.mxu0 0.0
        %1234 = vmatprep.subr.mxu0 0.0
        %1235 = vmatpush1.xpose.msra.mxu0 %v1202
        %1236 = vmatprep.subr.mxu0 0.0
        %1237 = vmatpush2.xpose.msra.mxu0 0.0
        %1238 = vmatprep.subr.mxu0 0.0
        %1239 = vmatpush2.xpose.msra.mxu0 0.0
        %1240 = vmatprep.subr.mxu0 0.0
        %1241 = vmatpush2.xpose.msra.mxu0 0.0
        %1242 = vmatprep.subr.mxu0 0.0
        %1243 = vmatpush2.xpose.msra.mxu0 0.0
        %1244 = vmatprep.subr.mxu0 0.0
        %1245 = vmatpush2.xpose.msra.mxu0 0.0
        %1246 = vmatprep.subr.mxu0 0.0
        %1247 = vmatpush2.xpose.msra.mxu0 0.0
        %1248 = vmatprep.subr.mxu0 0.0
        %1249 = vmatpush2.xpose.msra.mxu0 0.0
        %1250 = vmatprep.subr.mxu0 0.0
        %1251 = vmatpush2.xpose.msra.mxu0 0.0
        %1252 = vmatprep.subr.mxu0 0.0
        %1253 = vmatpush2.xpose.msra.mxu0 0.0
        %1254 = vmatprep.subr.mxu0 0.0
        %1255 = vmatpush2.xpose.msra.mxu0 0.0
        %1256 = vmatprep.subr.mxu0 0.0
        %1257 = vmatpush2.xpose.msra.mxu0 0.0
        %1258 = vmatprep.subr.mxu0 0.0
        %1259 = vmatpush2.xpose.msra.mxu0 0.0
        %1260 = vmatprep.subr.mxu0 0.0
        %1261 = vmatpush2.xpose.msra.mxu0 0.0
        %1262 = vmatprep.subr.mxu0 0.0
        %1263 = vmatpush2.xpose.msra.mxu0 0.0
        %1264 = vmatprep.subr.mxu0 0.0
        %1265 = vmatpush2.xpose.msra.mxu0 0.0
        %1266 = vmatprep.subr.mxu0 0.0
        %1267 = vmatpush2.xpose.msra.mxu0 0.0
        %1268 = vmatprep.mubr.f32.mxu0 0.0
        %1269 = vmatmul.mubr.f32.gmra.mxu0 %v1200
        %v1270 = vpop.f32.mrf.mxu0
        %v1271 = vadd.f32 0.0, %v1270
        %v1272 = vpop.f32.mrf.mxu0
        %1273 = vdwg.mxu0
        %v1274 = vsel %vm830, %v1271, -1e+30
        %v1275 = vsel %vm1108, %v1274, -inf
        %1276 = vmax.xlane.f32.xlu0 %v1275
        %v1277 = vpop.xlane.xlu0 %1276
        %v1278 = vsub.f32 %v1274, %v1277
        %v1279 = vmul.f32 %v1278, 1.442695
        %v1280 = vpow.pop %v1279
        %v1281 = vsel %vm1108, %v1280, 0.0
        %1282 = vadd.xlane.f32.xlu0 %v1281
        %v1283 = vpop.xlane.xlu0 %1282
        %v1284 = vrcp.pop %v1283
        %v1285 = vmul.f32 %v1280, %v1284
        %1286 = vrot.lane.b32.xlu0 %v1027, 80
        %v1287 = vpop.permute.xlu0 %1286
        %v1290 = vsel %vm1108, %v1285, 0
        %1292 = vmatprep.subr.mxu0 0.0
        %1293 = vmatpush1.msra.mxu0 0.0
        %1294 = vmatprep.subr.mxu0 0.0
        %1295 = vmatpush1.msra.mxu0 0.0
        %1296 = vmatprep.subr.mxu0 0.0
        %1297 = vmatpush1.msra.mxu0 0.0
        %1298 = vmatprep.subr.mxu0 0.0
        %1299 = vmatpush1.msra.mxu0 0.0
        %1300 = vmatprep.subr.mxu0 0.0
        %1301 = vmatpush1.msra.mxu0 0.0
        %1302 = vmatprep.subr.mxu0 0.0
        %1303 = vmatpush1.msra.mxu0 0.0
        %1304 = vmatprep.subr.mxu0 0.0
        %1305 = vmatpush1.msra.mxu0 0.0
        %1306 = vmatprep.subr.mxu0 0.0
        %1307 = vmatpush1.msra.mxu0 0.0
        %1308 = vmatprep.subr.mxu0 0.0
        %1309 = vmatpush1.msra.mxu0 0.0
        %1310 = vmatprep.subr.mxu0 0.0
        %1311 = vmatpush1.msra.mxu0 0.0
        %1312 = vmatprep.subr.mxu0 0.0
        %1313 = vmatpush1.msra.mxu0 0.0
        %1314 = vmatprep.subr.mxu0 0.0
        %1315 = vmatpush1.msra.mxu0 0.0
        %1316 = vmatprep.subr.mxu0 0.0
        %1317 = vmatpush1.msra.mxu0 0.0
        %1318 = vmatprep.subr.mxu0 0.0
        %1319 = vmatpush1.msra.mxu0 0.0
        %1320 = vmatprep.subr.mxu0 0.0
        %1321 = vmatpush1.msra.mxu0 0.0
        %1322 = vmatprep.subr.mxu0 0.0
        %1323 = vmatpush1.msra.mxu0 %v1287
        %1324 = vmatprep.subr.mxu0 0.0
        %1325 = vmatpush2.msra.mxu0 0.0
        %1326 = vmatprep.subr.mxu0 0.0
        %1327 = vmatpush2.msra.mxu0 0.0
        %1328 = vmatprep.subr.mxu0 0.0
        %1329 = vmatpush2.msra.mxu0 0.0
        %1330 = vmatprep.subr.mxu0 0.0
        %1331 = vmatpush2.msra.mxu0 0.0
        %1332 = vmatprep.subr.mxu0 0.0
        %1333 = vmatpush2.msra.mxu0 0.0
        %1334 = vmatprep.subr.mxu0 0.0
        %1335 = vmatpush2.msra.mxu0 0.0
        %1336 = vmatprep.subr.mxu0 0.0
        %1337 = vmatpush2.msra.mxu0 0.0
        %1338 = vmatprep.subr.mxu0 0.0
        %1339 = vmatpush2.msra.mxu0 0.0
        %1340 = vmatprep.subr.mxu0 0.0
        %1341 = vmatpush2.msra.mxu0 0.0
        %1342 = vmatprep.subr.mxu0 0.0
        %1343 = vmatpush2.msra.mxu0 0.0
        %1344 = vmatprep.subr.mxu0 0.0
        %1345 = vmatpush2.msra.mxu0 0.0
        %1346 = vmatprep.subr.mxu0 0.0
        %1347 = vmatpush2.msra.mxu0 0.0
        %1348 = vmatprep.subr.mxu0 0.0
        %1349 = vmatpush2.msra.mxu0 0.0
        %1350 = vmatprep.subr.mxu0 0.0
        %1351 = vmatpush2.msra.mxu0 0.0
        %1352 = vmatprep.subr.mxu0 0.0
        %1353 = vmatpush2.msra.mxu0 0.0
        %1354 = vmatprep.subr.mxu0 0.0
        %1355 = vmatpush2.msra.mxu0 0.0
        %1356 = vmatprep.mubr.f32.mxu0 0.0
        %1357 = vmatmul.mubr.f32.gmra.mxu0 %v1290
        %v1358 = vpop.f32.mrf.mxu0
        %v1359 = vadd.f32 0.0, %v1358
        %v1360 = vpop.f32.mrf.mxu0
        %1361 = vdwg.mxu0
        %1363 = vrot.lane.b32.xlu0 %v1359, 16
        %v1364 = vpop.permute.xlu0 %1363
        %v1366 = vsel %vm1030, %v1193, %v1364
        %v1367 = vld [vmem:[#allocation10] sm:$0xff]
        %v1368 = vld [vmem:[#allocation10 + $0x8] sm:$0xff]
        %v1369 = vld [vmem:[#allocation10 + $0x10] sm:$0xff]
        %v1370 = vld [vmem:[#allocation10 + $0x18] sm:$0xff]
        %v1371 = vld [vmem:[%s12] sm:$0x1]
        %v1373 = vlaneseq
        %v1374 = vshrl.u32 %v1373, 7
        %v1375 = vsub.s32 0, %v1374
        %v1376 = vrot.slane %v1371, %v1375
        %v1379 = vsel %vm833, %v1366, 0
        %1381 = vmatprep.subr.mxu0 0.0
        %1382 = vmatpush1.msra.mxu0 0.0
        %1383 = vmatprep.subr.mxu0 0.0
        %1384 = vmatpush1.msra.mxu0 0.0
        %1385 = vmatprep.subr.mxu0 0.0
        %1386 = vmatpush1.msra.mxu0 0.0
        %1387 = vmatprep.subr.mxu0 0.0
        %1388 = vmatpush1.msra.mxu0 0.0
        %1389 = vmatprep.subr.mxu0 0.0
        %1390 = vmatpush1.msra.mxu0 0.0
        %1391 = vmatprep.subr.mxu0 0.0
        %1392 = vmatpush1.msra.mxu0 0.0
        %1393 = vmatprep.subr.mxu0 0.0
        %1394 = vmatpush1.msra.mxu0 0.0
        %1395 = vmatprep.subr.mxu0 0.0
        %1396 = vmatpush1.msra.mxu0 0.0
        %1397 = vmatprep.subr.mxu0 0.0
        %1398 = vmatpush1.msra.mxu0 0.0
        %1399 = vmatprep.subr.mxu0 0.0
        %1400 = vmatpush1.msra.mxu0 0.0
        %1401 = vmatprep.subr.mxu0 0.0
        %1402 = vmatpush1.msra.mxu0 0.0
        %1403 = vmatprep.subr.mxu0 0.0
        %1404 = vmatpush1.msra.mxu0 0.0
        %1405 = vmatprep.subr.mxu0 0.0
        %1406 = vmatpush1.msra.mxu0 %v1370
        %1407 = vmatprep.subr.mxu0 0.0
        %1408 = vmatpush1.msra.mxu0 %v1369
        %1409 = vmatprep.subr.mxu0 0.0
        %1410 = vmatpush1.msra.mxu0 %v1368
        %1411 = vmatprep.subr.mxu0 0.0
        %1412 = vmatpush1.msra.mxu0 %v1367
        %1413 = vmatprep.subr.mxu0 0.0
        %1414 = vmatpush2.msra.mxu0 0.0
        %1415 = vmatprep.subr.mxu0 0.0
        %1416 = vmatpush2.msra.mxu0 0.0
        %1417 = vmatprep.subr.mxu0 0.0
        %1418 = vmatpush2.msra.mxu0 0.0
        %1419 = vmatprep.subr.mxu0 0.0
        %1420 = vmatpush2.msra.mxu0 0.0
        %1421 = vmatprep.subr.mxu0 0.0
        %1422 = vmatpush2.msra.mxu0 0.0
        %1423 = vmatprep.subr.mxu0 0.0
        %1424 = vmatpush2.msra.mxu0 0.0
        %1425 = vmatprep.subr.mxu0 0.0
        %1426 = vmatpush2.msra.mxu0 0.0
        %1427 = vmatprep.subr.mxu0 0.0
        %1428 = vmatpush2.msra.mxu0 0.0
        %1429 = vmatprep.subr.mxu0 0.0
        %1430 = vmatpush2.msra.mxu0 0.0
        %1431 = vmatprep.subr.mxu0 0.0
        %1432 = vmatpush2.msra.mxu0 0.0
        %1433 = vmatprep.subr.mxu0 0.0
        %1434 = vmatpush2.msra.mxu0 0.0
        %1435 = vmatprep.subr.mxu0 0.0
        %1436 = vmatpush2.msra.mxu0 0.0
        %1437 = vmatprep.subr.mxu0 0.0
        %1438 = vmatpush2.msra.mxu0 0.0
        %1439 = vmatprep.subr.mxu0 0.0
        %1440 = vmatpush2.msra.mxu0 0.0
        %1441 = vmatprep.subr.mxu0 0.0
        %1442 = vmatpush2.msra.mxu0 0.0
        %1443 = vmatprep.subr.mxu0 0.0
        %1444 = vmatpush2.msra.mxu0 0.0
        %1445 = vmatprep.mubr.f32.mxu0 0.0
        %1446 = vmatmul.mubr.f32.gmra.mxu0 %v1379
        %v1447 = vpop.f32.mrf.mxu0
        %v1448 = vadd.f32 %v1376, %v1447
        %v1449 = vpop.f32.mrf.mxu0
        %1450 = vdwg.mxu0
        %v1451 = vadd.f32 %v861, %v1448
        %v1452 = vld [vmem:[%s13] sm:$0x1]
        %v1453 = vld [vmem:[%s14] sm:$0x1]
        %v1454 = vsel %vm833, %v1451, 0.0
        %1455 = vadd.xlane.f32.xlu0 %v1454
        %v1456 = vpop.xlane.xlu0 %1455
        %v1457 = vmul.f32 %v1456, %v837
        %v1458 = vsub.f32 %v1451, %v1457
        %v1459 = vmul.f32 %v1458, %v1458
        %v1460 = vsel %vm833, %v1459, 0.0
        %1461 = vadd.xlane.f32.xlu0 %v1460
        %v1462 = vpop.xlane.xlu0 %1461
        %v1463 = vmul.f32 %v1462, %v837
        %v1464 = vadd.f32 %v1463, 1e-08
        %v1465 = vrsqrt.pop %v1464
        %v1466 = vmul.f32 %v1458, %v1465
        %v1468 = vlaneseq
        %v1469 = vshrl.u32 %v1468, 7
        %v1470 = vsub.s32 0, %v1469
        %v1471 = vrot.slane %v1452, %v1470
        %v1473 = vmul.f32 %v1466, %v1471
        %v1475 = vlaneseq
        %v1476 = vshrl.u32 %v1475, 7
        %v1477 = vsub.s32 0, %v1476
        %v1478 = vrot.slane %v1453, %v1477
        %v1480 = vadd.f32 %v1473, %v1478
        %v1481 = vld [vmem:[#allocation11] sm:$0xff]
        %v1482 = vld [vmem:[#allocation11 + $0x8] sm:$0xff]
        %v1483 = vld [vmem:[#allocation11 + $0x10] sm:$0xff]
        %v1484 = vld [vmem:[#allocation11 + $0x18] sm:$0xff]
        %v1485 = vld [vmem:[%s16] sm:$0x1]
        %v1487 = vlaneseq
        %v1488 = vshrl.u32 %v1487, 7
        %v1489 = vsub.s32 0, %v1488
        %v1490 = vrot.slane %v1485, %v1489
        %v1493 = vsel %vm833, %v1480, 0
        %1495 = vmatprep.subr.mxu0 0.0
        %1496 = vmatpush1.msra.mxu0 0.0
        %1497 = vmatprep.subr.mxu0 0.0
        %1498 = vmatpush1.msra.mxu0 0.0
        %1499 = vmatprep.subr.mxu0 0.0
        %1500 = vmatpush1.msra.mxu0 0.0
        %1501 = vmatprep.subr.mxu0 0.0
        %1502 = vmatpush1.msra.mxu0 0.0
        %1503 = vmatprep.subr.mxu0 0.0
        %1504 = vmatpush1.msra.mxu0 0.0
        %1505 = vmatprep.subr.mxu0 0.0
        %1506 = vmatpush1.msra.mxu0 0.0
        %1507 = vmatprep.subr.mxu0 0.0
        %1508 = vmatpush1.msra.mxu0 0.0
        %1509 = vmatprep.subr.mxu0 0.0
        %1510 = vmatpush1.msra.mxu0 0.0
        %1511 = vmatprep.subr.mxu0 0.0
        %1512 = vmatpush1.msra.mxu0 0.0
        %1513 = vmatprep.subr.mxu0 0.0
        %1514 = vmatpush1.msra.mxu0 0.0
        %1515 = vmatprep.subr.mxu0 0.0
        %1516 = vmatpush1.msra.mxu0 0.0
        %1517 = vmatprep.subr.mxu0 0.0
        %1518 = vmatpush1.msra.mxu0 0.0
        %1519 = vmatprep.subr.mxu0 0.0
        %1520 = vmatpush1.msra.mxu0 %v1484
        %1521 = vmatprep.subr.mxu0 0.0
        %1522 = vmatpush1.msra.mxu0 %v1483
        %1523 = vmatprep.subr.mxu0 0.0
        %1524 = vmatpush1.msra.mxu0 %v1482
        %1525 = vmatprep.subr.mxu0 0.0
        %1526 = vmatpush1.msra.mxu0 %v1481
        %1527 = vmatprep.subr.mxu0 0.0
        %1528 = vmatpush2.msra.mxu0 0.0
        %1529 = vmatprep.subr.mxu0 0.0
        %1530 = vmatpush2.msra.mxu0 0.0
        %1531 = vmatprep.subr.mxu0 0.0
        %1532 = vmatpush2.msra.mxu0 0.0
        %1533 = vmatprep.subr.mxu0 0.0
        %1534 = vmatpush2.msra.mxu0 0.0
        %1535 = vmatprep.subr.mxu0 0.0
        %1536 = vmatpush2.msra.mxu0 0.0
        %1537 = vmatprep.subr.mxu0 0.0
        %1538 = vmatpush2.msra.mxu0 0.0
        %1539 = vmatprep.subr.mxu0 0.0
        %1540 = vmatpush2.msra.mxu0 0.0
        %1541 = vmatprep.subr.mxu0 0.0
        %1542 = vmatpush2.msra.mxu0 0.0
        %1543 = vmatprep.subr.mxu0 0.0
        %1544 = vmatpush2.msra.mxu0 0.0
        %1545 = vmatprep.subr.mxu0 0.0
        %1546 = vmatpush2.msra.mxu0 0.0
        %1547 = vmatprep.subr.mxu0 0.0
        %1548 = vmatpush2.msra.mxu0 0.0
        %1549 = vmatprep.subr.mxu0 0.0
        %1550 = vmatpush2.msra.mxu0 0.0
        %1551 = vmatprep.subr.mxu0 0.0
        %1552 = vmatpush2.msra.mxu0 0.0
        %1553 = vmatprep.subr.mxu0 0.0
        %1554 = vmatpush2.msra.mxu0 0.0
        %1555 = vmatprep.subr.mxu0 0.0
        %1556 = vmatpush2.msra.mxu0 0.0
        %1557 = vmatprep.subr.mxu0 0.0
        %1558 = vmatpush2.msra.mxu0 0.0
        %1559 = vmatprep.mubr.f32.mxu0 0.0
        %1560 = vmatmul.mubr.f32.gmra.mxu0 %v1493
        %v1561 = vpop.f32.mrf.mxu0
        %v1562 = vadd.f32 %v1490, %v1561
        %v1563 = vpop.f32.mrf.mxu0
        %1564 = vdwg.mxu0
        %v1565 = vmax.f32 %v1562, 0.0
        %v1566 = vld [vmem:[#allocation13] sm:$0xff]
        %v1567 = vld [vmem:[#allocation13 + $0x8] sm:$0xff]
        %v1568 = vld [vmem:[#allocation13 + $0x10] sm:$0xff]
        %v1569 = vld [vmem:[#allocation13 + $0x18] sm:$0xff]
        %v1570 = vld [vmem:[%s18] sm:$0x1]
        %v1572 = vlaneseq
        %v1573 = vshrl.u32 %v1572, 7
        %v1574 = vsub.s32 0, %v1573
        %v1575 = vrot.slane %v1570, %v1574
        %v1578 = vsel %vm833, %v1565, 0
        %1580 = vmatprep.subr.mxu0 0.0
        %1581 = vmatpush1.msra.mxu0 0.0
        %1582 = vmatprep.subr.mxu0 0.0
        %1583 = vmatpush1.msra.mxu0 0.0
        %1584 = vmatprep.subr.mxu0 0.0
        %1585 = vmatpush1.msra.mxu0 0.0
        %1586 = vmatprep.subr.mxu0 0.0
        %1587 = vmatpush1.msra.mxu0 0.0
        %1588 = vmatprep.subr.mxu0 0.0
        %1589 = vmatpush1.msra.mxu0 0.0
        %1590 = vmatprep.subr.mxu0 0.0
        %1591 = vmatpush1.msra.mxu0 0.0
        %1592 = vmatprep.subr.mxu0 0.0
        %1593 = vmatpush1.msra.mxu0 0.0
        %1594 = vmatprep.subr.mxu0 0.0
        %1595 = vmatpush1.msra.mxu0 0.0
        %1596 = vmatprep.subr.mxu0 0.0
        %1597 = vmatpush1.msra.mxu0 0.0
        %1598 = vmatprep.subr.mxu0 0.0
        %1599 = vmatpush1.msra.mxu0 0.0
        %1600 = vmatprep.subr.mxu0 0.0
        %1601 = vmatpush1.msra.mxu0 0.0
        %1602 = vmatprep.subr.mxu0 0.0
        %1603 = vmatpush1.msra.mxu0 0.0
        %1604 = vmatprep.subr.mxu0 0.0
        %1605 = vmatpush1.msra.mxu0 %v1569
        %1606 = vmatprep.subr.mxu0 0.0
        %1607 = vmatpush1.msra.mxu0 %v1568
        %1608 = vmatprep.subr.mxu0 0.0
        %1609 = vmatpush1.msra.mxu0 %v1567
        %1610 = vmatprep.subr.mxu0 0.0
        %1611 = vmatpush1.msra.mxu0 %v1566
        %1612 = vmatprep.subr.mxu0 0.0
        %1613 = vmatpush2.msra.mxu0 0.0
        %1614 = vmatprep.subr.mxu0 0.0
        %1615 = vmatpush2.msra.mxu0 0.0
        %1616 = vmatprep.subr.mxu0 0.0
        %1617 = vmatpush2.msra.mxu0 0.0
        %1618 = vmatprep.subr.mxu0 0.0
        %1619 = vmatpush2.msra.mxu0 0.0
        %1620 = vmatprep.subr.mxu0 0.0
        %1621 = vmatpush2.msra.mxu0 0.0
        %1622 = vmatprep.subr.mxu0 0.0
        %1623 = vmatpush2.msra.mxu0 0.0
        %1624 = vmatprep.subr.mxu0 0.0
        %1625 = vmatpush2.msra.mxu0 0.0
        %1626 = vmatprep.subr.mxu0 0.0
        %1627 = vmatpush2.msra.mxu0 0.0
        %1628 = vmatprep.subr.mxu0 0.0
        %1629 = vmatpush2.msra.mxu0 0.0
        %1630 = vmatprep.subr.mxu0 0.0
        %1631 = vmatpush2.msra.mxu0 0.0
        %1632 = vmatprep.subr.mxu0 0.0
        %1633 = vmatpush2.msra.mxu0 0.0
        %1634 = vmatprep.subr.mxu0 0.0
        %1635 = vmatpush2.msra.mxu0 0.0
        %1636 = vmatprep.subr.mxu0 0.0
        %1637 = vmatpush2.msra.mxu0 0.0
        %1638 = vmatprep.subr.mxu0 0.0
        %1639 = vmatpush2.msra.mxu0 0.0
        %1640 = vmatprep.subr.mxu0 0.0
        %1641 = vmatpush2.msra.mxu0 0.0
        %1642 = vmatprep.subr.mxu0 0.0
        %1643 = vmatpush2.msra.mxu0 0.0
        %1644 = vmatprep.mubr.f32.mxu0 0.0
        %1645 = vmatmul.mubr.f32.gmra.mxu0 %v1578
        %v1646 = vpop.f32.mrf.mxu0
        %v1647 = vadd.f32 %v1575, %v1646
        %v1648 = vpop.f32.mrf.mxu0
        %1649 = vdwg.mxu0
        %v1650 = vadd.f32 %v1480, %v1647
        %v1651 = vmul.f32 %v1650, %v823
        %s1652 = scalar_lea.vmem %s5, 1
        %v1653 = vld [vmem:[%s1652] sm:$0x1]
        %s1654 = scalar_lea.vmem %s6, 1
        %v1655 = vld [vmem:[%s1654] sm:$0x1]
        %v1656 = vsel %vm833, %v1651, 0.0
        %1657 = vadd.xlane.f32.xlu0 %v1656
        %v1658 = vpop.xlane.xlu0 %1657
        %v1659 = vmul.f32 %v1658, %v837
        %v1660 = vsub.f32 %v1651, %v1659
        %v1661 = vmul.f32 %v1660, %v1660
        %v1662 = vsel %vm833, %v1661, 0.0
        %1663 = vadd.xlane.f32.xlu0 %v1662
        %v1664 = vpop.xlane.xlu0 %1663
        %v1665 = vmul.f32 %v1664, %v837
        %v1666 = vadd.f32 %v1665, 1e-08
        %v1667 = vrsqrt.pop %v1666
        %v1668 = vmul.f32 %v1660, %v1667
        %v1670 = vlaneseq
        %v1671 = vshrl.u32 %v1670, 7
        %v1672 = vsub.s32 0, %v1671
        %v1673 = vrot.slane %v1653, %v1672
        %v1675 = vmul.f32 %v1668, %v1673
        %v1677 = vlaneseq
        %v1678 = vshrl.u32 %v1677, 7
        %v1679 = vsub.s32 0, %v1678
        %v1680 = vrot.slane %v1655, %v1679
        %v1682 = vadd.f32 %v1675, %v1680
        %s1683 = scalar_lea.vmem [#allocation7], 32
        %v1684 = vld [vmem:[%s1683] sm:$0xff]
        %v1685 = vld [vmem:[%s1683 + $0x8] sm:$0xff]
        %v1686 = vld [vmem:[%s1683 + $0x10] sm:$0xff]
        %v1687 = vld [vmem:[%s1683 + $0x18] sm:$0xff]
        %s1688 = scalar_lea.vmem %s8, 1
        %v1689 = vld [vmem:[%s1688] sm:$0x1]
        %v1691 = vlaneseq
        %v1692 = vshrl.u32 %v1691, 7
        %v1693 = vsub.s32 0, %v1692
        %v1694 = vrot.slane %v1689, %v1693
        %v1697 = vsel %vm833, %v1682, 0
        %1699 = vmatprep.subr.mxu0 0.0
        %1700 = vmatpush1.msra.mxu0 0.0
        %1701 = vmatprep.subr.mxu0 0.0
        %1702 = vmatpush1.msra.mxu0 0.0
        %1703 = vmatprep.subr.mxu0 0.0
        %1704 = vmatpush1.msra.mxu0 0.0
        %1705 = vmatprep.subr.mxu0 0.0
        %1706 = vmatpush1.msra.mxu0 0.0
        %1707 = vmatprep.subr.mxu0 0.0
        %1708 = vmatpush1.msra.mxu0 0.0
        %1709 = vmatprep.subr.mxu0 0.0
        %1710 = vmatpush1.msra.mxu0 0.0
        %1711 = vmatprep.subr.mxu0 0.0
        %1712 = vmatpush1.msra.mxu0 0.0
        %1713 = vmatprep.subr.mxu0 0.0
        %1714 = vmatpush1.msra.mxu0 0.0
        %1715 = vmatprep.subr.mxu0 0.0
        %1716 = vmatpush1.msra.mxu0 0.0
        %1717 = vmatprep.subr.mxu0 0.0
        %1718 = vmatpush1.msra.mxu0 0.0
        %1719 = vmatprep.subr.mxu0 0.0
        %1720 = vmatpush1.msra.mxu0 0.0
        %1721 = vmatprep.subr.mxu0 0.0
        %1722 = vmatpush1.msra.mxu0 0.0
        %1723 = vmatprep.subr.mxu0 0.0
        %1724 = vmatpush1.msra.mxu0 %v1687
        %1725 = vmatprep.subr.mxu0 0.0
        %1726 = vmatpush1.msra.mxu0 %v1686
        %1727 = vmatprep.subr.mxu0 0.0
        %1728 = vmatpush1.msra.mxu0 %v1685
        %1729 = vmatprep.subr.mxu0 0.0
        %1730 = vmatpush1.msra.mxu0 %v1684
        %1731 = vmatprep.subr.mxu0 0.0
        %1732 = vmatpush2.msra.mxu0 0.0
        %1733 = vmatprep.subr.mxu0 0.0
        %1734 = vmatpush2.msra.mxu0 0.0
        %1735 = vmatprep.subr.mxu0 0.0
        %1736 = vmatpush2.msra.mxu0 0.0
        %1737 = vmatprep.subr.mxu0 0.0
        %1738 = vmatpush2.msra.mxu0 0.0
        %1739 = vmatprep.subr.mxu0 0.0
        %1740 = vmatpush2.msra.mxu0 0.0
        %1741 = vmatprep.subr.mxu0 0.0
        %1742 = vmatpush2.msra.mxu0 0.0
        %1743 = vmatprep.subr.mxu0 0.0
        %1744 = vmatpush2.msra.mxu0 0.0
        %1745 = vmatprep.subr.mxu0 0.0
        %1746 = vmatpush2.msra.mxu0 0.0
        %1747 = vmatprep.subr.mxu0 0.0
        %1748 = vmatpush2.msra.mxu0 0.0
        %1749 = vmatprep.subr.mxu0 0.0
        %1750 = vmatpush2.msra.mxu0 0.0
        %1751 = vmatprep.subr.mxu0 0.0
        %1752 = vmatpush2.msra.mxu0 0.0
        %1753 = vmatprep.subr.mxu0 0.0
        %1754 = vmatpush2.msra.mxu0 0.0
        %1755 = vmatprep.subr.mxu0 0.0
        %1756 = vmatpush2.msra.mxu0 0.0
        %1757 = vmatprep.subr.mxu0 0.0
        %1758 = vmatpush2.msra.mxu0 0.0
        %1759 = vmatprep.subr.mxu0 0.0
        %1760 = vmatpush2.msra.mxu0 0.0
        %1761 = vmatprep.subr.mxu0 0.0
        %1762 = vmatpush2.msra.mxu0 0.0
        %1763 = vmatprep.mubr.f32.mxu0 0.0
        %1764 = vmatmul.mubr.f32.gmra.mxu0 %v1697
        %v1765 = vpop.f32.mrf.mxu0
        %v1766 = vadd.f32 %v1694, %v1765
        %v1767 = vpop.f32.mrf.mxu0
        %1768 = vdwg.mxu0
        %s1769 = scalar_lea.vmem [#allocation8], 32
        %v1770 = vld [vmem:[%s1769] sm:$0xff]
        %v1771 = vld [vmem:[%s1769 + $0x8] sm:$0xff]
        %v1772 = vld [vmem:[%s1769 + $0x10] sm:$0xff]
        %v1773 = vld [vmem:[%s1769 + $0x18] sm:$0xff]
        %s1774 = scalar_lea.vmem %s10, 1
        %v1775 = vld [vmem:[%s1774] sm:$0x1]
        %v1777 = vlaneseq
        %v1778 = vshrl.u32 %v1777, 7
        %v1779 = vsub.s32 0, %v1778
        %v1780 = vrot.slane %v1775, %v1779
        %v1783 = vsel %vm833, %v1651, 0
        %1785 = vmatprep.subr.mxu0 0.0
        %1786 = vmatpush1.msra.mxu0 0.0
        %1787 = vmatprep.subr.mxu0 0.0
        %1788 = vmatpush1.msra.mxu0 0.0
        %1789 = vmatprep.subr.mxu0 0.0
        %1790 = vmatpush1.msra.mxu0 0.0
        %1791 = vmatprep.subr.mxu0 0.0
        %1792 = vmatpush1.msra.mxu0 0.0
        %1793 = vmatprep.subr.mxu0 0.0
        %1794 = vmatpush1.msra.mxu0 0.0
        %1795 = vmatprep.subr.mxu0 0.0
        %1796 = vmatpush1.msra.mxu0 0.0
        %1797 = vmatprep.subr.mxu0 0.0
        %1798 = vmatpush1.msra.mxu0 0.0
        %1799 = vmatprep.subr.mxu0 0.0
        %1800 = vmatpush1.msra.mxu0 0.0
        %1801 = vmatprep.subr.mxu0 0.0
        %1802 = vmatpush1.msra.mxu0 0.0
        %1803 = vmatprep.subr.mxu0 0.0
        %1804 = vmatpush1.msra.mxu0 0.0
        %1805 = vmatprep.subr.mxu0 0.0
        %1806 = vmatpush1.msra.mxu0 0.0
        %1807 = vmatprep.subr.mxu0 0.0
        %1808 = vmatpush1.msra.mxu0 0.0
        %1809 = vmatprep.subr.mxu0 0.0
        %1810 = vmatpush1.msra.mxu0 %v1773
        %1811 = vmatprep.subr.mxu0 0.0
        %1812 = vmatpush1.msra.mxu0 %v1772
        %1813 = vmatprep.subr.mxu0 0.0
        %1814 = vmatpush1.msra.mxu0 %v1771
        %1815 = vmatprep.subr.mxu0 0.0
        %1816 = vmatpush1.msra.mxu0 %v1770
        %1817 = vmatprep.subr.mxu0 0.0
        %1818 = vmatpush2.msra.mxu0 0.0
        %1819 = vmatprep.subr.mxu0 0.0
        %1820 = vmatpush2.msra.mxu0 0.0
        %1821 = vmatprep.subr.mxu0 0.0
        %1822 = vmatpush2.msra.mxu0 0.0
        %1823 = vmatprep.subr.mxu0 0.0
        %1824 = vmatpush2.msra.mxu0 0.0
        %1825 = vmatprep.subr.mxu0 0.0
        %1826 = vmatpush2.msra.mxu0 0.0
        %1827 = vmatprep.subr.mxu0 0.0
        %1828 = vmatpush2.msra.mxu0 0.0
        %1829 = vmatprep.subr.mxu0 0.0
        %1830 = vmatpush2.msra.mxu0 0.0
        %1831 = vmatprep.subr.mxu0 0.0
        %1832 = vmatpush2.msra.mxu0 0.0
        %1833 = vmatprep.subr.mxu0 0.0
        %1834 = vmatpush2.msra.mxu0 0.0
        %1835 = vmatprep.subr.mxu0 0.0
        %1836 = vmatpush2.msra.mxu0 0.0
        %1837 = vmatprep.subr.mxu0 0.0
        %1838 = vmatpush2.msra.mxu0 0.0
        %1839 = vmatprep.subr.mxu0 0.0
        %1840 = vmatpush2.msra.mxu0 0.0
        %1841 = vmatprep.subr.mxu0 0.0
        %1842 = vmatpush2.msra.mxu0 0.0
        %1843 = vmatprep.subr.mxu0 0.0
        %1844 = vmatpush2.msra.mxu0 0.0
        %1845 = vmatprep.subr.mxu0 0.0
        %1846 = vmatpush2.msra.mxu0 0.0
        %1847 = vmatprep.subr.mxu0 0.0
        %1848 = vmatpush2.msra.mxu0 0.0
        %1849 = vmatprep.mubr.f32.mxu0 0.0
        %1850 = vmatmul.mubr.f32.gmra.mxu0 %v1783
        %v1851 = vpop.f32.mrf.mxu0
        %v1852 = vadd.f32 %v1780, %v1851
        %v1853 = vpop.f32.mrf.mxu0
        %1854 = vdwg.mxu0
        %v1856 = vsel %vm1030, %v1766, 0
        %v1859 = vsel %vm1030, %v1852, 0
        %1861 = vmatprep.subr.mxu0 0.0
        %1862 = vmatpush1.xpose.msra.mxu0 0.0
        %1863 = vmatprep.subr.mxu0 0.0
        %1864 = vmatpush1.xpose.msra.mxu0 0.0
        %1865 = vmatprep.subr.mxu0 0.0
        %1866 = vmatpush1.xpose.msra.mxu0 0.0
        %1867 = vmatprep.subr.mxu0 0.0
        %1868 = vmatpush1.xpose.msra.mxu0 0.0
        %1869 = vmatprep.subr.mxu0 0.0
        %1870 = vmatpush1.xpose.msra.mxu0 0.0
        %1871 = vmatprep.subr.mxu0 0.0
        %1872 = vmatpush1.xpose.msra.mxu0 0.0
        %1873 = vmatprep.subr.mxu0 0.0
        %1874 = vmatpush1.xpose.msra.mxu0 0.0
        %1875 = vmatprep.subr.mxu0 0.0
        %1876 = vmatpush1.xpose.msra.mxu0 0.0
        %1877 = vmatprep.subr.mxu0 0.0
        %1878 = vmatpush1.xpose.msra.mxu0 0.0
        %1879 = vmatprep.subr.mxu0 0.0
        %1880 = vmatpush1.xpose.msra.mxu0 0.0
        %1881 = vmatprep.subr.mxu0 0.0
        %1882 = vmatpush1.xpose.msra.mxu0 0.0
        %1883 = vmatprep.subr.mxu0 0.0
        %1884 = vmatpush1.xpose.msra.mxu0 0.0
        %1885 = vmatprep.subr.mxu0 0.0
        %1886 = vmatpush1.xpose.msra.mxu0 0.0
        %1887 = vmatprep.subr.mxu0 0.0
        %1888 = vmatpush1.xpose.msra.mxu0 0.0
        %1889 = vmatprep.subr.mxu0 0.0
        %1890 = vmatpush1.xpose.msra.mxu0 0.0
        %1891 = vmatprep.subr.mxu0 0.0
        %1892 = vmatpush1.xpose.msra.mxu0 %v1859
        %1893 = vmatprep.subr.mxu0 0.0
        %1894 = vmatpush2.xpose.msra.mxu0 0.0
        %1895 = vmatprep.subr.mxu0 0.0
        %1896 = vmatpush2.xpose.msra.mxu0 0.0
        %1897 = vmatprep.subr.mxu0 0.0
        %1898 = vmatpush2.xpose.msra.mxu0 0.0
        %1899 = vmatprep.subr.mxu0 0.0
        %1900 = vmatpush2.xpose.msra.mxu0 0.0
        %1901 = vmatprep.subr.mxu0 0.0
        %1902 = vmatpush2.xpose.msra.mxu0 0.0
        %1903 = vmatprep.subr.mxu0 0.0
        %1904 = vmatpush2.xpose.msra.mxu0 0.0
        %1905 = vmatprep.subr.mxu0 0.0
        %1906 = vmatpush2.xpose.msra.mxu0 0.0
        %1907 = vmatprep.subr.mxu0 0.0
        %1908 = vmatpush2.xpose.msra.mxu0 0.0
        %1909 = vmatprep.subr.mxu0 0.0
        %1910 = vmatpush2.xpose.msra.mxu0 0.0
        %1911 = vmatprep.subr.mxu0 0.0
        %1912 = vmatpush2.xpose.msra.mxu0 0.0
        %1913 = vmatprep.subr.mxu0 0.0
        %1914 = vmatpush2.xpose.msra.mxu0 0.0
        %1915 = vmatprep.subr.mxu0 0.0
        %1916 = vmatpush2.xpose.msra.mxu0 0.0
        %1917 = vmatprep.subr.mxu0 0.0
        %1918 = vmatpush2.xpose.msra.mxu0 0.0
        %1919 = vmatprep.subr.mxu0 0.0
        %1920 = vmatpush2.xpose.msra.mxu0 0.0
        %1921 = vmatprep.subr.mxu0 0.0
        %1922 = vmatpush2.xpose.msra.mxu0 0.0
        %1923 = vmatprep.subr.mxu0 0.0
        %1924 = vmatpush2.xpose.msra.mxu0 0.0
        %1925 = vmatprep.mubr.f32.mxu0 0.0
        %1926 = vmatmul.mubr.f32.gmra.mxu0 %v1856
        %v1927 = vpop.f32.mrf.mxu0
        %v1928 = vadd.f32 0.0, %v1927
        %v1929 = vpop.f32.mrf.mxu0
        %1930 = vdwg.mxu0
        %v1931 = vsel %vm830, %v1928, -1e+30
        %v1932 = vsel %vm1108, %v1931, -inf
        %1933 = vmax.xlane.f32.xlu0 %v1932
        %v1934 = vpop.xlane.xlu0 %1933
        %v1935 = vsub.f32 %v1931, %v1934
        %v1936 = vmul.f32 %v1935, 1.442695
        %v1937 = vpow.pop %v1936
        %v1938 = vsel %vm1108, %v1937, 0.0
        %1939 = vadd.xlane.f32.xlu0 %v1938
        %v1940 = vpop.xlane.xlu0 %1939
        %v1941 = vrcp.pop %v1940
        %v1942 = vmul.f32 %v1937, %v1941
        %1943 = vrot.lane.b32.xlu0 %v1852, 96
        %v1944 = vpop.permute.xlu0 %1943
        %v1947 = vsel %vm1108, %v1942, 0
        %1949 = vmatprep.subr.mxu0 0.0
        %1950 = vmatpush1.msra.mxu0 0.0
        %1951 = vmatprep.subr.mxu0 0.0
        %1952 = vmatpush1.msra.mxu0 0.0
        %1953 = vmatprep.subr.mxu0 0.0
        %1954 = vmatpush1.msra.mxu0 0.0
        %1955 = vmatprep.subr.mxu0 0.0
        %1956 = vmatpush1.msra.mxu0 0.0
        %1957 = vmatprep.subr.mxu0 0.0
        %1958 = vmatpush1.msra.mxu0 0.0
        %1959 = vmatprep.subr.mxu0 0.0
        %1960 = vmatpush1.msra.mxu0 0.0
        %1961 = vmatprep.subr.mxu0 0.0
        %1962 = vmatpush1.msra.mxu0 0.0
        %1963 = vmatprep.subr.mxu0 0.0
        %1964 = vmatpush1.msra.mxu0 0.0
        %1965 = vmatprep.subr.mxu0 0.0
        %1966 = vmatpush1.msra.mxu0 0.0
        %1967 = vmatprep.subr.mxu0 0.0
        %1968 = vmatpush1.msra.mxu0 0.0
        %1969 = vmatprep.subr.mxu0 0.0
        %1970 = vmatpush1.msra.mxu0 0.0
        %1971 = vmatprep.subr.mxu0 0.0
        %1972 = vmatpush1.msra.mxu0 0.0
        %1973 = vmatprep.subr.mxu0 0.0
        %1974 = vmatpush1.msra.mxu0 0.0
        %1975 = vmatprep.subr.mxu0 0.0
        %1976 = vmatpush1.msra.mxu0 0.0
        %1977 = vmatprep.subr.mxu0 0.0
        %1978 = vmatpush1.msra.mxu0 0.0
        %1979 = vmatprep.subr.mxu0 0.0
        %1980 = vmatpush1.msra.mxu0 %v1944
        %1981 = vmatprep.subr.mxu0 0.0
        %1982 = vmatpush2.msra.mxu0 0.0
        %1983 = vmatprep.subr.mxu0 0.0
        %1984 = vmatpush2.msra.mxu0 0.0
        %1985 = vmatprep.subr.mxu0 0.0
        %1986 = vmatpush2.msra.mxu0 0.0
        %1987 = vmatprep.subr.mxu0 0.0
        %1988 = vmatpush2.msra.mxu0 0.0
        %1989 = vmatprep.subr.mxu0 0.0
        %1990 = vmatpush2.msra.mxu0 0.0
        %1991 = vmatprep.subr.mxu0 0.0
        %1992 = vmatpush2.msra.mxu0 0.0
        %1993 = vmatprep.subr.mxu0 0.0
        %1994 = vmatpush2.msra.mxu0 0.0
        %1995 = vmatprep.subr.mxu0 0.0
        %1996 = vmatpush2.msra.mxu0 0.0
        %1997 = vmatprep.subr.mxu0 0.0
        %1998 = vmatpush2.msra.mxu0 0.0
        %1999 = vmatprep.subr.mxu0 0.0
        %2000 = vmatpush2.msra.mxu0 0.0
        %2001 = vmatprep.subr.mxu0 0.0
        %2002 = vmatpush2.msra.mxu0 0.0
        %2003 = vmatprep.subr.mxu0 0.0
        %2004 = vmatpush2.msra.mxu0 0.0
        %2005 = vmatprep.subr.mxu0 0.0
        %2006 = vmatpush2.msra.mxu0 0.0
        %2007 = vmatprep.subr.mxu0 0.0
        %2008 = vmatpush2.msra.mxu0 0.0
        %2009 = vmatprep.subr.mxu0 0.0
        %2010 = vmatpush2.msra.mxu0 0.0
        %2011 = vmatprep.subr.mxu0 0.0
        %2012 = vmatpush2.msra.mxu0 0.0
        %2013 = vmatprep.mubr.f32.mxu0 0.0
        %2014 = vmatmul.mubr.f32.gmra.mxu0 %v1947
        %v2015 = vpop.f32.mrf.mxu0
        %v2016 = vadd.f32 0.0, %v2015
        %v2017 = vpop.f32.mrf.mxu0
        %2018 = vdwg.mxu0
        %2019 = vrot.lane.b32.xlu0 %v1766, 112
        %v2020 = vpop.permute.xlu0 %2019
        %2021 = vrot.lane.b32.xlu0 %v1852, 112
        %v2022 = vpop.permute.xlu0 %2021
        %v2023 = vsel %vm1030, %v2020, 0
        %v2025 = vsel %vm1030, %v2022, 0
        %2027 = vmatprep.subr.mxu0 0.0
        %2028 = vmatpush1.xpose.msra.mxu0 0.0
        %2029 = vmatprep.subr.mxu0 0.0
        %2030 = vmatpush1.xpose.msra.mxu0 0.0
        %2031 = vmatprep.subr.mxu0 0.0
        %2032 = vmatpush1.xpose.msra.mxu0 0.0
        %2033 = vmatprep.subr.mxu0 0.0
        %2034 = vmatpush1.xpose.msra.mxu0 0.0
        %2035 = vmatprep.subr.mxu0 0.0
        %2036 = vmatpush1.xpose.msra.mxu0 0.0
        %2037 = vmatprep.subr.mxu0 0.0
        %2038 = vmatpush1.xpose.msra.mxu0 0.0
        %2039 = vmatprep.subr.mxu0 0.0
        %2040 = vmatpush1.xpose.msra.mxu0 0.0
        %2041 = vmatprep.subr.mxu0 0.0
        %2042 = vmatpush1.xpose.msra.mxu0 0.0
        %2043 = vmatprep.subr.mxu0 0.0
        %2044 = vmatpush1.xpose.msra.mxu0 0.0
        %2045 = vmatprep.subr.mxu0 0.0
        %2046 = vmatpush1.xpose.msra.mxu0 0.0
        %2047 = vmatprep.subr.mxu0 0.0
        %2048 = vmatpush1.xpose.msra.mxu0 0.0
        %2049 = vmatprep.subr.mxu0 0.0
        %2050 = vmatpush1.xpose.msra.mxu0 0.0
        %2051 = vmatprep.subr.mxu0 0.0
        %2052 = vmatpush1.xpose.msra.mxu0 0.0
        %2053 = vmatprep.subr.mxu0 0.0
        %2054 = vmatpush1.xpose.msra.mxu0 0.0
        %2055 = vmatprep.subr.mxu0 0.0
        %2056 = vmatpush1.xpose.msra.mxu0 0.0
        %2057 = vmatprep.subr.mxu0 0.0
        %2058 = vmatpush1.xpose.msra.mxu0 %v2025
        %2059 = vmatprep.subr.mxu0 0.0
        %2060 = vmatpush2.xpose.msra.mxu0 0.0
        %2061 = vmatprep.subr.mxu0 0.0
        %2062 = vmatpush2.xpose.msra.mxu0 0.0
        %2063 = vmatprep.subr.mxu0 0.0
        %2064 = vmatpush2.xpose.msra.mxu0 0.0
        %2065 = vmatprep.subr.mxu0 0.0
        %2066 = vmatpush2.xpose.msra.mxu0 0.0
        %2067 = vmatprep.subr.mxu0 0.0
        %2068 = vmatpush2.xpose.msra.mxu0 0.0
        %2069 = vmatprep.subr.mxu0 0.0
        %2070 = vmatpush2.xpose.msra.mxu0 0.0
        %2071 = vmatprep.subr.mxu0 0.0
        %2072 = vmatpush2.xpose.msra.mxu0 0.0
        %2073 = vmatprep.subr.mxu0 0.0
        %2074 = vmatpush2.xpose.msra.mxu0 0.0
        %2075 = vmatprep.subr.mxu0 0.0
        %2076 = vmatpush2.xpose.msra.mxu0 0.0
        %2077 = vmatprep.subr.mxu0 0.0
        %2078 = vmatpush2.xpose.msra.mxu0 0.0
        %2079 = vmatprep.subr.mxu0 0.0
        %2080 = vmatpush2.xpose.msra.mxu0 0.0
        %2081 = vmatprep.subr.mxu0 0.0
        %2082 = vmatpush2.xpose.msra.mxu0 0.0
        %2083 = vmatprep.subr.mxu0 0.0
        %2084 = vmatpush2.xpose.msra.mxu0 0.0
        %2085 = vmatprep.subr.mxu0 0.0
        %2086 = vmatpush2.xpose.msra.mxu0 0.0
        %2087 = vmatprep.subr.mxu0 0.0
        %2088 = vmatpush2.xpose.msra.mxu0 0.0
        %2089 = vmatprep.subr.mxu0 0.0
        %2090 = vmatpush2.xpose.msra.mxu0 0.0
        %2091 = vmatprep.mubr.f32.mxu0 0.0
        %2092 = vmatmul.mubr.f32.gmra.mxu0 %v2023
        %v2093 = vpop.f32.mrf.mxu0
        %v2094 = vadd.f32 0.0, %v2093
        %v2095 = vpop.f32.mrf.mxu0
        %2096 = vdwg.mxu0
        %v2097 = vsel %vm830, %v2094, -1e+30
        %v2098 = vsel %vm1108, %v2097, -inf
        %2099 = vmax.xlane.f32.xlu0 %v2098
        %v2100 = vpop.xlane.xlu0 %2099
        %v2101 = vsub.f32 %v2097, %v2100
        %v2102 = vmul.f32 %v2101, 1.442695
        %v2103 = vpow.pop %v2102
        %v2104 = vsel %vm1108, %v2103, 0.0
        %2105 = vadd.xlane.f32.xlu0 %v2104
        %v2106 = vpop.xlane.xlu0 %2105
        %v2107 = vrcp.pop %v2106
        %v2108 = vmul.f32 %v2103, %v2107
        %2109 = vrot.lane.b32.xlu0 %v1852, 80
        %v2110 = vpop.permute.xlu0 %2109
        %v2113 = vsel %vm1108, %v2108, 0
        %2115 = vmatprep.subr.mxu0 0.0
        %2116 = vmatpush1.msra.mxu0 0.0
        %2117 = vmatprep.subr.mxu0 0.0
        %2118 = vmatpush1.msra.mxu0 0.0
        %2119 = vmatprep.subr.mxu0 0.0
        %2120 = vmatpush1.msra.mxu0 0.0
        %2121 = vmatprep.subr.mxu0 0.0
        %2122 = vmatpush1.msra.mxu0 0.0
        %2123 = vmatprep.subr.mxu0 0.0
        %2124 = vmatpush1.msra.mxu0 0.0
        %2125 = vmatprep.subr.mxu0 0.0
        %2126 = vmatpush1.msra.mxu0 0.0
        %2127 = vmatprep.subr.mxu0 0.0
        %2128 = vmatpush1.msra.mxu0 0.0
        %2129 = vmatprep.subr.mxu0 0.0
        %2130 = vmatpush1.msra.mxu0 0.0
        %2131 = vmatprep.subr.mxu0 0.0
        %2132 = vmatpush1.msra.mxu0 0.0
        %2133 = vmatprep.subr.mxu0 0.0
        %2134 = vmatpush1.msra.mxu0 0.0
        %2135 = vmatprep.subr.mxu0 0.0
        %2136 = vmatpush1.msra.mxu0 0.0
        %2137 = vmatprep.subr.mxu0 0.0
        %2138 = vmatpush1.msra.mxu0 0.0
        %2139 = vmatprep.subr.mxu0 0.0
        %2140 = vmatpush1.msra.mxu0 0.0
        %2141 = vmatprep.subr.mxu0 0.0
        %2142 = vmatpush1.msra.mxu0 0.0
        %2143 = vmatprep.subr.mxu0 0.0
        %2144 = vmatpush1.msra.mxu0 0.0
        %2145 = vmatprep.subr.mxu0 0.0
        %2146 = vmatpush1.msra.mxu0 %v2110
        %2147 = vmatprep.subr.mxu0 0.0
        %2148 = vmatpush2.msra.mxu0 0.0
        %2149 = vmatprep.subr.mxu0 0.0
        %2150 = vmatpush2.msra.mxu0 0.0
        %2151 = vmatprep.subr.mxu0 0.0
        %2152 = vmatpush2.msra.mxu0 0.0
        %2153 = vmatprep.subr.mxu0 0.0
        %2154 = vmatpush2.msra.mxu0 0.0
        %2155 = vmatprep.subr.mxu0 0.0
        %2156 = vmatpush2.msra.mxu0 0.0
        %2157 = vmatprep.subr.mxu0 0.0
        %2158 = vmatpush2.msra.mxu0 0.0
        %2159 = vmatprep.subr.mxu0 0.0
        %2160 = vmatpush2.msra.mxu0 0.0
        %2161 = vmatprep.subr.mxu0 0.0
        %2162 = vmatpush2.msra.mxu0 0.0
        %2163 = vmatprep.subr.mxu0 0.0
        %2164 = vmatpush2.msra.mxu0 0.0
        %2165 = vmatprep.subr.mxu0 0.0
        %2166 = vmatpush2.msra.mxu0 0.0
        %2167 = vmatprep.subr.mxu0 0.0
        %2168 = vmatpush2.msra.mxu0 0.0
        %2169 = vmatprep.subr.mxu0 0.0
        %2170 = vmatpush2.msra.mxu0 0.0
        %2171 = vmatprep.subr.mxu0 0.0
        %2172 = vmatpush2.msra.mxu0 0.0
        %2173 = vmatprep.subr.mxu0 0.0
        %2174 = vmatpush2.msra.mxu0 0.0
        %2175 = vmatprep.subr.mxu0 0.0
        %2176 = vmatpush2.msra.mxu0 0.0
        %2177 = vmatprep.subr.mxu0 0.0
        %2178 = vmatpush2.msra.mxu0 0.0
        %2179 = vmatprep.mubr.f32.mxu0 0.0
        %2180 = vmatmul.mubr.f32.gmra.mxu0 %v2113
        %v2181 = vpop.f32.mrf.mxu0
        %v2182 = vadd.f32 0.0, %v2181
        %v2183 = vpop.f32.mrf.mxu0
        %2184 = vdwg.mxu0
        %2186 = vrot.lane.b32.xlu0 %v2182, 16
        %v2187 = vpop.permute.xlu0 %2186
        %v2189 = vsel %vm1030, %v2016, %v2187
        %s2190 = scalar_lea.vmem [#allocation10], 32
        %v2191 = vld [vmem:[%s2190] sm:$0xff]
        %v2192 = vld [vmem:[%s2190 + $0x8] sm:$0xff]
        %v2193 = vld [vmem:[%s2190 + $0x10] sm:$0xff]
        %v2194 = vld [vmem:[%s2190 + $0x18] sm:$0xff]
        %s2195 = scalar_lea.vmem %s12, 1
        %v2196 = vld [vmem:[%s2195] sm:$0x1]
        %v2198 = vlaneseq
        %v2199 = vshrl.u32 %v2198, 7
        %v2200 = vsub.s32 0, %v2199
        %v2201 = vrot.slane %v2196, %v2200
        %v2204 = vsel %vm833, %v2189, 0
        %2206 = vmatprep.subr.mxu0 0.0
        %2207 = vmatpush1.msra.mxu0 0.0
        %2208 = vmatprep.subr.mxu0 0.0
        %2209 = vmatpush1.msra.mxu0 0.0
        %2210 = vmatprep.subr.mxu0 0.0
        %2211 = vmatpush1.msra.mxu0 0.0
        %2212 = vmatprep.subr.mxu0 0.0
        %2213 = vmatpush1.msra.mxu0 0.0
        %2214 = vmatprep.subr.mxu0 0.0
        %2215 = vmatpush1.msra.mxu0 0.0
        %2216 = vmatprep.subr.mxu0 0.0
        %2217 = vmatpush1.msra.mxu0 0.0
        %2218 = vmatprep.subr.mxu0 0.0
        %2219 = vmatpush1.msra.mxu0 0.0
        %2220 = vmatprep.subr.mxu0 0.0
        %2221 = vmatpush1.msra.mxu0 0.0
        %2222 = vmatprep.subr.mxu0 0.0
        %2223 = vmatpush1.msra.mxu0 0.0
        %2224 = vmatprep.subr.mxu0 0.0
        %2225 = vmatpush1.msra.mxu0 0.0
        %2226 = vmatprep.subr.mxu0 0.0
        %2227 = vmatpush1.msra.mxu0 0.0
        %2228 = vmatprep.subr.mxu0 0.0
        %2229 = vmatpush1.msra.mxu0 0.0
        %2230 = vmatprep.subr.mxu0 0.0
        %2231 = vmatpush1.msra.mxu0 %v2194
        %2232 = vmatprep.subr.mxu0 0.0
        %2233 = vmatpush1.msra.mxu0 %v2193
        %2234 = vmatprep.subr.mxu0 0.0
        %2235 = vmatpush1.msra.mxu0 %v2192
        %2236 = vmatprep.subr.mxu0 0.0
        %2237 = vmatpush1.msra.mxu0 %v2191
        %2238 = vmatprep.subr.mxu0 0.0
        %2239 = vmatpush2.msra.mxu0 0.0
        %2240 = vmatprep.subr.mxu0 0.0
        %2241 = vmatpush2.msra.mxu0 0.0
        %2242 = vmatprep.subr.mxu0 0.0
        %2243 = vmatpush2.msra.mxu0 0.0
        %2244 = vmatprep.subr.mxu0 0.0
        %2245 = vmatpush2.msra.mxu0 0.0
        %2246 = vmatprep.subr.mxu0 0.0
        %2247 = vmatpush2.msra.mxu0 0.0
        %2248 = vmatprep.subr.mxu0 0.0
        %2249 = vmatpush2.msra.mxu0 0.0
        %2250 = vmatprep.subr.mxu0 0.0
        %2251 = vmatpush2.msra.mxu0 0.0
        %2252 = vmatprep.subr.mxu0 0.0
        %2253 = vmatpush2.msra.mxu0 0.0
        %2254 = vmatprep.subr.mxu0 0.0
        %2255 = vmatpush2.msra.mxu0 0.0
        %2256 = vmatprep.subr.mxu0 0.0
        %2257 = vmatpush2.msra.mxu0 0.0
        %2258 = vmatprep.subr.mxu0 0.0
        %2259 = vmatpush2.msra.mxu0 0.0
        %2260 = vmatprep.subr.mxu0 0.0
        %2261 = vmatpush2.msra.mxu0 0.0
        %2262 = vmatprep.subr.mxu0 0.0
        %2263 = vmatpush2.msra.mxu0 0.0
        %2264 = vmatprep.subr.mxu0 0.0
        %2265 = vmatpush2.msra.mxu0 0.0
        %2266 = vmatprep.subr.mxu0 0.0
        %2267 = vmatpush2.msra.mxu0 0.0
        %2268 = vmatprep.subr.mxu0 0.0
        %2269 = vmatpush2.msra.mxu0 0.0
        %2270 = vmatprep.mubr.f32.mxu0 0.0
        %2271 = vmatmul.mubr.f32.gmra.mxu0 %v2204
        %v2272 = vpop.f32.mrf.mxu0
        %v2273 = vadd.f32 %v2201, %v2272
        %v2274 = vpop.f32.mrf.mxu0
        %2275 = vdwg.mxu0
        %v2276 = vadd.f32 %v1682, %v2273
        %s2277 = scalar_lea.vmem %s13, 1
        %v2278 = vld [vmem:[%s2277] sm:$0x1]
        %s2279 = scalar_lea.vmem %s14, 1
        %v2280 = vld [vmem:[%s2279] sm:$0x1]
        %v2281 = vsel %vm833, %v2276, 0.0
        %2282 = vadd.xlane.f32.xlu0 %v2281
        %v2283 = vpop.xlane.xlu0 %2282
        %v2284 = vmul.f32 %v2283, %v837
        %v2285 = vsub.f32 %v2276, %v2284
        %v2286 = vmul.f32 %v2285, %v2285
        %v2287 = vsel %vm833, %v2286, 0.0
        %2288 = vadd.xlane.f32.xlu0 %v2287
        %v2289 = vpop.xlane.xlu0 %2288
        %v2290 = vmul.f32 %v2289, %v837
        %v2291 = vadd.f32 %v2290, 1e-08
        %v2292 = vrsqrt.pop %v2291
        %v2293 = vmul.f32 %v2285, %v2292
        %v2295 = vlaneseq
        %v2296 = vshrl.u32 %v2295, 7
        %v2297 = vsub.s32 0, %v2296
        %v2298 = vrot.slane %v2278, %v2297
        %v2300 = vmul.f32 %v2293, %v2298
        %v2302 = vlaneseq
        %v2303 = vshrl.u32 %v2302, 7
        %v2304 = vsub.s32 0, %v2303
        %v2305 = vrot.slane %v2280, %v2304
        %v2307 = vadd.f32 %v2300, %v2305
        %s2308 = scalar_lea.vmem [#allocation11], 32
        %v2309 = vld [vmem:[%s2308] sm:$0xff]
        %v2310 = vld [vmem:[%s2308 + $0x8] sm:$0xff]
        %v2311 = vld [vmem:[%s2308 + $0x10] sm:$0xff]
        %v2312 = vld [vmem:[%s2308 + $0x18] sm:$0xff]
        %s2313 = scalar_lea.vmem %s16, 1
        %v2314 = vld [vmem:[%s2313] sm:$0x1]
        %v2316 = vlaneseq
        %v2317 = vshrl.u32 %v2316, 7
        %v2318 = vsub.s32 0, %v2317
        %v2319 = vrot.slane %v2314, %v2318
        %v2322 = vsel %vm833, %v2307, 0
        %2324 = vmatprep.subr.mxu0 0.0
        %2325 = vmatpush1.msra.mxu0 0.0
        %2326 = vmatprep.subr.mxu0 0.0
        %2327 = vmatpush1.msra.mxu0 0.0
        %2328 = vmatprep.subr.mxu0 0.0
        %2329 = vmatpush1.msra.mxu0 0.0
        %2330 = vmatprep.subr.mxu0 0.0
        %2331 = vmatpush1.msra.mxu0 0.0
        %2332 = vmatprep.subr.mxu0 0.0
        %2333 = vmatpush1.msra.mxu0 0.0
        %2334 = vmatprep.subr.mxu0 0.0
        %2335 = vmatpush1.msra.mxu0 0.0
        %2336 = vmatprep.subr.mxu0 0.0
        %2337 = vmatpush1.msra.mxu0 0.0
        %2338 = vmatprep.subr.mxu0 0.0
        %2339 = vmatpush1.msra.mxu0 0.0
        %2340 = vmatprep.subr.mxu0 0.0
        %2341 = vmatpush1.msra.mxu0 0.0
        %2342 = vmatprep.subr.mxu0 0.0
        %2343 = vmatpush1.msra.mxu0 0.0
        %2344 = vmatprep.subr.mxu0 0.0
        %2345 = vmatpush1.msra.mxu0 0.0
        %2346 = vmatprep.subr.mxu0 0.0
        %2347 = vmatpush1.msra.mxu0 0.0
        %2348 = vmatprep.subr.mxu0 0.0
        %2349 = vmatpush1.msra.mxu0 %v2312
        %2350 = vmatprep.subr.mxu0 0.0
        %2351 = vmatpush1.msra.mxu0 %v2311
        %2352 = vmatprep.subr.mxu0 0.0
        %2353 = vmatpush1.msra.mxu0 %v2310
        %2354 = vmatprep.subr.mxu0 0.0
        %2355 = vmatpush1.msra.mxu0 %v2309
        %2356 = vmatprep.subr.mxu0 0.0
        %2357 = vmatpush2.msra.mxu0 0.0
        %2358 = vmatprep.subr.mxu0 0.0
        %2359 = vmatpush2.msra.mxu0 0.0
        %2360 = vmatprep.subr.mxu0 0.0
        %2361 = vmatpush2.msra.mxu0 0.0
        %2362 = vmatprep.subr.mxu0 0.0
        %2363 = vmatpush2.msra.mxu0 0.0
        %2364 = vmatprep.subr.mxu0 0.0
        %2365 = vmatpush2.msra.mxu0 0.0
        %2366 = vmatprep.subr.mxu0 0.0
        %2367 = vmatpush2.msra.mxu0 0.0
        %2368 = vmatprep.subr.mxu0 0.0
        %2369 = vmatpush2.msra.mxu0 0.0
        %2370 = vmatprep.subr.mxu0 0.0
        %2371 = vmatpush2.msra.mxu0 0.0
        %2372 = vmatprep.subr.mxu0 0.0
        %2373 = vmatpush2.msra.mxu0 0.0
        %2374 = vmatprep.subr.mxu0 0.0
        %2375 = vmatpush2.msra.mxu0 0.0
        %2376 = vmatprep.subr.mxu0 0.0
        %2377 = vmatpush2.msra.mxu0 0.0
        %2378 = vmatprep.subr.mxu0 0.0
        %2379 = vmatpush2.msra.mxu0 0.0
        %2380 = vmatprep.subr.mxu0 0.0
        %2381 = vmatpush2.msra.mxu0 0.0
        %2382 = vmatprep.subr.mxu0 0.0
        %2383 = vmatpush2.msra.mxu0 0.0
        %2384 = vmatprep.subr.mxu0 0.0
        %2385 = vmatpush2.msra.mxu0 0.0
        %2386 = vmatprep.subr.mxu0 0.0
        %2387 = vmatpush2.msra.mxu0 0.0
        %2388 = vmatprep.mubr.f32.mxu0 0.0
        %2389 = vmatmul.mubr.f32.gmra.mxu0 %v2322
        %v2390 = vpop.f32.mrf.mxu0
        %v2391 = vadd.f32 %v2319, %v2390
        %v2392 = vpop.f32.mrf.mxu0
        %2393 = vdwg.mxu0
        %v2394 = vmax.f32 %v2391, 0.0
        %s2395 = scalar_lea.vmem [#allocation13], 32
        %v2396 = vld [vmem:[%s2395] sm:$0xff]
        %v2397 = vld [vmem:[%s2395 + $0x8] sm:$0xff]
        %v2398 = vld [vmem:[%s2395 + $0x10] sm:$0xff]
        %v2399 = vld [vmem:[%s2395 + $0x18] sm:$0xff]
        %s2400 = scalar_lea.vmem %s18, 1
        %v2401 = vld [vmem:[%s2400] sm:$0x1]
        %v2403 = vlaneseq
        %v2404 = vshrl.u32 %v2403, 7
        %v2405 = vsub.s32 0, %v2404
        %v2406 = vrot.slane %v2401, %v2405
        %v2409 = vsel %vm833, %v2394, 0
        %2411 = vmatprep.subr.mxu0 0.0
        %2412 = vmatpush1.msra.mxu0 0.0
        %2413 = vmatprep.subr.mxu0 0.0
        %2414 = vmatpush1.msra.mxu0 0.0
        %2415 = vmatprep.subr.mxu0 0.0
        %2416 = vmatpush1.msra.mxu0 0.0
        %2417 = vmatprep.subr.mxu0 0.0
        %2418 = vmatpush1.msra.mxu0 0.0
        %2419 = vmatprep.subr.mxu0 0.0
        %2420 = vmatpush1.msra.mxu0 0.0
        %2421 = vmatprep.subr.mxu0 0.0
        %2422 = vmatpush1.msra.mxu0 0.0
        %2423 = vmatprep.subr.mxu0 0.0
        %2424 = vmatpush1.msra.mxu0 0.0
        %2425 = vmatprep.subr.mxu0 0.0
        %2426 = vmatpush1.msra.mxu0 0.0
        %2427 = vmatprep.subr.mxu0 0.0
        %2428 = vmatpush1.msra.mxu0 0.0
        %2429 = vmatprep.subr.mxu0 0.0
        %2430 = vmatpush1.msra.mxu0 0.0
        %2431 = vmatprep.subr.mxu0 0.0
        %2432 = vmatpush1.msra.mxu0 0.0
        %2433 = vmatprep.subr.mxu0 0.0
        %2434 = vmatpush1.msra.mxu0 0.0
        %2435 = vmatprep.subr.mxu0 0.0
        %2436 = vmatpush1.msra.mxu0 %v2399
        %2437 = vmatprep.subr.mxu0 0.0
        %2438 = vmatpush1.msra.mxu0 %v2398
        %2439 = vmatprep.subr.mxu0 0.0
        %2440 = vmatpush1.msra.mxu0 %v2397
        %2441 = vmatprep.subr.mxu0 0.0
        %2442 = vmatpush1.msra.mxu0 %v2396
        %2443 = vmatprep.subr.mxu0 0.0
        %2444 = vmatpush2.msra.mxu0 0.0
        %2445 = vmatprep.subr.mxu0 0.0
        %2446 = vmatpush2.msra.mxu0 0.0
        %2447 = vmatprep.subr.mxu0 0.0
        %2448 = vmatpush2.msra.mxu0 0.0
        %2449 = vmatprep.subr.mxu0 0.0
        %2450 = vmatpush2.msra.mxu0 0.0
        %2451 = vmatprep.subr.mxu0 0.0
        %2452 = vmatpush2.msra.mxu0 0.0
        %2453 = vmatprep.subr.mxu0 0.0
        %2454 = vmatpush2.msra.mxu0 0.0
        %2455 = vmatprep.subr.mxu0 0.0
        %2456 = vmatpush2.msra.mxu0 0.0
        %2457 = vmatprep.subr.mxu0 0.0
        %2458 = vmatpush2.msra.mxu0 0.0
        %2459 = vmatprep.subr.mxu0 0.0
        %2460 = vmatpush2.msra.mxu0 0.0
        %2461 = vmatprep.subr.mxu0 0.0
        %2462 = vmatpush2.msra.mxu0 0.0
        %2463 = vmatprep.subr.mxu0 0.0
        %2464 = vmatpush2.msra.mxu0 0.0
        %2465 = vmatprep.subr.mxu0 0.0
        %2466 = vmatpush2.msra.mxu0 0.0
        %2467 = vmatprep.subr.mxu0 0.0
        %2468 = vmatpush2.msra.mxu0 0.0
        %2469 = vmatprep.subr.mxu0 0.0
        %2470 = vmatpush2.msra.mxu0 0.0
        %2471 = vmatprep.subr.mxu0 0.0
        %2472 = vmatpush2.msra.mxu0 0.0
        %2473 = vmatprep.subr.mxu0 0.0
        %2474 = vmatpush2.msra.mxu0 0.0
        %2475 = vmatprep.mubr.f32.mxu0 0.0
        %2476 = vmatmul.mubr.f32.gmra.mxu0 %v2409
        %v2477 = vpop.f32.mrf.mxu0
        %v2478 = vadd.f32 %v2406, %v2477
        %v2479 = vpop.f32.mrf.mxu0
        %2480 = vdwg.mxu0
        %v2481 = vadd.f32 %v2307, %v2478
        %v2482 = vmul.f32 %v2481, %v823
        %v2483 = vld [vmem:[%s19] sm:$0x1]
        %v2484 = vld [vmem:[%s20] sm:$0x1]
        %v2485 = vsel %vm833, %v2482, 0.0
        %2486 = vadd.xlane.f32.xlu0 %v2485
        %v2487 = vpop.xlane.xlu0 %2486
        %v2488 = vmul.f32 %v2487, %v837
        %v2489 = vsub.f32 %v2482, %v2488
        %v2490 = vmul.f32 %v2489, %v2489
        %v2491 = vsel %vm833, %v2490, 0.0
        %2492 = vadd.xlane.f32.xlu0 %v2491
        %v2493 = vpop.xlane.xlu0 %2492
        %v2494 = vmul.f32 %v2493, %v837
        %v2495 = vadd.f32 %v2494, 1e-08
        %v2496 = vrsqrt.pop %v2495
        %v2497 = vmul.f32 %v2489, %v2496
        %v2499 = vlaneseq
        %v2500 = vshrl.u32 %v2499, 7
        %v2501 = vsub.s32 0, %v2500
        %v2502 = vrot.slane %v2483, %v2501
        %v2504 = vmul.f32 %v2497, %v2502
        %v2506 = vlaneseq
        %v2507 = vshrl.u32 %v2506, 7
        %v2508 = vsub.s32 0, %v2507
        %v2509 = vrot.slane %v2484, %v2508
        %v2511 = vadd.f32 %v2504, %v2509
        %v2512 = vld [vmem:[%s706] sm:$0xff]
        %v2513 = vmul.f32 %v2511, %v2512
        %v2514 = vsel %vm833, %v2513, 0.0
        %2515 = vadd.xlane.f32.xlu0 %v2514
        %v2516 = vpop.xlane.xlu0 %2515
        %v2517 = vld [vmem:[%s715] sm:$0xff]
        %v2518 = vmul.f32 %v2511, %v2517
        %v2519 = vsel %vm833, %v2518, 0.0
        %2520 = vadd.xlane.f32.xlu0 %v2519
        %v2521 = vpop.xlane.xlu0 %2520
        %v2522 = vsub.f32 0.0, %v2516
        %v2523 = vmax.f32 %v2522, 0.0
        %v2524 = vand.u32 2147483647, %v2522
        %v2525 = vsub.f32 0.0, %v2524
        %v2526 = vmul.f32 %v2525, 1.442695
        %v2527 = vpow.pop %v2526
        %v2528 = vadd.f32 %v2527, 1.0
        %v2529 = vlog2.pop %v2528
        %v2530 = vmul.f32 %v2529, 0.6931472
        %v2531 = vadd.f32 %v2523, %v2530
        %v2532 = vmul.f32 %v815, %v2531
        %2534 = vrot.lane.b32.xlu0 %v2532, 127
        %v2535 = vpop.permute.xlu0 %2534
        %vm2537 = vcmask 7168
        %v2538 = vsel %vm2537, %v2535, 0.0
        %2539 = vadd.xlane.f32.xlu0 %v2538
        %v2540 = vpop.xlane.xlu0 %2539
        %v2541 = vrot.slane %v2540, 4
        %v2542 = vadd.f32 %v2540, %v2541
        %v2543 = vrot.slane %v2542, 2
        %v2544 = vadd.f32 %v2542, %v2543
        %v2545 = vrot.slane %v2544, 1
        %v2546 = vadd.f32 %v2544, %v2545
        %s2547 = vtos %v2546
        %v2548 = vmax.f32 %v2521, 0.0
        %v2549 = vand.u32 2147483647, %v2521
        %v2550 = vsub.f32 0.0, %v2549
        %v2551 = vmul.f32 %v2550, 1.442695
        %v2552 = vpow.pop %v2551
        %v2553 = vadd.f32 %v2552, 1.0
        %v2554 = vlog2.pop %v2553
        %v2555 = vmul.f32 %v2554, 0.6931472
        %v2556 = vadd.f32 %v2548, %v2555
        %v2557 = vmul.f32 %v815, %v2556
        %2559 = vrot.lane.b32.xlu0 %v2557, 127
        %v2560 = vpop.permute.xlu0 %2559
        %v2562 = vsel %vm2537, %v2560, 0.0
        %2563 = vadd.xlane.f32.xlu0 %v2562
        %v2564 = vpop.xlane.xlu0 %2563
        %v2565 = vrot.slane %v2564, 4
        %v2566 = vadd.f32 %v2564, %v2565
        %v2567 = vrot.slane %v2566, 2
        %v2568 = vadd.f32 %v2566, %v2567
        %v2569 = vrot.slane %v2568, 1
        %v2570 = vadd.f32 %v2568, %v2569
        %s2571 = vtos %v2570
        %2572 = vrot.lane.b32.xlu0 %v815, 127
        %v2573 = vpop.permute.xlu0 %2572
        %v2575 = vsel %vm2537, %v2573, 0.0
        %2576 = vadd.xlane.f32.xlu0 %v2575
        %v2577 = vpop.xlane.xlu0 %2576
        %v2578 = vrot.slane %v2577, 4
        %v2579 = vadd.f32 %v2577, %v2578
        %v2580 = vrot.slane %v2579, 2
        %v2581 = vadd.f32 %v2579, %v2580
        %v2582 = vrot.slane %v2581, 1
        %v2583 = vadd.f32 %v2581, %v2582
        %s2584 = vtos %v2583
        %vm2585 = vcmp.eq.s32.totalorder %v827, 0
        %vm2586 = vcmp.eq.s32.totalorder %v829, 0
        %vm2587 = vmand %vm2585, %vm2586
        %vm2588 = vcmp.eq.s32.totalorder %v829, 1
        %vm2589 = vmand %vm2585, %vm2588
        %vm2590 = vcmp.eq.s32.totalorder %v829, 2
        %vm2591 = vmand %vm2585, %vm2590
        %v2592 = vstv %s2584
        %v2593 = vsel %vm2591, %v2592, 0.0
        %v2594 = vstv %s2571
        %v2595 = vsel %vm2589, %v2594, %v2593
        %v2596 = vstv %s2547
        %v2597 = vsel %vm2587, %v2596, %v2595
        %2598 = vst [vmem:[%s806] sm:$0xff] %v2597
        %s2599 = sand.u32 %s512, 1
        %s2600 = scalar_lea.sflag [#allocation4], %s2599
        %s2601 = sand.u32 %s512, 1
        %s2602 = smul.addr %s2601, 8
        %s2603 = scalar_lea.vmem [#allocation14], %s2602
        // Predicated region
        $region133: #{tpu_custom_call.1} parent=103 // pred_check
          %p2604 = pneg %p522
        $region134: #{tpu_custom_call.1} parent=103 // pred_check_branch
          %2606 = sbr.rel (%p2604) target = $region136
        $region135: #{tpu_custom_call.1} parent=103 // pred_region
          %s2608 = ssub.s32 128, 128
          %2609 = vsyncadd %s2600, %s2608
          %s2610 = smul.addr %s43, 128
          %s2611 = scalar_lea.hbm %s21, %s2610
          %s2613 = sshll.u32 %s2603, 4
          %s2614 = int_to_ptr.vmem [resolvable:$true] %s2613
          %2616 = dma.vmem_to_hbm [thread:$0]  %s2614, 128, %s2611, %s2600
        $region136: #{tpu_custom_call.1} parent=103 // pred_fallthru
          _
      $region104: #{tpu_custom_call.1} parent=5 // pred_fallthru
        _
      %p2617 = scmp.le.s32.totalorder 2, %s38
      // Predicated region
      $region137: #{tpu_custom_call.1} parent=5 // pred_check
        %p2618 = pneg %p2617
      $region138: #{tpu_custom_call.1} parent=5 // pred_check_branch
        %2620 = sbr.rel (%p2618) target = $region140
      $region139: #{tpu_custom_call.1} parent=5 // pred_region
        %s2621 = ssub.s32 %s38, 2
        // Predicated region
        $region141: #{tpu_custom_call.1} parent=139 // pred_check
          %p2622 = pneg %p528
        $region142: #{tpu_custom_call.1} parent=139 // pred_check_branch
          %2624 = sbr.rel (%p2622) target = $region144
        $region143: #{tpu_custom_call.1} parent=139 // pred_region
          %s2625 = sand.u32 %s513, 1
          %s2626 = scalar_lea.sflag [#allocation4], %s2625
          %s2627 = sand.u32 %s513, 1
          %s2628 = smul.addr %s2627, 8
          %s2629 = scalar_lea.vmem [#allocation14], %s2628
          %2630 = dma.done %s2626, 128
        $region144: #{tpu_custom_call.1} parent=139 // pred_fallthru
          _
      $region140: #{tpu_custom_call.1} parent=5 // pred_fallthru
        _
    $region6: #{tpu_custom_call.1} parent=1 // loop_footer
      %s42 = sadd.s32 1, %s38
    $region7: #{tpu_custom_call.1} parent=1 // loop_footer_branch
      %37 = sbr.rel target = $region3
    $region8: #{tpu_custom_call.1} parent=1 // loop_exit
      _
    %2631 = vsyncpa [#allocation3], 1
    %s2632 = scalar_lea.sflag [#allocation3], 1
    %2633 = vsyncpa %s2632, 1
    %2634 = vsyncpa [#allocation6], 1
    %s2635 = scalar_lea.sflag [#allocation6], 1
    %2636 = vsyncpa %s2635, 1
    %2637 = vsyncpa [#allocation9], 1
    %2638 = vsyncpa [#allocation12], 1
    %2639 = vsyncpa [#allocation4], 1
    %s2640 = scalar_lea.sflag [#allocation4], 1
    %2641 = vsyncpa %s2640, 1

</llo_original>
